<compile_context>
chip_gen: v6e
topology: v6e:2x2x1
jax: 0.10.0
libtpu: 0.0.40
codegen_flags: <defaults>
</compile_context>

<pallas_src>
import math
from functools import partial

import jax
import jax.numpy as jnp
from jax import lax
from jax.experimental import pallas as pl
from jax.experimental.pallas import tpu as pltpu

_INV_SQRT2 = 1.0 / math.sqrt(2.0)
_LN_EPS = 1e-5
_MIB = 1024 * 1024


def _round_up(x, m):
    return (x + m - 1) // m * m


def _layer_norm(x, gamma, beta):
    mu = jnp.mean(x, axis=-1, keepdims=True)
    xc = x - mu
    var = jnp.mean(xc * xc, axis=-1, keepdims=True)
    return xc * lax.rsqrt(var + _LN_EPS) * gamma + beta


def _compiler_params(semantics, vmem_need_bytes):
    # Scoped-VMEM default is 16 MiB (v5e) / 32 MiB (v6e, v7x) -- far below
    # physical on v5e/v6e.  Request 2x the estimated working set, floored at
    # 32 MiB, capped at 64 MiB so the request also respects v7x's 64 MiB/TC.
    limit = int(min(max(2 * vmem_need_bytes, 32 * _MIB), 64 * _MIB))
    return pltpu.CompilerParams(dimension_semantics=semantics,
                                vmem_limit_bytes=limit)


# ----------------------------------------------------------------------------
# Kernel 1: y = x + Proj( CosineAttention( norm1(x), mask ) )
# ----------------------------------------------------------------------------
def _attn_block_kernel(num_heads, x_ref, mask_ref, g_ref, b_ref,
                       wq_ref, wk_ref, wv_ref, wp_ref, bp_ref, o_ref,
                       q_sc, k_sc, v_sc, ctx_sc):
    x = x_ref[0].astype(jnp.float32)                      # (N, D)
    n, d = x.shape
    hd = d // num_heads

    xn = _layer_norm(x, g_ref[...], b_ref[...])           # norm1 (f32 math)
    xn = xn.astype(wq_ref.dtype)                          # bf16-ready MXU input

    # Full-width QKV projections (fill MXU lanes + contraction depth); results
    # go straight to VMEM scratch so nothing big is loop-carried across heads.
    q_sc[...] = jnp.dot(xn, wq_ref[...], preferred_element_type=jnp.float32)
    k_sc[...] = jnp.dot(xn, wk_ref[...], preferred_element_type=jnp.float32)
    v_sc[...] = jnp.dot(xn, wv_ref[...], preferred_element_type=jnp.float32)

    # Hoisted key-mask bias: compare + (-max) splat done once, reused per head.
    neg = -jnp.finfo(jnp.float32).max                     # torch mask_value
    mask_bias = jnp.where(mask_ref[0] > 0.5, 0.0, neg)    # (1, N)

    for h in range(num_heads):                            # H is small & static
        lo, hi = h * hd, (h + 1) * hd
        qh = q_sc[:, lo:hi]                               # (N, hd) f32
        kh = k_sc[:, lo:hi]

        # centered cosine similarity:  (q-c_q)/||.|| @ ((k-c_k)/||.||)^T
        qh = qh - jnp.mean(qh, axis=-1, keepdims=True)
        kh = kh - jnp.mean(kh, axis=-1, keepdims=True)
        qh = qh * lax.rsqrt(jnp.sum(qh * qh, axis=-1, keepdims=True) + 1e-12)
        kh = kh * lax.rsqrt(jnp.sum(kh * kh, axis=-1, keepdims=True) + 1e-12)
        dots = lax.dot_general(qh, kh, (((1,), (1,)), ((), ())),
                               preferred_element_type=jnp.float32)   # (N, N)

        dots = dots + mask_bias                           # mask keys (= -max)
        m = jnp.max(dots, axis=-1, keepdims=True)
        e = jnp.exp(dots - m)
        p = e * pl.reciprocal(jnp.sum(e, axis=-1, keepdims=True), approx=True)

        ctx_sc[:, lo:hi] = jnp.dot(p, v_sc[:, lo:hi],
                                   preferred_element_type=jnp.float32)

    # Single full-width output projection over all heads, + bias + residual.
    y = jnp.dot(ctx_sc[...].astype(wp_ref.dtype), wp_ref[...],
                preferred_element_type=jnp.float32) + bp_ref[...]
    o_ref[0] = (x_ref[0].astype(jnp.float32) + y).astype(o_ref.dtype)


def attention_block_pallas(x, mask, ln_g, ln_b, wq, wk, wv, wp, bp, *, num_heads):
    B, N, D = x.shape
    assert D % num_heads == 0, "dim must be divisible by num_heads"
    mask_f = mask.astype(jnp.float32).reshape(B, 1, N)
    ln_g2d = ln_g.reshape(1, D).astype(jnp.float32)
    ln_b2d = ln_b.reshape(1, D).astype(jnp.float32)
    bp_2d = bp.reshape(1, D).astype(jnp.float32)

    x_item = x.dtype.itemsize
    w_item = wq.dtype.itemsize
    vmem_need = (4 * N * D * x_item        # x in + out, double-buffered
                 + 4 * D * D * w_item      # resident projection weights
                 + 4 * N * D * 4           # q/k/v/ctx VMEM scratch
                 + 4 * N * D * 4           # xn / y / residual temporaries
                 + 4 * N * N * 4)          # per-head score/softmax temporaries

    kernel = partial(_attn_block_kernel, num_heads)

    def call(single_buffer_weights):
        # Constant-index weight blocks never get re-fetched -> one VMEM buffer
        # is enough (saves ~4*D^2*bytes vs. default double-buffering, v7x win).
        wkw = dict(pipeline_mode=pl.Buffered(1)) if single_buffer_weights else {}
        return pl.pallas_call(
            kernel,
            out_shape=jax.ShapeDtypeStruct((B, N, D), x.dtype),
            grid_spec=pltpu.PrefetchScalarGridSpec(
                num_scalar_prefetch=0,
                grid=(B,),
                in_specs=[
                    pl.BlockSpec((1, N, D), lambda b: (b, 0, 0)),   # x slab
                    pl.BlockSpec((1, 1, N), lambda b: (b, 0, 0)),   # mask row
                    pl.BlockSpec((1, D), lambda b: (0, 0)),         # norm1 gamma
                    pl.BlockSpec((1, D), lambda b: (0, 0)),         # norm1 beta
                    pl.BlockSpec((D, D), lambda b: (0, 0), **wkw),  # Wq (full)
                    pl.BlockSpec((D, D), lambda b: (0, 0), **wkw),  # Wk (full)
                    pl.BlockSpec((D, D), lambda b: (0, 0), **wkw),  # Wv (full)
                    pl.BlockSpec((D, D), lambda b: (0, 0), **wkw),  # Wproj
                    pl.BlockSpec((1, D), lambda b: (0, 0)),         # proj bias
                ],
                out_specs=pl.BlockSpec((1, N, D), lambda b: (b, 0, 0)),
                scratch_shapes=[pltpu.VMEM((N, D), jnp.float32)] * 4,
            ),
            compiler_params=_compiler_params(("parallel",), vmem_need),
        )(x, mask_f, ln_g2d, ln_b2d, wq, wk, wv, wp, bp_2d)

    try:
        return call(True)
    except Exception:  # pragma: no cover - fall back if Buffered(1) unsupported
        return call(False)


# ----------------------------------------------------------------------------
# Kernel 2: y = x + fc2( GELU( fc1( norm2(x) ) ) )      (hidden dim streamed)
# ----------------------------------------------------------------------------
def _mlp_block_kernel(x_ref, g_ref, b_ref, w1_ref, b1_ref, w2_ref, b2_ref,
                      o_ref, xn_sc, acc_sc):
    k = pl.program_id(1)

    @pl.when(k == 0)
    def _():
        x = x_ref[...].astype(jnp.float32)
        xn_sc[...] = _layer_norm(x, g_ref[...], b_ref[...])   # norm2
        acc_sc[...] = jnp.zeros_like(acc_sc)

    xn = xn_sc[...].astype(w1_ref.dtype)                  # bf16-ready MXU input
    h = jnp.dot(xn, w1_ref[...], preferred_element_type=jnp.float32)
    h = h + b1_ref[...]
    # Exact-erf GELU (torch default).  If VALU-bound, swap for the tanh approx.
    h = 0.5 * h * (1.0 + lax.erf(h * _INV_SQRT2))
    # drop1: p = 0.0 -> identity
    acc_sc[...] += jnp.dot(h.astype(w2_ref.dtype), w2_ref[...],
                           preferred_element_type=jnp.float32)

    @pl.when(k == pl.num_programs(1) - 1)
    def _():
        # drop2: p = 0.0 -> identity; add fc2 bias + residual, single store
        out = x_ref[...].astype(jnp.float32) + acc_sc[...] + b2_ref[...]
        o_ref[...] = out.astype(o_ref.dtype)


def mlp_block_pallas(x, ln_g, ln_b, w1, b1, w2, b2, *, tm=512, th=1024):
    orig_shape = x.shape
    D = x.shape[-1]
    hidden = w1.shape[1]
    assert w2.shape[0] == hidden and w2.shape[1] == D, \
        "residual requires out_features == in_features"

    x2d = x.reshape(-1, D)
    tokens = x2d.shape[0]

    # Token tiling: fixed tile (multiple of the 8-row sublane packing).
    tm_eff = min(tm, _round_up(tokens, 8))
    tokens_pad = _round_up(tokens, tm_eff)
    if tokens_pad != tokens:
        x2d = jnp.pad(x2d, ((0, tokens_pad - tokens), (0, 0)))

    # Hidden streaming chunk: a multiple of 128 lanes.  Never fall back to the
    # full hidden dim -- zero-pad hidden instead (exact: GELU(0)=0 and the
    # padded rows of W2 are zero).
    th_eff = _round_up(min(th, _round_up(hidden, 128)), 128)
    hidden_pad = _round_up(hidden, th_eff)
    if hidden_pad != hidden:
        w1 = jnp.pad(w1, ((0, 0), (0, hidden_pad - hidden)))
        b1 = jnp.pad(b1, ((0, hidden_pad - hidden),))
        w2 = jnp.pad(w2, ((0, hidden_pad - hidden), (0, 0)))

    grid = (tokens_pad // tm_eff, hidden_pad // th_eff)

    ln_g2d = ln_g.reshape(1, D).astype(jnp.float32)
    ln_b2d = ln_b.reshape(1, D).astype(jnp.float32)
    b1_2d = b1.reshape(1, hidden_pad)
    b2_2d = b2.reshape(1, D)

    x_item = x2d.dtype.itemsize
    w_item = w1.dtype.itemsize
    vmem_need = (4 * tm_eff * D * x_item          # x tile in + out, double-buffered
                 + 4 * D * th_eff * w_item        # W1 + W2 chunks, double-buffered
                 + tm_eff * th_eff * 4            # fc1/GELU activation tile
                 + 2 * tm_eff * D * 4             # xn / acc scratch
                 + 2 * (th_eff + D) * 4)          # bias rows

    out = pl.pallas_call(
        _mlp_block_kernel,
        out_shape=jax.ShapeDtypeStruct((tokens_pad, D), x.dtype),
        grid_spec=pltpu.PrefetchScalarGridSpec(
            num_scalar_prefetch=0,
            grid=grid,
            in_specs=[
                pl.BlockSpec((tm_eff, D), lambda i, k: (i, 0)),    # x tile (resident over k)
                pl.BlockSpec((1, D), lambda i, k: (0, 0)),         # norm2 gamma
                pl.BlockSpec((1, D), lambda i, k: (0, 0)),         # norm2 beta
                pl.BlockSpec((D, th_eff), lambda i, k: (0, k)),    # W1 hidden-chunk
                pl.BlockSpec((1, th_eff), lambda i, k: (0, k)),    # b1 hidden-chunk
                pl.BlockSpec((th_eff, D), lambda i, k: (k, 0)),    # W2 hidden-chunk
                pl.BlockSpec((1, D), lambda i, k: (0, 0)),         # b2
            ],
            out_specs=pl.BlockSpec((tm_eff, D), lambda i, k: (i, 0)),
            scratch_shapes=[
                pltpu.VMEM((tm_eff, D), jnp.float32),              # normed x tile
                pltpu.VMEM((tm_eff, D), jnp.float32),              # fc2 accumulator
            ],
        ),
        compiler_params=_compiler_params(("parallel", "arbitrary"), vmem_need),
    )(x2d, ln_g2d, ln_b2d, w1, b1_2d, w2, b2_2d)

    if tokens_pad != tokens:
        out = out[:tokens]
    return out.reshape(orig_shape[:-1] + (D,))


# ----------------------------------------------------------------------------
# Full Block forward (drop=0, attn_drop=0, drop_path=0 -> identities)
# ----------------------------------------------------------------------------
def vit_block_pallas(x, mask, p, *, num_heads, tm=512, th=1024):
    y = attention_block_pallas(x, mask, p["g1"], p["bt1"],
                               p["wq"], p["wk"], p["wv"], p["wp"], p["bp"],
                               num_heads=num_heads)
    y = mlp_block_pallas(y, p["g2"], p["bt2"],
                         p["w1"], p["b1"], p["w2"], p["b2"], tm=tm, th=th)
    return y


# ----------------------------------------------------------------------------
# Plain-JAX reference (mirrors the PyTorch Block forward exactly)
# ----------------------------------------------------------------------------
def vit_block_reference(x, mask, p, num_heads):
    B, N, D = x.shape
    hd = D // num_heads

    def split_heads(t):                              # (B,N,D) -> (B,H,N,hd)
        return t.reshape(B, N, num_heads, hd).transpose(0, 2, 1, 3)

    xn = _layer_norm(x, p["g1"], p["bt1"])
    q = split_heads(xn @ p["wq"])
    k = split_heads(xn @ p["wk"])
    v = split_heads(xn @ p["wv"])
    q = q - q.mean(-1, keepdims=True)
    k = k - k.mean(-1, keepdims=True)
    qk = jnp.einsum("bhnk,bhmk->bhnm", q, k)
    qq = jnp.sqrt((q * q).sum(-1))[..., :, None]
    kk = jnp.sqrt((k * k).sum(-1))[..., None, :]
    dots = qk / (qq * kk)
    neg = -jnp.finfo(dots.dtype).max
    dots = jnp.where(mask[:, None, None, :], dots, neg)
    attn = jax.nn.softmax(dots, axis=-1)
    ctx = jnp.einsum("bhnm,bhmk->bhnk", attn, v)
    ctx = ctx.transpose(0, 2, 1, 3).reshape(B, N, D)
    x = x + ctx @ p["wp"] + p["bp"]
    xn2 = _layer_norm(x, p["g2"], p["bt2"])
    h = xn2 @ p["w1"] + p["b1"]
    h = 0.5 * h * (1.0 + lax.erf(h * _INV_SQRT2))
    return x + (h @ p["w2"] + p["b2"])


def init_block_params(key, dim, num_heads, mlp_ratio=4.0, dtype=jnp.float32):
    del num_heads  # weights are stored full-width (torch qkv/proj layout)
    hidden = int(dim * mlp_ratio)
    ks = jax.random.split(key, 13)
    bd = 1.0 / math.sqrt(dim)
    bh = 1.0 / math.sqrt(hidden)
    u = lambda k_, s, b: jax.random.uniform(k_, s, dtype, -b, b)
    return dict(
        g1=1.0 + 0.1 * jax.random.normal(ks[0], (dim,), dtype),
        bt1=0.1 * jax.random.normal(ks[1], (dim,), dtype),
        wq=u(ks[2], (dim, dim), bd),          # = qkv.weight[:dim].T
        wk=u(ks[3], (dim, dim), bd),          # = qkv.weight[dim:2*dim].T
        wv=u(ks[4], (dim, dim), bd),          # = qkv.weight[2*dim:].T
        wp=u(ks[5], (dim, dim), bd),          # = proj.weight.T
        bp=u(ks[6], (dim,), bd),
        g2=1.0 + 0.1 * jax.random.normal(ks[7], (dim,), dtype),
        bt2=0.1 * jax.random.normal(ks[8], (dim,), dtype),
        w1=u(ks[9], (dim, hidden), bd),
        b1=u(ks[10], (hidden,), bd),
        w2=u(ks[11], (hidden, dim), bh),
        b2=u(ks[12], (dim,), bh),
    )


if __name__ == "__main__":
    # Small ViT-like Block: batch=2, seq=16, dim=32, heads=4, mlp_ratio=4.
    B, N, D, H = 2, 16, 32, 4
    key = jax.random.PRNGKey(0)
    kx, kp = jax.random.split(key)
    x = jax.random.normal(kx, (B, N, D), dtype=jnp.float32)
    params = init_block_params(kp, D, H)

    # mask: batch 0 all valid, batch 1 masks out its last 4 key positions
    mask = jnp.ones((B, N), dtype=bool)
    mask = mask.at[1, N - 4:].set(False)

    y = vit_block_pallas(x, mask, params, num_heads=H)
    y = jax.block_until_ready(y)

    y_ref = vit_block_reference(x, mask, params, H)
    assert y.shape == (B, N, D)
    max_err = float(jnp.max(jnp.abs(y - y_ref)))
    # Tolerance covers the EUP approx-reciprocal in the softmax denominator.
    assert jnp.allclose(y, y_ref, atol=2e-3, rtol=2e-3), \
        f"mismatch vs reference, max abs err = {max_err}"

    print("KERNEL_OK")
</pallas_src>

<mosaic_0001>
module attributes {stable_mosaic.version = 11 : i64} {
  func.func @_attn_block_kernel(%arg0: i32, %arg1: memref<1x16x32xf32, #tpu.memory_space<vmem>>, %arg2: memref<1x1x16xf32, #tpu.memory_space<vmem>>, %arg3: memref<1x32xf32, #tpu.memory_space<vmem>>, %arg4: memref<1x32xf32, #tpu.memory_space<vmem>>, %arg5: memref<32x32xf32, #tpu.memory_space<vmem>>, %arg6: memref<32x32xf32, #tpu.memory_space<vmem>>, %arg7: memref<32x32xf32, #tpu.memory_space<vmem>>, %arg8: memref<32x32xf32, #tpu.memory_space<vmem>>, %arg9: memref<1x32xf32, #tpu.memory_space<vmem>>, %arg10: memref<1x16x32xf32, #tpu.memory_space<vmem>>, %arg11: memref<16x32xf32, #tpu.memory_space<vmem>>, %arg12: memref<16x32xf32, #tpu.memory_space<vmem>>, %arg13: memref<16x32xf32, #tpu.memory_space<vmem>>, %arg14: memref<16x32xf32, #tpu.memory_space<vmem>>) attributes {dimension_semantics = [#tpu.dimension_semantics<parallel>], iteration_bounds = array<i64: 2>, scalar_prefetch = 0 : i64, scratch_operands = 4 : i64, tpu.core_type = #tpu.core_type<tc>, window_params = [{transform_indices = @transform_0, window_bounds = array<i64: 1, 16, 32>}, {transform_indices = @transform_1, window_bounds = array<i64: 1, 1, 16>}, {pipeline_mode = #tpu.pipeline_mode<synchronous>, transform_indices = @transform_2, window_bounds = array<i64: 1, 32>}, {pipeline_mode = #tpu.pipeline_mode<synchronous>, transform_indices = @transform_3, window_bounds = array<i64: 1, 32>}, {pipeline_mode = #tpu.pipeline_mode<synchronous>, transform_indices = @transform_4, window_bounds = array<i64: 32, 32>}, {pipeline_mode = #tpu.pipeline_mode<synchronous>, transform_indices = @transform_5, window_bounds = array<i64: 32, 32>}, {pipeline_mode = #tpu.pipeline_mode<synchronous>, transform_indices = @transform_6, window_bounds = array<i64: 32, 32>}, {pipeline_mode = #tpu.pipeline_mode<synchronous>, transform_indices = @transform_7, window_bounds = array<i64: 32, 32>}, {pipeline_mode = #tpu.pipeline_mode<synchronous>, transform_indices = @transform_8, window_bounds = array<i64: 1, 32>}, {transform_indices = @transform_9, window_bounds = array<i64: 1, 16, 32>}]} {
    %c0 = arith.constant 0 : index
    %c0_0 = arith.constant 0 : index
    %c0_1 = arith.constant 0 : index
    %0 = vector.load %arg1[%c0, %c0_0, %c0_1] : memref<1x16x32xf32, #tpu.memory_space<vmem>>, vector<1x16x32xf32>
    %1 = vector.shape_cast %0 : vector<1x16x32xf32> to vector<16x32xf32>
    %c0_2 = arith.constant 0 : index
    %c0_3 = arith.constant 0 : index
    %2 = vector.load %arg3[%c0_2, %c0_3] : memref<1x32xf32, #tpu.memory_space<vmem>>, vector<1x32xf32>
    %c0_4 = arith.constant 0 : index
    %c0_5 = arith.constant 0 : index
    %3 = vector.load %arg4[%c0_4, %c0_5] : memref<1x32xf32, #tpu.memory_space<vmem>>, vector<1x32xf32>
    %cst = arith.constant dense<0.000000e+00> : vector<16xf32>
    %4 = vector.multi_reduction <add>, %1, %cst [1] : vector<16x32xf32> to vector<16xf32>
    %5 = vector.shape_cast %4 : vector<16xf32> to vector<16x1xf32>
    %cst_6 = arith.constant 3.200000e+01 : f32
    %6 = vector.broadcast %cst_6 : f32 to vector<16x1xf32>
    %7 = arith.divf %5, %6 : vector<16x1xf32>
    %8 = vector.broadcast %7 : vector<16x1xf32> to vector<16x32xf32>
    %9 = arith.subf %1, %8 : vector<16x32xf32>
    %10 = arith.mulf %9, %9 : vector<16x32xf32>
    %cst_7 = arith.constant dense<0.000000e+00> : vector<16xf32>
    %11 = vector.multi_reduction <add>, %10, %cst_7 [1] : vector<16x32xf32> to vector<16xf32>
    %12 = vector.shape_cast %11 : vector<16xf32> to vector<16x1xf32>
    %cst_8 = arith.constant 3.200000e+01 : f32
    %13 = vector.broadcast %cst_8 : f32 to vector<16x1xf32>
    %14 = arith.divf %12, %13 : vector<16x1xf32>
    %cst_9 = arith.constant 9.99999974E-6 : f32
    %15 = vector.broadcast %cst_9 : f32 to vector<16x1xf32>
    %16 = arith.addf %14, %15 : vector<16x1xf32>
    %17 = math.rsqrt %16 : vector<16x1xf32>
    %18 = vector.broadcast %17 : vector<16x1xf32> to vector<16x32xf32>
    %19 = arith.mulf %9, %18 : vector<16x32xf32>
    %20 = vector.broadcast %2 : vector<1x32xf32> to vector<16x32xf32>
    %21 = arith.mulf %19, %20 : vector<16x32xf32>
    %22 = vector.broadcast %3 : vector<1x32xf32> to vector<16x32xf32>
    %23 = arith.addf %21, %22 : vector<16x32xf32>
    %c0_10 = arith.constant 0 : index
    %c0_11 = arith.constant 0 : index
    %24 = vector.load %arg5[%c0_10, %c0_11] : memref<32x32xf32, #tpu.memory_space<vmem>>, vector<32x32xf32>
    %cst_12 = arith.constant dense<0.000000e+00> : vector<16x32xf32>
    %25 = tpu.matmul %23, %24, %cst_12 {dimension_numbers = #tpu.dot_dimension_numbers<[1], [0], [0], [1], [0, 0, 1, 1], [], []>} : vector<16x32xf32>, vector<32x32xf32>, vector<16x32xf32> -> vector<16x32xf32>
    %c0_13 = arith.constant 0 : index
    %c0_14 = arith.constant 0 : index
    %26 = vector.load %arg11[%c0_13, %c0_14] : memref<16x32xf32, #tpu.memory_space<vmem>>, vector<16x32xf32>
    tpu.vector_store %arg11[%c0_13, %c0_14], %25 {strides = array<i32>} : memref<16x32xf32, #tpu.memory_space<vmem>>, vector<16x32xf32>,
    %c0_15 = arith.constant 0 : index
    %c0_16 = arith.constant 0 : index
    %27 = vector.load %arg6[%c0_15, %c0_16] : memref<32x32xf32, #tpu.memory_space<vmem>>, vector<32x32xf32>
    %cst_17 = arith.constant dense<0.000000e+00> : vector<16x32xf32>
    %28 = tpu.matmul %23, %27, %cst_17 {dimension_numbers = #tpu.dot_dimension_numbers<[1], [0], [0], [1], [0, 0, 1, 1], [], []>} : vector<16x32xf32>, vector<32x32xf32>, vector<16x32xf32> -> vector<16x32xf32>
    %c0_18 = arith.constant 0 : index
    %c0_19 = arith.constant 0 : index
    %29 = vector.load %arg12[%c0_18, %c0_19] : memref<16x32xf32, #tpu.memory_space<vmem>>, vector<16x32xf32>
    tpu.vector_store %arg12[%c0_18, %c0_19], %28 {strides = array<i32>} : memref<16x32xf32, #tpu.memory_space<vmem>>, vector<16x32xf32>,
    %c0_20 = arith.constant 0 : index
    %c0_21 = arith.constant 0 : index
    %30 = vector.load %arg7[%c0_20, %c0_21] : memref<32x32xf32, #tpu.memory_space<vmem>>, vector<32x32xf32>
    %cst_22 = arith.constant dense<0.000000e+00> : vector<16x32xf32>
    %31 = tpu.matmul %23, %30, %cst_22 {dimension_numbers = #tpu.dot_dimension_numbers<[1], [0], [0], [1], [0, 0, 1, 1], [], []>} : vector<16x32xf32>, vector<32x32xf32>, vector<16x32xf32> -> vector<16x32xf32>
    %c0_23 = arith.constant 0 : index
    %c0_24 = arith.constant 0 : index
    %32 = vector.load %arg13[%c0_23, %c0_24] : memref<16x32xf32, #tpu.memory_space<vmem>>, vector<16x32xf32>
    tpu.vector_store %arg13[%c0_23, %c0_24], %31 {strides = array<i32>} : memref<16x32xf32, #tpu.memory_space<vmem>>, vector<16x32xf32>,
    %c0_25 = arith.constant 0 : index
    %c0_26 = arith.constant 0 : index
    %c0_27 = arith.constant 0 : index
    %33 = vector.load %arg2[%c0_25, %c0_26, %c0_27] : memref<1x1x16xf32, #tpu.memory_space<vmem>>, vector<1x1x16xf32>
    %34 = vector.shape_cast %33 : vector<1x1x16xf32> to vector<1x16xf32>
    %cst_28 = arith.constant 5.000000e-01 : f32
    %35 = vector.broadcast %cst_28 : f32 to vector<1x16xf32>
    %36 = arith.cmpf ogt, %34, %35 : vector<1x16xf32>
    %cst_29 = arith.constant 0.000000e+00 : f32
    %cst_30 = arith.constant -3.40282347E+38 : f32
    %37 = vector.broadcast %cst_29 : f32 to vector<1x16xf32>
    %38 = vector.broadcast %cst_30 : f32 to vector<1x16xf32>
    %39 = arith.select %36, %37, %38 : vector<1x16xi1>, vector<1x16xf32>
    %c0_31 = arith.constant 0 : index
    %c0_32 = arith.constant 0 : index
    %40 = vector.load %arg11[%c0_31, %c0_32] : memref<16x32xf32, #tpu.memory_space<vmem>>, vector<16x8xf32>
    %c0_33 = arith.constant 0 : index
    %c0_34 = arith.constant 0 : index
    %41 = vector.load %arg12[%c0_33, %c0_34] : memref<16x32xf32, #tpu.memory_space<vmem>>, vector<16x8xf32>
    %cst_35 = arith.constant dense<0.000000e+00> : vector<16xf32>
    %42 = vector.multi_reduction <add>, %40, %cst_35 [1] : vector<16x8xf32> to vector<16xf32>
    %43 = vector.shape_cast %42 : vector<16xf32> to vector<16x1xf32>
    %cst_36 = arith.constant 8.000000e+00 : f32
    %44 = vector.broadcast %cst_36 : f32 to vector<16x1xf32>
    %45 = arith.divf %43, %44 : vector<16x1xf32>
    %46 = vector.broadcast %45 : vector<16x1xf32> to vector<16x8xf32>
    %47 = arith.subf %40, %46 : vector<16x8xf32>
    %cst_37 = arith.constant dense<0.000000e+00> : vector<16xf32>
    %48 = vector.multi_reduction <add>, %41, %cst_37 [1] : vector<16x8xf32> to vector<16xf32>
    %49 = vector.shape_cast %48 : vector<16xf32> to vector<16x1xf32>
    %cst_38 = arith.constant 8.000000e+00 : f32
    %50 = vector.broadcast %cst_38 : f32 to vector<16x1xf32>
    %51 = arith.divf %49, %50 : vector<16x1xf32>
    %52 = vector.broadcast %51 : vector<16x1xf32> to vector<16x8xf32>
    %53 = arith.subf %41, %52 : vector<16x8xf32>
    %54 = arith.mulf %47, %47 : vector<16x8xf32>
    %cst_39 = arith.constant dense<0.000000e+00> : vector<16xf32>
    %55 = vector.multi_reduction <add>, %54, %cst_39 [1] : vector<16x8xf32> to vector<16xf32>
    %56 = vector.shape_cast %55 : vector<16xf32> to vector<16x1xf32>
    %cst_40 = arith.constant 9.99999996E-13 : f32
    %57 = vector.broadcast %cst_40 : f32 to vector<16x1xf32>
    %58 = arith.addf %56, %57 : vector<16x1xf32>
    %59 = math.rsqrt %58 : vector<16x1xf32>
    %60 = vector.broadcast %59 : vector<16x1xf32> to vector<16x8xf32>
    %61 = arith.mulf %47, %60 : vector<16x8xf32>
    %62 = arith.mulf %53, %53 : vector<16x8xf32>
    %cst_41 = arith.constant dense<0.000000e+00> : vector<16xf32>
    %63 = vector.multi_reduction <add>, %62, %cst_41 [1] : vector<16x8xf32> to vector<16xf32>
    %64 = vector.shape_cast %63 : vector<16xf32> to vector<16x1xf32>
    %cst_42 = arith.constant 9.99999996E-13 : f32
    %65 = vector.broadcast %cst_42 : f32 to vector<16x1xf32>
    %66 = arith.addf %64, %65 : vector<16x1xf32>
    %67 = math.rsqrt %66 : vector<16x1xf32>
    %68 = vector.broadcast %67 : vector<16x1xf32> to vector<16x8xf32>
    %69 = arith.mulf %53, %68 : vector<16x8xf32>
    %cst_43 = arith.constant dense<0.000000e+00> : vector<16x16xf32>
    %70 = tpu.matmul %61, %69, %cst_43 {dimension_numbers = #tpu.dot_dimension_numbers<[1], [1], [0], [0], [0, 0, 1, 0], [], []>} : vector<16x8xf32>, vector<16x8xf32>, vector<16x16xf32> -> vector<16x16xf32>
    %71 = vector.broadcast %39 : vector<1x16xf32> to vector<16x16xf32>
    %72 = arith.addf %70, %71 : vector<16x16xf32>
    %cst_44 = arith.constant dense<0xFF800000> : vector<16xf32>
    %73 = vector.multi_reduction <maximumf>, %72, %cst_44 [1] : vector<16x16xf32> to vector<16xf32>
    %74 = vector.shape_cast %73 : vector<16xf32> to vector<16x1xf32>
    %75 = vector.broadcast %74 : vector<16x1xf32> to vector<16x16xf32>
    %76 = arith.subf %72, %75 : vector<16x16xf32>
    %77 = math.exp %76 : vector<16x16xf32>
    %cst_45 = arith.constant dense<0.000000e+00> : vector<16xf32>
    %78 = vector.multi_reduction <add>, %77, %cst_45 [1] : vector<16x16xf32> to vector<16xf32>
    %79 = vector.shape_cast %78 : vector<16xf32> to vector<16x1xf32>
    %80 = tpu.reciprocal %79 {approx = true} : vector<16x1xf32> -> vector<16x1xf32>
    %81 = vector.broadcast %80 : vector<16x1xf32> to vector<16x16xf32>
    %82 = arith.mulf %77, %81 : vector<16x16xf32>
    %c0_46 = arith.constant 0 : index
    %c0_47 = arith.constant 0 : index
    %83 = vector.load %arg13[%c0_46, %c0_47] : memref<16x32xf32, #tpu.memory_space<vmem>>, vector<16x8xf32>
    %cst_48 = arith.constant dense<0.000000e+00> : vector<16x8xf32>
    %84 = tpu.matmul %82, %83, %cst_48 {dimension_numbers = #tpu.dot_dimension_numbers<[1], [0], [0], [1], [0, 0, 1, 1], [], []>} : vector<16x16xf32>, vector<16x8xf32>, vector<16x8xf32> -> vector<16x8xf32>
    %c0_49 = arith.constant 0 : index
    %c0_50 = arith.constant 0 : index
    %85 = vector.load %arg14[%c0_49, %c0_50] : memref<16x32xf32, #tpu.memory_space<vmem>>, vector<16x8xf32>
    tpu.vector_store %arg14[%c0_49, %c0_50], %84 {strides = array<i32>} : memref<16x32xf32, #tpu.memory_space<vmem>>, vector<16x8xf32>,
    %c0_51 = arith.constant 0 : index
    %c8 = arith.constant 8 : index
    %86 = vector.load %arg11[%c0_51, %c8] : memref<16x32xf32, #tpu.memory_space<vmem>>, vector<16x8xf32>
    %c0_52 = arith.constant 0 : index
    %c8_53 = arith.constant 8 : index
    %87 = vector.load %arg12[%c0_52, %c8_53] : memref<16x32xf32, #tpu.memory_space<vmem>>, vector<16x8xf32>
    %cst_54 = arith.constant dense<0.000000e+00> : vector<16xf32>
    %88 = vector.multi_reduction <add>, %86, %cst_54 [1] : vector<16x8xf32> to vector<16xf32>
    %89 = vector.shape_cast %88 : vector<16xf32> to vector<16x1xf32>
    %cst_55 = arith.constant 8.000000e+00 : f32
    %90 = vector.broadcast %cst_55 : f32 to vector<16x1xf32>
    %91 = arith.divf %89, %90 : vector<16x1xf32>
    %92 = vector.broadcast %91 : vector<16x1xf32> to vector<16x8xf32>
    %93 = arith.subf %86, %92 : vector<16x8xf32>
    %cst_56 = arith.constant dense<0.000000e+00> : vector<16xf32>
    %94 = vector.multi_reduction <add>, %87, %cst_56 [1] : vector<16x8xf32> to vector<16xf32>
    %95 = vector.shape_cast %94 : vector<16xf32> to vector<16x1xf32>
    %cst_57 = arith.constant 8.000000e+00 : f32
    %96 = vector.broadcast %cst_57 : f32 to vector<16x1xf32>
    %97 = arith.divf %95, %96 : vector<16x1xf32>
    %98 = vector.broadcast %97 : vector<16x1xf32> to vector<16x8xf32>
    %99 = arith.subf %87, %98 : vector<16x8xf32>
    %100 = arith.mulf %93, %93 : vector<16x8xf32>
    %cst_58 = arith.constant dense<0.000000e+00> : vector<16xf32>
    %101 = vector.multi_reduction <add>, %100, %cst_58 [1] : vector<16x8xf32> to vector<16xf32>
    %102 = vector.shape_cast %101 : vector<16xf32> to vector<16x1xf32>
    %cst_59 = arith.constant 9.99999996E-13 : f32
    %103 = vector.broadcast %cst_59 : f32 to vector<16x1xf32>
    %104 = arith.addf %102, %103 : vector<16x1xf32>
    %105 = math.rsqrt %104 : vector<16x1xf32>
    %106 = vector.broadcast %105 : vector<16x1xf32> to vector<16x8xf32>
    %107 = arith.mulf %93, %106 : vector<16x8xf32>
    %108 = arith.mulf %99, %99 : vector<16x8xf32>
    %cst_60 = arith.constant dense<0.000000e+00> : vector<16xf32>
    %109 = vector.multi_reduction <add>, %108, %cst_60 [1] : vector<16x8xf32> to vector<16xf32>
    %110 = vector.shape_cast %109 : vector<16xf32> to vector<16x1xf32>
    %cst_61 = arith.constant 9.99999996E-13 : f32
    %111 = vector.broadcast %cst_61 : f32 to vector<16x1xf32>
    %112 = arith.addf %110, %111 : vector<16x1xf32>
    %113 = math.rsqrt %112 : vector<16x1xf32>
    %114 = vector.broadcast %113 : vector<16x1xf32> to vector<16x8xf32>
    %115 = arith.mulf %99, %114 : vector<16x8xf32>
    %cst_62 = arith.constant dense<0.000000e+00> : vector<16x16xf32>
    %116 = tpu.matmul %107, %115, %cst_62 {dimension_numbers = #tpu.dot_dimension_numbers<[1], [1], [0], [0], [0, 0, 1, 0], [], []>} : vector<16x8xf32>, vector<16x8xf32>, vector<16x16xf32> -> vector<16x16xf32>
    %117 = vector.broadcast %39 : vector<1x16xf32> to vector<16x16xf32>
    %118 = arith.addf %116, %117 : vector<16x16xf32>
    %cst_63 = arith.constant dense<0xFF800000> : vector<16xf32>
    %119 = vector.multi_reduction <maximumf>, %118, %cst_63 [1] : vector<16x16xf32> to vector<16xf32>
    %120 = vector.shape_cast %119 : vector<16xf32> to vector<16x1xf32>
    %121 = vector.broadcast %120 : vector<16x1xf32> to vector<16x16xf32>
    %122 = arith.subf %118, %121 : vector<16x16xf32>
    %123 = math.exp %122 : vector<16x16xf32>
    %cst_64 = arith.constant dense<0.000000e+00> : vector<16xf32>
    %124 = vector.multi_reduction <add>, %123, %cst_64 [1] : vector<16x16xf32> to vector<16xf32>
    %125 = vector.shape_cast %124 : vector<16xf32> to vector<16x1xf32>
    %126 = tpu.reciprocal %125 {approx = true} : vector<16x1xf32> -> vector<16x1xf32>
    %127 = vector.broadcast %126 : vector<16x1xf32> to vector<16x16xf32>
    %128 = arith.mulf %123, %127 : vector<16x16xf32>
    %c0_65 = arith.constant 0 : index
    %c8_66 = arith.constant 8 : index
    %129 = vector.load %arg13[%c0_65, %c8_66] : memref<16x32xf32, #tpu.memory_space<vmem>>, vector<16x8xf32>
    %cst_67 = arith.constant dense<0.000000e+00> : vector<16x8xf32>
    %130 = tpu.matmul %128, %129, %cst_67 {dimension_numbers = #tpu.dot_dimension_numbers<[1], [0], [0], [1], [0, 0, 1, 1], [], []>} : vector<16x16xf32>, vector<16x8xf32>, vector<16x8xf32> -> vector<16x8xf32>
    %c0_68 = arith.constant 0 : index
    %c8_69 = arith.constant 8 : index
    %131 = vector.load %arg14[%c0_68, %c8_69] : memref<16x32xf32, #tpu.memory_space<vmem>>, vector<16x8xf32>
    tpu.vector_store %arg14[%c0_68, %c8_69], %130 {strides = array<i32>} : memref<16x32xf32, #tpu.memory_space<vmem>>, vector<16x8xf32>,
    %c0_70 = arith.constant 0 : index
    %c16 = arith.constant 16 : index
    %132 = vector.load %arg11[%c0_70, %c16] : memref<16x32xf32, #tpu.memory_space<vmem>>, vector<16x8xf32>
    %c0_71 = arith.constant 0 : index
    %c16_72 = arith.constant 16 : index
    %133 = vector.load %arg12[%c0_71, %c16_72] : memref<16x32xf32, #tpu.memory_space<vmem>>, vector<16x8xf32>
    %cst_73 = arith.constant dense<0.000000e+00> : vector<16xf32>
    %134 = vector.multi_reduction <add>, %132, %cst_73 [1] : vector<16x8xf32> to vector<16xf32>
    %135 = vector.shape_cast %134 : vector<16xf32> to vector<16x1xf32>
    %cst_74 = arith.constant 8.000000e+00 : f32
    %136 = vector.broadcast %cst_74 : f32 to vector<16x1xf32>
    %137 = arith.divf %135, %136 : vector<16x1xf32>
    %138 = vector.broadcast %137 : vector<16x1xf32> to vector<16x8xf32>
    %139 = arith.subf %132, %138 : vector<16x8xf32>
    %cst_75 = arith.constant dense<0.000000e+00> : vector<16xf32>
    %140 = vector.multi_reduction <add>, %133, %cst_75 [1] : vector<16x8xf32> to vector<16xf32>
    %141 = vector.shape_cast %140 : vector<16xf32> to vector<16x1xf32>
    %cst_76 = arith.constant 8.000000e+00 : f32
    %142 = vector.broadcast %cst_76 : f32 to vector<16x1xf32>
    %143 = arith.divf %141, %142 : vector<16x1xf32>
    %144 = vector.broadcast %143 : vector<16x1xf32> to vector<16x8xf32>
    %145 = arith.subf %133, %144 : vector<16x8xf32>
    %146 = arith.mulf %139, %139 : vector<16x8xf32>
    %cst_77 = arith.constant dense<0.000000e+00> : vector<16xf32>
    %147 = vector.multi_reduction <add>, %146, %cst_77 [1] : vector<16x8xf32> to vector<16xf32>
    %148 = vector.shape_cast %147 : vector<16xf32> to vector<16x1xf32>
    %cst_78 = arith.constant 9.99999996E-13 : f32
    %149 = vector.broadcast %cst_78 : f32 to vector<16x1xf32>
    %150 = arith.addf %148, %149 : vector<16x1xf32>
    %151 = math.rsqrt %150 : vector<16x1xf32>
    %152 = vector.broadcast %151 : vector<16x1xf32> to vector<16x8xf32>
    %153 = arith.mulf %139, %152 : vector<16x8xf32>
    %154 = arith.mulf %145, %145 : vector<16x8xf32>
    %cst_79 = arith.constant dense<0.000000e+00> : vector<16xf32>
    %155 = vector.multi_reduction <add>, %154, %cst_79 [1] : vector<16x8xf32> to vector<16xf32>
    %156 = vector.shape_cast %155 : vector<16xf32> to vector<16x1xf32>
    %cst_80 = arith.constant 9.99999996E-13 : f32
    %157 = vector.broadcast %cst_80 : f32 to vector<16x1xf32>
    %158 = arith.addf %156, %157 : vector<16x1xf32>
    %159 = math.rsqrt %158 : vector<16x1xf32>
    %160 = vector.broadcast %159 : vector<16x1xf32> to vector<16x8xf32>
    %161 = arith.mulf %145, %160 : vector<16x8xf32>
    %cst_81 = arith.constant dense<0.000000e+00> : vector<16x16xf32>
    %162 = tpu.matmul %153, %161, %cst_81 {dimension_numbers = #tpu.dot_dimension_numbers<[1], [1], [0], [0], [0, 0, 1, 0], [], []>} : vector<16x8xf32>, vector<16x8xf32>, vector<16x16xf32> -> vector<16x16xf32>
    %163 = vector.broadcast %39 : vector<1x16xf32> to vector<16x16xf32>
    %164 = arith.addf %162, %163 : vector<16x16xf32>
    %cst_82 = arith.constant dense<0xFF800000> : vector<16xf32>
    %165 = vector.multi_reduction <maximumf>, %164, %cst_82 [1] : vector<16x16xf32> to vector<16xf32>
    %166 = vector.shape_cast %165 : vector<16xf32> to vector<16x1xf32>
    %167 = vector.broadcast %166 : vector<16x1xf32> to vector<16x16xf32>
    %168 = arith.subf %164, %167 : vector<16x16xf32>
    %169 = math.exp %168 : vector<16x16xf32>
    %cst_83 = arith.constant dense<0.000000e+00> : vector<16xf32>
    %170 = vector.multi_reduction <add>, %169, %cst_83 [1] : vector<16x16xf32> to vector<16xf32>
    %171 = vector.shape_cast %170 : vector<16xf32> to vector<16x1xf32>
    %172 = tpu.reciprocal %171 {approx = true} : vector<16x1xf32> -> vector<16x1xf32>
    %173 = vector.broadcast %172 : vector<16x1xf32> to vector<16x16xf32>
    %174 = arith.mulf %169, %173 : vector<16x16xf32>
    %c0_84 = arith.constant 0 : index
    %c16_85 = arith.constant 16 : index
    %175 = vector.load %arg13[%c0_84, %c16_85] : memref<16x32xf32, #tpu.memory_space<vmem>>, vector<16x8xf32>
    %cst_86 = arith.constant dense<0.000000e+00> : vector<16x8xf32>
    %176 = tpu.matmul %174, %175, %cst_86 {dimension_numbers = #tpu.dot_dimension_numbers<[1], [0], [0], [1], [0, 0, 1, 1], [], []>} : vector<16x16xf32>, vector<16x8xf32>, vector<16x8xf32> -> vector<16x8xf32>
    %c0_87 = arith.constant 0 : index
    %c16_88 = arith.constant 16 : index
    %177 = vector.load %arg14[%c0_87, %c16_88] : memref<16x32xf32, #tpu.memory_space<vmem>>, vector<16x8xf32>
    tpu.vector_store %arg14[%c0_87, %c16_88], %176 {strides = array<i32>} : memref<16x32xf32, #tpu.memory_space<vmem>>, vector<16x8xf32>,
    %c0_89 = arith.constant 0 : index
    %c24 = arith.constant 24 : index
    %178 = vector.load %arg11[%c0_89, %c24] : memref<16x32xf32, #tpu.memory_space<vmem>>, vector<16x8xf32>
    %c0_90 = arith.constant 0 : index
    %c24_91 = arith.constant 24 : index
    %179 = vector.load %arg12[%c0_90, %c24_91] : memref<16x32xf32, #tpu.memory_space<vmem>>, vector<16x8xf32>
    %cst_92 = arith.constant dense<0.000000e+00> : vector<16xf32>
    %180 = vector.multi_reduction <add>, %178, %cst_92 [1] : vector<16x8xf32> to vector<16xf32>
    %181 = vector.shape_cast %180 : vector<16xf32> to vector<16x1xf32>
    %cst_93 = arith.constant 8.000000e+00 : f32
    %182 = vector.broadcast %cst_93 : f32 to vector<16x1xf32>
    %183 = arith.divf %181, %182 : vector<16x1xf32>
    %184 = vector.broadcast %183 : vector<16x1xf32> to vector<16x8xf32>
    %185 = arith.subf %178, %184 : vector<16x8xf32>
    %cst_94 = arith.constant dense<0.000000e+00> : vector<16xf32>
    %186 = vector.multi_reduction <add>, %179, %cst_94 [1] : vector<16x8xf32> to vector<16xf32>
    %187 = vector.shape_cast %186 : vector<16xf32> to vector<16x1xf32>
    %cst_95 = arith.constant 8.000000e+00 : f32
    %188 = vector.broadcast %cst_95 : f32 to vector<16x1xf32>
    %189 = arith.divf %187, %188 : vector<16x1xf32>
    %190 = vector.broadcast %189 : vector<16x1xf32> to vector<16x8xf32>
    %191 = arith.subf %179, %190 : vector<16x8xf32>
    %192 = arith.mulf %185, %185 : vector<16x8xf32>
    %cst_96 = arith.constant dense<0.000000e+00> : vector<16xf32>
    %193 = vector.multi_reduction <add>, %192, %cst_96 [1] : vector<16x8xf32> to vector<16xf32>
    %194 = vector.shape_cast %193 : vector<16xf32> to vector<16x1xf32>
    %cst_97 = arith.constant 9.99999996E-13 : f32
    %195 = vector.broadcast %cst_97 : f32 to vector<16x1xf32>
    %196 = arith.addf %194, %195 : vector<16x1xf32>
    %197 = math.rsqrt %196 : vector<16x1xf32>
    %198 = vector.broadcast %197 : vector<16x1xf32> to vector<16x8xf32>
    %199 = arith.mulf %185, %198 : vector<16x8xf32>
    %200 = arith.mulf %191, %191 : vector<16x8xf32>
    %cst_98 = arith.constant dense<0.000000e+00> : vector<16xf32>
    %201 = vector.multi_reduction <add>, %200, %cst_98 [1] : vector<16x8xf32> to vector<16xf32>
    %202 = vector.shape_cast %201 : vector<16xf32> to vector<16x1xf32>
    %cst_99 = arith.constant 9.99999996E-13 : f32
    %203 = vector.broadcast %cst_99 : f32 to vector<16x1xf32>
    %204 = arith.addf %202, %203 : vector<16x1xf32>
    %205 = math.rsqrt %204 : vector<16x1xf32>
    %206 = vector.broadcast %205 : vector<16x1xf32> to vector<16x8xf32>
    %207 = arith.mulf %191, %206 : vector<16x8xf32>
    %cst_100 = arith.constant dense<0.000000e+00> : vector<16x16xf32>
    %208 = tpu.matmul %199, %207, %cst_100 {dimension_numbers = #tpu.dot_dimension_numbers<[1], [1], [0], [0], [0, 0, 1, 0], [], []>} : vector<16x8xf32>, vector<16x8xf32>, vector<16x16xf32> -> vector<16x16xf32>
    %209 = vector.broadcast %39 : vector<1x16xf32> to vector<16x16xf32>
    %210 = arith.addf %208, %209 : vector<16x16xf32>
    %cst_101 = arith.constant dense<0xFF800000> : vector<16xf32>
    %211 = vector.multi_reduction <maximumf>, %210, %cst_101 [1] : vector<16x16xf32> to vector<16xf32>
    %212 = vector.shape_cast %211 : vector<16xf32> to vector<16x1xf32>
    %213 = vector.broadcast %212 : vector<16x1xf32> to vector<16x16xf32>
    %214 = arith.subf %210, %213 : vector<16x16xf32>
    %215 = math.exp %214 : vector<16x16xf32>
    %cst_102 = arith.constant dense<0.000000e+00> : vector<16xf32>
    %216 = vector.multi_reduction <add>, %215, %cst_102 [1] : vector<16x16xf32> to vector<16xf32>
    %217 = vector.shape_cast %216 : vector<16xf32> to vector<16x1xf32>
    %218 = tpu.reciprocal %217 {approx = true} : vector<16x1xf32> -> vector<16x1xf32>
    %219 = vector.broadcast %218 : vector<16x1xf32> to vector<16x16xf32>
    %220 = arith.mulf %215, %219 : vector<16x16xf32>
    %c0_103 = arith.constant 0 : index
    %c24_104 = arith.constant 24 : index
    %221 = vector.load %arg13[%c0_103, %c24_104] : memref<16x32xf32, #tpu.memory_space<vmem>>, vector<16x8xf32>
    %cst_105 = arith.constant dense<0.000000e+00> : vector<16x8xf32>
    %222 = tpu.matmul %220, %221, %cst_105 {dimension_numbers = #tpu.dot_dimension_numbers<[1], [0], [0], [1], [0, 0, 1, 1], [], []>} : vector<16x16xf32>, vector<16x8xf32>, vector<16x8xf32> -> vector<16x8xf32>
    %c0_106 = arith.constant 0 : index
    %c24_107 = arith.constant 24 : index
    %223 = vector.load %arg14[%c0_106, %c24_107] : memref<16x32xf32, #tpu.memory_space<vmem>>, vector<16x8xf32>
    tpu.vector_store %arg14[%c0_106, %c24_107], %222 {strides = array<i32>} : memref<16x32xf32, #tpu.memory_space<vmem>>, vector<16x8xf32>,
    %c0_108 = arith.constant 0 : index
    %c0_109 = arith.constant 0 : index
    %224 = vector.load %arg14[%c0_108, %c0_109] : memref<16x32xf32, #tpu.memory_space<vmem>>, vector<16x32xf32>
    %c0_110 = arith.constant 0 : index
    %c0_111 = arith.constant 0 : index
    %225 = vector.load %arg8[%c0_110, %c0_111] : memref<32x32xf32, #tpu.memory_space<vmem>>, vector<32x32xf32>
    %cst_112 = arith.constant dense<0.000000e+00> : vector<16x32xf32>
    %226 = tpu.matmul %224, %225, %cst_112 {dimension_numbers = #tpu.dot_dimension_numbers<[1], [0], [0], [1], [0, 0, 1, 1], [], []>} : vector<16x32xf32>, vector<32x32xf32>, vector<16x32xf32> -> vector<16x32xf32>
    %c0_113 = arith.constant 0 : index
    %c0_114 = arith.constant 0 : index
    %227 = vector.load %arg9[%c0_113, %c0_114] : memref<1x32xf32, #tpu.memory_space<vmem>>, vector<1x32xf32>
    %228 = vector.broadcast %227 : vector<1x32xf32> to vector<16x32xf32>
    %229 = arith.addf %226, %228 : vector<16x32xf32>
    %c0_115 = arith.constant 0 : index
    %c0_116 = arith.constant 0 : index
    %c0_117 = arith.constant 0 : index
    %230 = vector.load %arg1[%c0_115, %c0_116, %c0_117] : memref<1x16x32xf32, #tpu.memory_space<vmem>>, vector<1x16x32xf32>
    %231 = vector.shape_cast %230 : vector<1x16x32xf32> to vector<16x32xf32>
    %232 = arith.addf %231, %229 : vector<16x32xf32>
    %c0_118 = arith.constant 0 : index
    %c0_119 = arith.constant 0 : index
    %c0_120 = arith.constant 0 : index
    %233 = vector.load %arg10[%c0_118, %c0_119, %c0_120] : memref<1x16x32xf32, #tpu.memory_space<vmem>>, vector<1x16x32xf32>
    %234 = vector.shape_cast %233 : vector<1x16x32xf32> to vector<16x32xf32>
    %235 = vector.shape_cast %232 : vector<16x32xf32> to vector<1x16x32xf32>
    tpu.vector_store %arg10[%c0_118, %c0_119, %c0_120], %235 {strides = array<i32>} : memref<1x16x32xf32, #tpu.memory_space<vmem>>, vector<1x16x32xf32>,
    return
  }
  func.func @transform_0(%arg0: i32) -> (i32, i32, i32) {
    %c0_i32 = arith.constant 0 : i32
    %c0_i32_0 = arith.constant 0 : i32
    %c0_i32_1 = arith.constant 0 : i32
    return %arg0, %c0_i32, %c0_i32_0 : i32, i32, i32
  }
  func.func @transform_1(%arg0: i32) -> (i32, i32, i32) {
    %c0_i32 = arith.constant 0 : i32
    %c0_i32_0 = arith.constant 0 : i32
    %c0_i32_1 = arith.constant 0 : i32
    return %arg0, %c0_i32, %c0_i32_0 : i32, i32, i32
  }
  func.func @transform_2(%arg0: i32) -> (i32, i32) {
    %c0_i32 = arith.constant 0 : i32
    %c0_i32_0 = arith.constant 0 : i32
    %c0_i32_1 = arith.constant 0 : i32
    return %c0_i32, %c0_i32_0 : i32, i32
  }
  func.func @transform_3(%arg0: i32) -> (i32, i32) {
    %c0_i32 = arith.constant 0 : i32
    %c0_i32_0 = arith.constant 0 : i32
    %c0_i32_1 = arith.constant 0 : i32
    return %c0_i32, %c0_i32_0 : i32, i32
  }
  func.func @transform_4(%arg0: i32) -> (i32, i32) {
    %c0_i32 = arith.constant 0 : i32
    %c0_i32_0 = arith.constant 0 : i32
    %c0_i32_1 = arith.constant 0 : i32
    return %c0_i32, %c0_i32_0 : i32, i32
  }
  func.func @transform_5(%arg0: i32) -> (i32, i32) {
    %c0_i32 = arith.constant 0 : i32
    %c0_i32_0 = arith.constant 0 : i32
    %c0_i32_1 = arith.constant 0 : i32
    return %c0_i32, %c0_i32_0 : i32, i32
  }
  func.func @transform_6(%arg0: i32) -> (i32, i32) {
    %c0_i32 = arith.constant 0 : i32
    %c0_i32_0 = arith.constant 0 : i32
    %c0_i32_1 = arith.constant 0 : i32
    return %c0_i32, %c0_i32_0 : i32, i32
  }
  func.func @transform_7(%arg0: i32) -> (i32, i32) {
    %c0_i32 = arith.constant 0 : i32
    %c0_i32_0 = arith.constant 0 : i32
    %c0_i32_1 = arith.constant 0 : i32
    return %c0_i32, %c0_i32_0 : i32, i32
  }
  func.func @transform_8(%arg0: i32) -> (i32, i32) {
    %c0_i32 = arith.constant 0 : i32
    %c0_i32_0 = arith.constant 0 : i32
    %c0_i32_1 = arith.constant 0 : i32
    return %c0_i32, %c0_i32_0 : i32, i32
  }
  func.func @transform_9(%arg0: i32) -> (i32, i32, i32) {
    %c0_i32 = arith.constant 0 : i32
    %c0_i32_0 = arith.constant 0 : i32
    %c0_i32_1 = arith.constant 0 : i32
    return %arg0, %c0_i32, %c0_i32_0 : i32, i32, i32
  }
}

module attributes {stable_mosaic.version = 11 : i64} {
  func.func @_attn_block_kernel(%arg0: i32, %arg1: memref<1x16x32xf32, #tpu.memory_space<vmem>>, %arg2: memref<1x1x16xf32, #tpu.memory_space<vmem>>, %arg3: memref<1x32xf32, #tpu.memory_space<vmem>>, %arg4: memref<1x32xf32, #tpu.memory_space<vmem>>, %arg5: memref<32x32xf32, #tpu.memory_space<vmem>>, %arg6: memref<32x32xf32, #tpu.memory_space<vmem>>, %arg7: memref<32x32xf32, #tpu.memory_space<vmem>>, %arg8: memref<32x32xf32, #tpu.memory_space<vmem>>, %arg9: memref<1x32xf32, #tpu.memory_space<vmem>>, %arg10: memref<1x16x32xf32, #tpu.memory_space<vmem>>, %arg11: memref<16x32xf32, #tpu.memory_space<vmem>>, %arg12: memref<16x32xf32, #tpu.memory_space<vmem>>, %arg13: memref<16x32xf32, #tpu.memory_space<vmem>>, %arg14: memref<16x32xf32, #tpu.memory_space<vmem>>) attributes {dimension_semantics = [#tpu.dimension_semantics<parallel>], iteration_bounds = array<i64: 2>, scalar_prefetch = 0 : i64, scratch_operands = 4 : i64, tpu.core_type = #tpu.core_type<tc>, window_params = [{transform_indices = @transform_0, window_bounds = array<i64: 1, 16, 32>}, {transform_indices = @transform_1, window_bounds = array<i64: 1, 1, 16>}, {pipeline_mode = #tpu.pipeline_mode<synchronous>, transform_indices = @transform_2, window_bounds = array<i64: 1, 32>}, {pipeline_mode = #tpu.pipeline_mode<synchronous>, transform_indices = @transform_3, window_bounds = array<i64: 1, 32>}, {pipeline_mode = #tpu.pipeline_mode<synchronous>, transform_indices = @transform_4, window_bounds = array<i64: 32, 32>}, {pipeline_mode = #tpu.pipeline_mode<synchronous>, transform_indices = @transform_5, window_bounds = array<i64: 32, 32>}, {pipeline_mode = #tpu.pipeline_mode<synchronous>, transform_indices = @transform_6, window_bounds = array<i64: 32, 32>}, {pipeline_mode = #tpu.pipeline_mode<synchronous>, transform_indices = @transform_7, window_bounds = array<i64: 32, 32>}, {pipeline_mode = #tpu.pipeline_mode<synchronous>, transform_indices = @transform_8, window_bounds = array<i64: 1, 32>}, {transform_indices = @transform_9, window_bounds = array<i64: 1, 16, 32>}]} {
    %c0 = arith.constant 0 : index
    %c0_0 = arith.constant 0 : index
    %c0_1 = arith.constant 0 : index
    %0 = vector.load %arg1[%c0, %c0_0, %c0_1] : memref<1x16x32xf32, #tpu.memory_space<vmem>>, vector<1x16x32xf32>
    %1 = vector.shape_cast %0 : vector<1x16x32xf32> to vector<16x32xf32>
    %c0_2 = arith.constant 0 : index
    %c0_3 = arith.constant 0 : index
    %2 = vector.load %arg3[%c0_2, %c0_3] : memref<1x32xf32, #tpu.memory_space<vmem>>, vector<1x32xf32>
    %c0_4 = arith.constant 0 : index
    %c0_5 = arith.constant 0 : index
    %3 = vector.load %arg4[%c0_4, %c0_5] : memref<1x32xf32, #tpu.memory_space<vmem>>, vector<1x32xf32>
    %cst = arith.constant dense<0.000000e+00> : vector<16xf32>
    %4 = vector.multi_reduction <add>, %1, %cst [1] : vector<16x32xf32> to vector<16xf32>
    %5 = vector.shape_cast %4 : vector<16xf32> to vector<16x1xf32>
    %cst_6 = arith.constant 3.200000e+01 : f32
    %6 = vector.broadcast %cst_6 : f32 to vector<16x1xf32>
    %7 = arith.divf %5, %6 : vector<16x1xf32>
    %8 = vector.broadcast %7 : vector<16x1xf32> to vector<16x32xf32>
    %9 = arith.subf %1, %8 : vector<16x32xf32>
    %10 = arith.mulf %9, %9 : vector<16x32xf32>
    %cst_7 = arith.constant dense<0.000000e+00> : vector<16xf32>
    %11 = vector.multi_reduction <add>, %10, %cst_7 [1] : vector<16x32xf32> to vector<16xf32>
    %12 = vector.shape_cast %11 : vector<16xf32> to vector<16x1xf32>
    %cst_8 = arith.constant 3.200000e+01 : f32
    %13 = vector.broadcast %cst_8 : f32 to vector<16x1xf32>
    %14 = arith.divf %12, %13 : vector<16x1xf32>
    %cst_9 = arith.constant 9.99999974E-6 : f32
    %15 = vector.broadcast %cst_9 : f32 to vector<16x1xf32>
    %16 = arith.addf %14, %15 : vector<16x1xf32>
    %17 = math.rsqrt %16 : vector<16x1xf32>
    %18 = vector.broadcast %17 : vector<16x1xf32> to vector<16x32xf32>
    %19 = arith.mulf %9, %18 : vector<16x32xf32>
    %20 = vector.broadcast %2 : vector<1x32xf32> to vector<16x32xf32>
    %21 = arith.mulf %19, %20 : vector<16x32xf32>
    %22 = vector.broadcast %3 : vector<1x32xf32> to vector<16x32xf32>
    %23 = arith.addf %21, %22 : vector<16x32xf32>
    %c0_10 = arith.constant 0 : index
    %c0_11 = arith.constant 0 : index
    %24 = vector.load %arg5[%c0_10, %c0_11] : memref<32x32xf32, #tpu.memory_space<vmem>>, vector<32x32xf32>
    %cst_12 = arith.constant dense<0.000000e+00> : vector<16x32xf32>
    %25 = tpu.matmul %23, %24, %cst_12 {dimension_numbers = #tpu.dot_dimension_numbers<[1], [0], [0], [1], [0, 0, 1, 1], [], []>} : vector<16x32xf32>, vector<32x32xf32>, vector<16x32xf32> -> vector<16x32xf32>
    %c0_13 = arith.constant 0 : index
    %c0_14 = arith.constant 0 : index
    %26 = vector.load %arg11[%c0_13, %c0_14] : memref<16x32xf32, #tpu.memory_space<vmem>>, vector<16x32xf32>
    tpu.vector_store %arg11[%c0_13, %c0_14], %25 {strides = array<i32>} : memref<16x32xf32, #tpu.memory_space<vmem>>, vector<16x32xf32>,
    %c0_15 = arith.constant 0 : index
    %c0_16 = arith.constant 0 : index
    %27 = vector.load %arg6[%c0_15, %c0_16] : memref<32x32xf32, #tpu.memory_space<vmem>>, vector<32x32xf32>
    %cst_17 = arith.constant dense<0.000000e+00> : vector<16x32xf32>
    %28 = tpu.matmul %23, %27, %cst_17 {dimension_numbers = #tpu.dot_dimension_numbers<[1], [0], [0], [1], [0, 0, 1, 1], [], []>} : vector<16x32xf32>, vector<32x32xf32>, vector<16x32xf32> -> vector<16x32xf32>
    %c0_18 = arith.constant 0 : index
    %c0_19 = arith.constant 0 : index
    %29 = vector.load %arg12[%c0_18, %c0_19] : memref<16x32xf32, #tpu.memory_space<vmem>>, vector<16x32xf32>
    tpu.vector_store %arg12[%c0_18, %c0_19], %28 {strides = array<i32>} : memref<16x32xf32, #tpu.memory_space<vmem>>, vector<16x32xf32>,
    %c0_20 = arith.constant 0 : index
    %c0_21 = arith.constant 0 : index
    %30 = vector.load %arg7[%c0_20, %c0_21] : memref<32x32xf32, #tpu.memory_space<vmem>>, vector<32x32xf32>
    %cst_22 = arith.constant dense<0.000000e+00> : vector<16x32xf32>
    %31 = tpu.matmul %23, %30, %cst_22 {dimension_numbers = #tpu.dot_dimension_numbers<[1], [0], [0], [1], [0, 0, 1, 1], [], []>} : vector<16x32xf32>, vector<32x32xf32>, vector<16x32xf32> -> vector<16x32xf32>
    %c0_23 = arith.constant 0 : index
    %c0_24 = arith.constant 0 : index
    %32 = vector.load %arg13[%c0_23, %c0_24] : memref<16x32xf32, #tpu.memory_space<vmem>>, vector<16x32xf32>
    tpu.vector_store %arg13[%c0_23, %c0_24], %31 {strides = array<i32>} : memref<16x32xf32, #tpu.memory_space<vmem>>, vector<16x32xf32>,
    %c0_25 = arith.constant 0 : index
    %c0_26 = arith.constant 0 : index
    %c0_27 = arith.constant 0 : index
    %33 = vector.load %arg2[%c0_25, %c0_26, %c0_27] : memref<1x1x16xf32, #tpu.memory_space<vmem>>, vector<1x1x16xf32>
    %34 = vector.shape_cast %33 : vector<1x1x16xf32> to vector<1x16xf32>
    %cst_28 = arith.constant 5.000000e-01 : f32
    %35 = vector.broadcast %cst_28 : f32 to vector<1x16xf32>
    %36 = arith.cmpf ogt, %34, %35 : vector<1x16xf32>
    %cst_29 = arith.constant 0.000000e+00 : f32
    %cst_30 = arith.constant -3.40282347E+38 : f32
    %37 = vector.broadcast %cst_29 : f32 to vector<1x16xf32>
    %38 = vector.broadcast %cst_30 : f32 to vector<1x16xf32>
    %39 = arith.select %36, %37, %38 : vector<1x16xi1>, vector<1x16xf32>
    %c0_31 = arith.constant 0 : index
    %c0_32 = arith.constant 0 : index
    %40 = vector.load %arg11[%c0_31, %c0_32] : memref<16x32xf32, #tpu.memory_space<vmem>>, vector<16x8xf32>
    %c0_33 = arith.constant 0 : index
    %c0_34 = arith.constant 0 : index
    %41 = vector.load %arg12[%c0_33, %c0_34] : memref<16x32xf32, #tpu.memory_space<vmem>>, vector<16x8xf32>
    %cst_35 = arith.constant dense<0.000000e+00> : vector<16xf32>
    %42 = vector.multi_reduction <add>, %40, %cst_35 [1] : vector<16x8xf32> to vector<16xf32>
    %43 = vector.shape_cast %42 : vector<16xf32> to vector<16x1xf32>
    %cst_36 = arith.constant 8.000000e+00 : f32
    %44 = vector.broadcast %cst_36 : f32 to vector<16x1xf32>
    %45 = arith.divf %43, %44 : vector<16x1xf32>
    %46 = vector.broadcast %45 : vector<16x1xf32> to vector<16x8xf32>
    %47 = arith.subf %40, %46 : vector<16x8xf32>
    %cst_37 = arith.constant dense<0.000000e+00> : vector<16xf32>
    %48 = vector.multi_reduction <add>, %41, %cst_37 [1] : vector<16x8xf32> to vector<16xf32>
    %49 = vector.shape_cast %48 : vector<16xf32> to vector<16x1xf32>
    %cst_38 = arith.constant 8.000000e+00 : f32
    %50 = vector.broadcast %cst_38 : f32 to vector<16x1xf32>
    %51 = arith.divf %49, %50 : vector<16x1xf32>
    %52 = vector.broadcast %51 : vector<16x1xf32> to vector<16x8xf32>
    %53 = arith.subf %41, %52 : vector<16x8xf32>
    %54 = arith.mulf %47, %47 : vector<16x8xf32>
    %cst_39 = arith.constant dense<0.000000e+00> : vector<16xf32>
    %55 = vector.multi_reduction <add>, %54, %cst_39 [1] : vector<16x8xf32> to vector<16xf32>
    %56 = vector.shape_cast %55 : vector<16xf32> to vector<16x1xf32>
    %cst_40 = arith.constant 9.99999996E-13 : f32
    %57 = vector.broadcast %cst_40 : f32 to vector<16x1xf32>
    %58 = arith.addf %56, %57 : vector<16x1xf32>
    %59 = math.rsqrt %58 : vector<16x1xf32>
    %60 = vector.broadcast %59 : vector<16x1xf32> to vector<16x8xf32>
    %61 = arith.mulf %47, %60 : vector<16x8xf32>
    %62 = arith.mulf %53, %53 : vector<16x8xf32>
    %cst_41 = arith.constant dense<0.000000e+00> : vector<16xf32>
    %63 = vector.multi_reduction <add>, %62, %cst_41 [1] : vector<16x8xf32> to vector<16xf32>
    %64 = vector.shape_cast %63 : vector<16xf32> to vector<16x1xf32>
    %cst_42 = arith.constant 9.99999996E-13 : f32
    %65 = vector.broadcast %cst_42 : f32 to vector<16x1xf32>
    %66 = arith.addf %64, %65 : vector<16x1xf32>
    %67 = math.rsqrt %66 : vector<16x1xf32>
    %68 = vector.broadcast %67 : vector<16x1xf32> to vector<16x8xf32>
    %69 = arith.mulf %53, %68 : vector<16x8xf32>
    %cst_43 = arith.constant dense<0.000000e+00> : vector<16x16xf32>
    %70 = tpu.matmul %61, %69, %cst_43 {dimension_numbers = #tpu.dot_dimension_numbers<[1], [1], [0], [0], [0, 0, 1, 0], [], []>} : vector<16x8xf32>, vector<16x8xf32>, vector<16x16xf32> -> vector<16x16xf32>
    %71 = vector.broadcast %39 : vector<1x16xf32> to vector<16x16xf32>
    %72 = arith.addf %70, %71 : vector<16x16xf32>
    %cst_44 = arith.constant dense<0xFF800000> : vector<16xf32>
    %73 = vector.multi_reduction <maximumf>, %72, %cst_44 [1] : vector<16x16xf32> to vector<16xf32>
    %74 = vector.shape_cast %73 : vector<16xf32> to vector<16x1xf32>
    %75 = vector.broadcast %74 : vector<16x1xf32> to vector<16x16xf32>
    %76 = arith.subf %72, %75 : vector<16x16xf32>
    %77 = math.exp %76 : vector<16x16xf32>
    %cst_45 = arith.constant dense<0.000000e+00> : vector<16xf32>
    %78 = vector.multi_reduction <add>, %77, %cst_45 [1] : vector<16x16xf32> to vector<16xf32>
    %79 = vector.shape_cast %78 : vector<16xf32> to vector<16x1xf32>
    %80 = tpu.reciprocal %79 {approx = true} : vector<16x1xf32> -> vector<16x1xf32>
    %81 = vector.broadcast %80 : vector<16x1xf32> to vector<16x16xf32>
    %82 = arith.mulf %77, %81 : vector<16x16xf32>
    %c0_46 = arith.constant 0 : index
    %c0_47 = arith.constant 0 : index
    %83 = vector.load %arg13[%c0_46, %c0_47] : memref<16x32xf32, #tpu.memory_space<vmem>>, vector<16x8xf32>
    %cst_48 = arith.constant dense<0.000000e+00> : vector<16x8xf32>
    %84 = tpu.matmul %82, %83, %cst_48 {dimension_numbers = #tpu.dot_dimension_numbers<[1], [0], [0], [1], [0, 0, 1, 1], [], []>} : vector<16x16xf32>, vector<16x8xf32>, vector<16x8xf32> -> vector<16x8xf32>
    %c0_49 = arith.constant 0 : index
    %c0_50 = arith.constant 0 : index
    %85 = vector.load %arg14[%c0_49, %c0_50] : memref<16x32xf32, #tpu.memory_space<vmem>>, vector<16x8xf32>
    tpu.vector_store %arg14[%c0_49, %c0_50], %84 {strides = array<i32>} : memref<16x32xf32, #tpu.memory_space<vmem>>, vector<16x8xf32>,
    %c0_51 = arith.constant 0 : index
    %c8 = arith.constant 8 : index
    %86 = vector.load %arg11[%c0_51, %c8] : memref<16x32xf32, #tpu.memory_space<vmem>>, vector<16x8xf32>
    %c0_52 = arith.constant 0 : index
    %c8_53 = arith.constant 8 : index
    %87 = vector.load %arg12[%c0_52, %c8_53] : memref<16x32xf32, #tpu.memory_space<vmem>>, vector<16x8xf32>
    %cst_54 = arith.constant dense<0.000000e+00> : vector<16xf32>
    %88 = vector.multi_reduction <add>, %86, %cst_54 [1] : vector<16x8xf32> to vector<16xf32>
    %89 = vector.shape_cast %88 : vector<16xf32> to vector<16x1xf32>
    %cst_55 = arith.constant 8.000000e+00 : f32
    %90 = vector.broadcast %cst_55 : f32 to vector<16x1xf32>
    %91 = arith.divf %89, %90 : vector<16x1xf32>
    %92 = vector.broadcast %91 : vector<16x1xf32> to vector<16x8xf32>
    %93 = arith.subf %86, %92 : vector<16x8xf32>
    %cst_56 = arith.constant dense<0.000000e+00> : vector<16xf32>
    %94 = vector.multi_reduction <add>, %87, %cst_56 [1] : vector<16x8xf32> to vector<16xf32>
    %95 = vector.shape_cast %94 : vector<16xf32> to vector<16x1xf32>
    %cst_57 = arith.constant 8.000000e+00 : f32
    %96 = vector.broadcast %cst_57 : f32 to vector<16x1xf32>
    %97 = arith.divf %95, %96 : vector<16x1xf32>
    %98 = vector.broadcast %97 : vector<16x1xf32> to vector<16x8xf32>
    %99 = arith.subf %87, %98 : vector<16x8xf32>
    %100 = arith.mulf %93, %93 : vector<16x8xf32>
    %cst_58 = arith.constant dense<0.000000e+00> : vector<16xf32>
    %101 = vector.multi_reduction <add>, %100, %cst_58 [1] : vector<16x8xf32> to vector<16xf32>
    %102 = vector.shape_cast %101 : vector<16xf32> to vector<16x1xf32>
    %cst_59 = arith.constant 9.99999996E-13 : f32
    %103 = vector.broadcast %cst_59 : f32 to vector<16x1xf32>
    %104 = arith.addf %102, %103 : vector<16x1xf32>
    %105 = math.rsqrt %104 : vector<16x1xf32>
    %106 = vector.broadcast %105 : vector<16x1xf32> to vector<16x8xf32>
    %107 = arith.mulf %93, %106 : vector<16x8xf32>
    %108 = arith.mulf %99, %99 : vector<16x8xf32>
    %cst_60 = arith.constant dense<0.000000e+00> : vector<16xf32>
    %109 = vector.multi_reduction <add>, %108, %cst_60 [1] : vector<16x8xf32> to vector<16xf32>
    %110 = vector.shape_cast %109 : vector<16xf32> to vector<16x1xf32>
    %cst_61 = arith.constant 9.99999996E-13 : f32
    %111 = vector.broadcast %cst_61 : f32 to vector<16x1xf32>
    %112 = arith.addf %110, %111 : vector<16x1xf32>
    %113 = math.rsqrt %112 : vector<16x1xf32>
    %114 = vector.broadcast %113 : vector<16x1xf32> to vector<16x8xf32>
    %115 = arith.mulf %99, %114 : vector<16x8xf32>
    %cst_62 = arith.constant dense<0.000000e+00> : vector<16x16xf32>
    %116 = tpu.matmul %107, %115, %cst_62 {dimension_numbers = #tpu.dot_dimension_numbers<[1], [1], [0], [0], [0, 0, 1, 0], [], []>} : vector<16x8xf32>, vector<16x8xf32>, vector<16x16xf32> -> vector<16x16xf32>
    %117 = vector.broadcast %39 : vector<1x16xf32> to vector<16x16xf32>
    %118 = arith.addf %116, %117 : vector<16x16xf32>
    %cst_63 = arith.constant dense<0xFF800000> : vector<16xf32>
    %119 = vector.multi_reduction <maximumf>, %118, %cst_63 [1] : vector<16x16xf32> to vector<16xf32>
    %120 = vector.shape_cast %119 : vector<16xf32> to vector<16x1xf32>
    %121 = vector.broadcast %120 : vector<16x1xf32> to vector<16x16xf32>
    %122 = arith.subf %118, %121 : vector<16x16xf32>
    %123 = math.exp %122 : vector<16x16xf32>
    %cst_64 = arith.constant dense<0.000000e+00> : vector<16xf32>
    %124 = vector.multi_reduction <add>, %123, %cst_64 [1] : vector<16x16xf32> to vector<16xf32>
    %125 = vector.shape_cast %124 : vector<16xf32> to vector<16x1xf32>
    %126 = tpu.reciprocal %125 {approx = true} : vector<16x1xf32> -> vector<16x1xf32>
    %127 = vector.broadcast %126 : vector<16x1xf32> to vector<16x16xf32>
    %128 = arith.mulf %123, %127 : vector<16x16xf32>
    %c0_65 = arith.constant 0 : index
    %c8_66 = arith.constant 8 : index
    %129 = vector.load %arg13[%c0_65, %c8_66] : memref<16x32xf32, #tpu.memory_space<vmem>>, vector<16x8xf32>
    %cst_67 = arith.constant dense<0.000000e+00> : vector<16x8xf32>
    %130 = tpu.matmul %128, %129, %cst_67 {dimension_numbers = #tpu.dot_dimension_numbers<[1], [0], [0], [1], [0, 0, 1, 1], [], []>} : vector<16x16xf32>, vector<16x8xf32>, vector<16x8xf32> -> vector<16x8xf32>
    %c0_68 = arith.constant 0 : index
    %c8_69 = arith.constant 8 : index
    %131 = vector.load %arg14[%c0_68, %c8_69] : memref<16x32xf32, #tpu.memory_space<vmem>>, vector<16x8xf32>
    tpu.vector_store %arg14[%c0_68, %c8_69], %130 {strides = array<i32>} : memref<16x32xf32, #tpu.memory_space<vmem>>, vector<16x8xf32>,
    %c0_70 = arith.constant 0 : index
    %c16 = arith.constant 16 : index
    %132 = vector.load %arg11[%c0_70, %c16] : memref<16x32xf32, #tpu.memory_space<vmem>>, vector<16x8xf32>
    %c0_71 = arith.constant 0 : index
    %c16_72 = arith.constant 16 : index
    %133 = vector.load %arg12[%c0_71, %c16_72] : memref<16x32xf32, #tpu.memory_space<vmem>>, vector<16x8xf32>
    %cst_73 = arith.constant dense<0.000000e+00> : vector<16xf32>
    %134 = vector.multi_reduction <add>, %132, %cst_73 [1] : vector<16x8xf32> to vector<16xf32>
    %135 = vector.shape_cast %134 : vector<16xf32> to vector<16x1xf32>
    %cst_74 = arith.constant 8.000000e+00 : f32
    %136 = vector.broadcast %cst_74 : f32 to vector<16x1xf32>
    %137 = arith.divf %135, %136 : vector<16x1xf32>
    %138 = vector.broadcast %137 : vector<16x1xf32> to vector<16x8xf32>
    %139 = arith.subf %132, %138 : vector<16x8xf32>
    %cst_75 = arith.constant dense<0.000000e+00> : vector<16xf32>
    %140 = vector.multi_reduction <add>, %133, %cst_75 [1] : vector<16x8xf32> to vector<16xf32>
    %141 = vector.shape_cast %140 : vector<16xf32> to vector<16x1xf32>
    %cst_76 = arith.constant 8.000000e+00 : f32
    %142 = vector.broadcast %cst_76 : f32 to vector<16x1xf32>
    %143 = arith.divf %141, %142 : vector<16x1xf32>
    %144 = vector.broadcast %143 : vector<16x1xf32> to vector<16x8xf32>
    %145 = arith.subf %133, %144 : vector<16x8xf32>
    %146 = arith.mulf %139, %139 : vector<16x8xf32>
    %cst_77 = arith.constant dense<0.000000e+00> : vector<16xf32>
    %147 = vector.multi_reduction <add>, %146, %cst_77 [1] : vector<16x8xf32> to vector<16xf32>
    %148 = vector.shape_cast %147 : vector<16xf32> to vector<16x1xf32>
    %cst_78 = arith.constant 9.99999996E-13 : f32
    %149 = vector.broadcast %cst_78 : f32 to vector<16x1xf32>
    %150 = arith.addf %148, %149 : vector<16x1xf32>
    %151 = math.rsqrt %150 : vector<16x1xf32>
    %152 = vector.broadcast %151 : vector<16x1xf32> to vector<16x8xf32>
    %153 = arith.mulf %139, %152 : vector<16x8xf32>
    %154 = arith.mulf %145, %145 : vector<16x8xf32>
    %cst_79 = arith.constant dense<0.000000e+00> : vector<16xf32>
    %155 = vector.multi_reduction <add>, %154, %cst_79 [1] : vector<16x8xf32> to vector<16xf32>
    %156 = vector.shape_cast %155 : vector<16xf32> to vector<16x1xf32>
    %cst_80 = arith.constant 9.99999996E-13 : f32
    %157 = vector.broadcast %cst_80 : f32 to vector<16x1xf32>
    %158 = arith.addf %156, %157 : vector<16x1xf32>
    %159 = math.rsqrt %158 : vector<16x1xf32>
    %160 = vector.broadcast %159 : vector<16x1xf32> to vector<16x8xf32>
    %161 = arith.mulf %145, %160 : vector<16x8xf32>
    %cst_81 = arith.constant dense<0.000000e+00> : vector<16x16xf32>
    %162 = tpu.matmul %153, %161, %cst_81 {dimension_numbers = #tpu.dot_dimension_numbers<[1], [1], [0], [0], [0, 0, 1, 0], [], []>} : vector<16x8xf32>, vector<16x8xf32>, vector<16x16xf32> -> vector<16x16xf32>
    %163 = vector.broadcast %39 : vector<1x16xf32> to vector<16x16xf32>
    %164 = arith.addf %162, %163 : vector<16x16xf32>
    %cst_82 = arith.constant dense<0xFF800000> : vector<16xf32>
    %165 = vector.multi_reduction <maximumf>, %164, %cst_82 [1] : vector<16x16xf32> to vector<16xf32>
    %166 = vector.shape_cast %165 : vector<16xf32> to vector<16x1xf32>
    %167 = vector.broadcast %166 : vector<16x1xf32> to vector<16x16xf32>
    %168 = arith.subf %164, %167 : vector<16x16xf32>
    %169 = math.exp %168 : vector<16x16xf32>
    %cst_83 = arith.constant dense<0.000000e+00> : vector<16xf32>
    %170 = vector.multi_reduction <add>, %169, %cst_83 [1] : vector<16x16xf32> to vector<16xf32>
    %171 = vector.shape_cast %170 : vector<16xf32> to vector<16x1xf32>
    %172 = tpu.reciprocal %171 {approx = true} : vector<16x1xf32> -> vector<16x1xf32>
    %173 = vector.broadcast %172 : vector<16x1xf32> to vector<16x16xf32>
    %174 = arith.mulf %169, %173 : vector<16x16xf32>
    %c0_84 = arith.constant 0 : index
    %c16_85 = arith.constant 16 : index
    %175 = vector.load %arg13[%c0_84, %c16_85] : memref<16x32xf32, #tpu.memory_space<vmem>>, vector<16x8xf32>
    %cst_86 = arith.constant dense<0.000000e+00> : vector<16x8xf32>
    %176 = tpu.matmul %174, %175, %cst_86 {dimension_numbers = #tpu.dot_dimension_numbers<[1], [0], [0], [1], [0, 0, 1, 1], [], []>} : vector<16x16xf32>, vector<16x8xf32>, vector<16x8xf32> -> vector<16x8xf32>
    %c0_87 = arith.constant 0 : index
    %c16_88 = arith.constant 16 : index
    %177 = vector.load %arg14[%c0_87, %c16_88] : memref<16x32xf32, #tpu.memory_space<vmem>>, vector<16x8xf32>
    tpu.vector_store %arg14[%c0_87, %c16_88], %176 {strides = array<i32>} : memref<16x32xf32, #tpu.memory_space<vmem>>, vector<16x8xf32>,
    %c0_89 = arith.constant 0 : index
    %c24 = arith.constant 24 : index
    %178 = vector.load %arg11[%c0_89, %c24] : memref<16x32xf32, #tpu.memory_space<vmem>>, vector<16x8xf32>
    %c0_90 = arith.constant 0 : index
    %c24_91 = arith.constant 24 : index
    %179 = vector.load %arg12[%c0_90, %c24_91] : memref<16x32xf32, #tpu.memory_space<vmem>>, vector<16x8xf32>
    %cst_92 = arith.constant dense<0.000000e+00> : vector<16xf32>
    %180 = vector.multi_reduction <add>, %178, %cst_92 [1] : vector<16x8xf32> to vector<16xf32>
    %181 = vector.shape_cast %180 : vector<16xf32> to vector<16x1xf32>
    %cst_93 = arith.constant 8.000000e+00 : f32
    %182 = vector.broadcast %cst_93 : f32 to vector<16x1xf32>
    %183 = arith.divf %181, %182 : vector<16x1xf32>
    %184 = vector.broadcast %183 : vector<16x1xf32> to vector<16x8xf32>
    %185 = arith.subf %178, %184 : vector<16x8xf32>
    %cst_94 = arith.constant dense<0.000000e+00> : vector<16xf32>
    %186 = vector.multi_reduction <add>, %179, %cst_94 [1] : vector<16x8xf32> to vector<16xf32>
    %187 = vector.shape_cast %186 : vector<16xf32> to vector<16x1xf32>
    %cst_95 = arith.constant 8.000000e+00 : f32
    %188 = vector.broadcast %cst_95 : f32 to vector<16x1xf32>
    %189 = arith.divf %187, %188 : vector<16x1xf32>
    %190 = vector.broadcast %189 : vector<16x1xf32> to vector<16x8xf32>
    %191 = arith.subf %179, %190 : vector<16x8xf32>
    %192 = arith.mulf %185, %185 : vector<16x8xf32>
    %cst_96 = arith.constant dense<0.000000e+00> : vector<16xf32>
    %193 = vector.multi_reduction <add>, %192, %cst_96 [1] : vector<16x8xf32> to vector<16xf32>
    %194 = vector.shape_cast %193 : vector<16xf32> to vector<16x1xf32>
    %cst_97 = arith.constant 9.99999996E-13 : f32
    %195 = vector.broadcast %cst_97 : f32 to vector<16x1xf32>
    %196 = arith.addf %194, %195 : vector<16x1xf32>
    %197 = math.rsqrt %196 : vector<16x1xf32>
    %198 = vector.broadcast %197 : vector<16x1xf32> to vector<16x8xf32>
    %199 = arith.mulf %185, %198 : vector<16x8xf32>
    %200 = arith.mulf %191, %191 : vector<16x8xf32>
    %cst_98 = arith.constant dense<0.000000e+00> : vector<16xf32>
    %201 = vector.multi_reduction <add>, %200, %cst_98 [1] : vector<16x8xf32> to vector<16xf32>
    %202 = vector.shape_cast %201 : vector<16xf32> to vector<16x1xf32>
    %cst_99 = arith.constant 9.99999996E-13 : f32
    %203 = vector.broadcast %cst_99 : f32 to vector<16x1xf32>
    %204 = arith.addf %202, %203 : vector<16x1xf32>
    %205 = math.rsqrt %204 : vector<16x1xf32>
    %206 = vector.broadcast %205 : vector<16x1xf32> to vector<16x8xf32>
    %207 = arith.mulf %191, %206 : vector<16x8xf32>
    %cst_100 = arith.constant dense<0.000000e+00> : vector<16x16xf32>
    %208 = tpu.matmul %199, %207, %cst_100 {dimension_numbers = #tpu.dot_dimension_numbers<[1], [1], [0], [0], [0, 0, 1, 0], [], []>} : vector<16x8xf32>, vector<16x8xf32>, vector<16x16xf32> -> vector<16x16xf32>
    %209 = vector.broadcast %39 : vector<1x16xf32> to vector<16x16xf32>
    %210 = arith.addf %208, %209 : vector<16x16xf32>
    %cst_101 = arith.constant dense<0xFF800000> : vector<16xf32>
    %211 = vector.multi_reduction <maximumf>, %210, %cst_101 [1] : vector<16x16xf32> to vector<16xf32>
    %212 = vector.shape_cast %211 : vector<16xf32> to vector<16x1xf32>
    %213 = vector.broadcast %212 : vector<16x1xf32> to vector<16x16xf32>
    %214 = arith.subf %210, %213 : vector<16x16xf32>
    %215 = math.exp %214 : vector<16x16xf32>
    %cst_102 = arith.constant dense<0.000000e+00> : vector<16xf32>
    %216 = vector.multi_reduction <add>, %215, %cst_102 [1] : vector<16x16xf32> to vector<16xf32>
    %217 = vector.shape_cast %216 : vector<16xf32> to vector<16x1xf32>
    %218 = tpu.reciprocal %217 {approx = true} : vector<16x1xf32> -> vector<16x1xf32>
    %219 = vector.broadcast %218 : vector<16x1xf32> to vector<16x16xf32>
    %220 = arith.mulf %215, %219 : vector<16x16xf32>
    %c0_103 = arith.constant 0 : index
    %c24_104 = arith.constant 24 : index
    %221 = vector.load %arg13[%c0_103, %c24_104] : memref<16x32xf32, #tpu.memory_space<vmem>>, vector<16x8xf32>
    %cst_105 = arith.constant dense<0.000000e+00> : vector<16x8xf32>
    %222 = tpu.matmul %220, %221, %cst_105 {dimension_numbers = #tpu.dot_dimension_numbers<[1], [0], [0], [1], [0, 0, 1, 1], [], []>} : vector<16x16xf32>, vector<16x8xf32>, vector<16x8xf32> -> vector<16x8xf32>
    %c0_106 = arith.constant 0 : index
    %c24_107 = arith.constant 24 : index
    %223 = vector.load %arg14[%c0_106, %c24_107] : memref<16x32xf32, #tpu.memory_space<vmem>>, vector<16x8xf32>
    tpu.vector_store %arg14[%c0_106, %c24_107], %222 {strides = array<i32>} : memref<16x32xf32, #tpu.memory_space<vmem>>, vector<16x8xf32>,
    %c0_108 = arith.constant 0 : index
    %c0_109 = arith.constant 0 : index
    %224 = vector.load %arg14[%c0_108, %c0_109] : memref<16x32xf32, #tpu.memory_space<vmem>>, vector<16x32xf32>
    %c0_110 = arith.constant 0 : index
    %c0_111 = arith.constant 0 : index
    %225 = vector.load %arg8[%c0_110, %c0_111] : memref<32x32xf32, #tpu.memory_space<vmem>>, vector<32x32xf32>
    %cst_112 = arith.constant dense<0.000000e+00> : vector<16x32xf32>
    %226 = tpu.matmul %224, %225, %cst_112 {dimension_numbers = #tpu.dot_dimension_numbers<[1], [0], [0], [1], [0, 0, 1, 1], [], []>} : vector<16x32xf32>, vector<32x32xf32>, vector<16x32xf32> -> vector<16x32xf32>
    %c0_113 = arith.constant 0 : index
    %c0_114 = arith.constant 0 : index
    %227 = vector.load %arg9[%c0_113, %c0_114] : memref<1x32xf32, #tpu.memory_space<vmem>>, vector<1x32xf32>
    %228 = vector.broadcast %227 : vector<1x32xf32> to vector<16x32xf32>
    %229 = arith.addf %226, %228 : vector<16x32xf32>
    %c0_115 = arith.constant 0 : index
    %c0_116 = arith.constant 0 : index
    %c0_117 = arith.constant 0 : index
    %230 = vector.load %arg1[%c0_115, %c0_116, %c0_117] : memref<1x16x32xf32, #tpu.memory_space<vmem>>, vector<1x16x32xf32>
    %231 = vector.shape_cast %230 : vector<1x16x32xf32> to vector<16x32xf32>
    %232 = arith.addf %231, %229 : vector<16x32xf32>
    %c0_118 = arith.constant 0 : index
    %c0_119 = arith.constant 0 : index
    %c0_120 = arith.constant 0 : index
    %233 = vector.load %arg10[%c0_118, %c0_119, %c0_120] : memref<1x16x32xf32, #tpu.memory_space<vmem>>, vector<1x16x32xf32>
    %234 = vector.shape_cast %233 : vector<1x16x32xf32> to vector<16x32xf32>
    %235 = vector.shape_cast %232 : vector<16x32xf32> to vector<1x16x32xf32>
    tpu.vector_store %arg10[%c0_118, %c0_119, %c0_120], %235 {strides = array<i32>} : memref<1x16x32xf32, #tpu.memory_space<vmem>>, vector<1x16x32xf32>,
    return
  }
  func.func @transform_0(%arg0: i32) -> (i32, i32, i32) {
    %c0_i32 = arith.constant 0 : i32
    %c0_i32_0 = arith.constant 0 : i32
    %c0_i32_1 = arith.constant 0 : i32
    return %arg0, %c0_i32, %c0_i32_0 : i32, i32, i32
  }
  func.func @transform_1(%arg0: i32) -> (i32, i32, i32) {
    %c0_i32 = arith.constant 0 : i32
    %c0_i32_0 = arith.constant 0 : i32
    %c0_i32_1 = arith.constant 0 : i32
    return %arg0, %c0_i32, %c0_i32_0 : i32, i32, i32
  }
  func.func @transform_2(%arg0: i32) -> (i32, i32) {
    %c0_i32 = arith.constant 0 : i32
    %c0_i32_0 = arith.constant 0 : i32
    %c0_i32_1 = arith.constant 0 : i32
    return %c0_i32, %c0_i32_0 : i32, i32
  }
  func.func @transform_3(%arg0: i32) -> (i32, i32) {
    %c0_i32 = arith.constant 0 : i32
    %c0_i32_0 = arith.constant 0 : i32
    %c0_i32_1 = arith.constant 0 : i32
    return %c0_i32, %c0_i32_0 : i32, i32
  }
  func.func @transform_4(%arg0: i32) -> (i32, i32) {
    %c0_i32 = arith.constant 0 : i32
    %c0_i32_0 = arith.constant 0 : i32
    %c0_i32_1 = arith.constant 0 : i32
    return %c0_i32, %c0_i32_0 : i32, i32
  }
  func.func @transform_5(%arg0: i32) -> (i32, i32) {
    %c0_i32 = arith.constant 0 : i32
    %c0_i32_0 = arith.constant 0 : i32
    %c0_i32_1 = arith.constant 0 : i32
    return %c0_i32, %c0_i32_0 : i32, i32
  }
  func.func @transform_6(%arg0: i32) -> (i32, i32) {
    %c0_i32 = arith.constant 0 : i32
    %c0_i32_0 = arith.constant 0 : i32
    %c0_i32_1 = arith.constant 0 : i32
    return %c0_i32, %c0_i32_0 : i32, i32
  }
  func.func @transform_7(%arg0: i32) -> (i32, i32) {
    %c0_i32 = arith.constant 0 : i32
    %c0_i32_0 = arith.constant 0 : i32
    %c0_i32_1 = arith.constant 0 : i32
    return %c0_i32, %c0_i32_0 : i32, i32
  }
  func.func @transform_8(%arg0: i32) -> (i32, i32) {
    %c0_i32 = arith.constant 0 : i32
    %c0_i32_0 = arith.constant 0 : i32
    %c0_i32_1 = arith.constant 0 : i32
    return %c0_i32, %c0_i32_0 : i32, i32
  }
  func.func @transform_9(%arg0: i32) -> (i32, i32, i32) {
    %c0_i32 = arith.constant 0 : i32
    %c0_i32_0 = arith.constant 0 : i32
    %c0_i32_1 = arith.constant 0 : i32
    return %arg0, %c0_i32, %c0_i32_0 : i32, i32, i32
  }
}

</mosaic_0001>

<llo_original>
// kernel: tpu_custom_call.1
$region0: #{tpu_custom_call.1}
  #allocation0 [shape = 'u32[]', space=smem, size = 0x4, offset = 0x4, fixed_abs, tag = 'smem constant byte address 0x4 - core index']
  #allocation1 [shape = 'u32[144,128]{1,0:T(1,128)}', space=vmem, size = 0x12000, scoped, tag = 'internal scratch']
  #allocation2 [shape = 'f32[16,32]{1,0:T(8,128)}', space=vmem, size = 0x2000, scoped, tag = 'scratch operand']
  #allocation3 [shape = 'f32[16,32]{1,0:T(8,128)}', space=vmem, size = 0x2000, scoped, tag = 'scratch operand']
  #allocation4 [shape = 'f32[16,32]{1,0:T(8,128)}', space=vmem, size = 0x2000, scoped, tag = 'scratch operand']
  #allocation5 [shape = 'f32[16,32]{1,0:T(8,128)}', space=vmem, size = 0x2000, scoped, tag = 'scratch operand']
  %s0 = inlined_call_operand.hbm [shape: f32[2,16,32], index: 0, kind: input, shape index: {}]
  %s1 = inlined_call_operand.hbm [shape: f32[2,1,16], index: 1, kind: input, shape index: {}]
  %s2 = inlined_call_operand.vmem [shape: f32[1,32], index: 2, kind: input, shape index: {}]
  %s3 = inlined_call_operand.vmem [shape: f32[1,32], index: 3, kind: input, shape index: {}]
  %s4 = inlined_call_operand.hbm [shape: f32[32,32], index: 4, kind: input, shape index: {}]
  %s5 = inlined_call_operand.hbm [shape: f32[32,32], index: 5, kind: input, shape index: {}]
  %s6 = inlined_call_operand.hbm [shape: f32[32,32], index: 6, kind: input, shape index: {}]
  %s7 = inlined_call_operand.hbm [shape: f32[32,32], index: 7, kind: input, shape index: {}]
  %s8 = inlined_call_operand.vmem [shape: f32[1,32], index: 8, kind: input, shape index: {}]
  %s9 = inlined_call_operand.hbm [shape: f32[2,16,32], index: 9, kind: output, shape index: {}]
  %s10 = sld [smem:[#allocation0]]
  $region93: #{tpu_custom_call.1} parent=0
    _
  %s12 = ssub.s32 1, %s10
  %s13 = scalar_select 0, %s12, %s10
  $region1: #{tpu_custom_call.1} parent=0
    #allocation6 [shape = 'u8[16384]{0}', space=vmem, size = 0x4000, scoped, tag = 'input window, operand 0']
    #allocation7 [shape = 's32[2]{0}', space=sflag, size = 0x8, scoped, tag = 'scoped memory for tpu_custom_call.1']
    #allocation8 [shape = 's32[2]{0}', space=sflag, size = 0x8, scoped, tag = 'scoped memory for tpu_custom_call.1']
    #allocation9 [shape = 'u8[1024]{0}', space=vmem, size = 0x400, scoped, tag = 'input window, operand 1']
    #allocation10 [shape = 's32[2]{0}', space=sflag, size = 0x8, scoped, tag = 'scoped memory for tpu_custom_call.1']
    #allocation11 [shape = 'u8[16384]{0}', space=vmem, size = 0x4000, scoped, tag = 'input window, operand 4, single buffered']
    #allocation12 [shape = 'u8[16384]{0}', space=vmem, size = 0x4000, scoped, tag = 'input window, operand 5, single buffered']
    #allocation13 [shape = 's32[1]{0}', space=sflag, size = 0x4, scoped, tag = 'scoped memory for tpu_custom_call.1']
    #allocation14 [shape = 'u8[16384]{0}', space=vmem, size = 0x4000, scoped, tag = 'input window, operand 6, single buffered']
    #allocation15 [shape = 'u8[16384]{0}', space=vmem, size = 0x4000, scoped, tag = 'input window, operand 7, single buffered']
    #allocation16 [shape = 's32[1]{0}', space=sflag, size = 0x4, scoped, tag = 'scoped memory for tpu_custom_call.1']
    #allocation17 [shape = 'u8[16384]{0}', space=vmem, size = 0x4000, scoped, tag = 'output window, operand 0']
    %14 = vsyncpa [#allocation7], 0
    %s15 = scalar_lea.sflag [#allocation7], 1
    %16 = vsyncpa %s15, 0
    %17 = vsyncpa [#allocation10], 0
    %s18 = scalar_lea.sflag [#allocation10], 1
    %19 = vsyncpa %s18, 0
    %20 = vsyncpa [#allocation13], 0
    %21 = vsyncpa [#allocation16], 0
    %22 = vsyncpa [#allocation8], 0
    %s23 = scalar_lea.sflag [#allocation8], 1
    %24 = vsyncpa %s23, 0
    loop: start=0, step=1, limit=4
    $region2: #{tpu_custom_call.1} parent=1 // loop_pre_header
      _
    $region3: #{tpu_custom_call.1} parent=1 // loop_header
      %s26 = sphi 0, %s30
      %p27 = scmp.ge.s32.totalorder %s26, 4
      %s36 = sphi 0, %s38
      %s39 = sphi 0, %s36
      %s40 = sphi 0, %s39
      %s56 = sphi 0, %s40
      %s62 = sphi 0, %s64
      %s65 = sphi 0, %s62
      %s66 = sphi 0, %s65
      %s82 = sphi 0, %s66
      %s86 = sphi 0, %s86
      %s88 = sphi 0, %s86
      %s89 = sphi 0, %s88
      %s103 = sphi 0, %s89
      %s107 = sphi 0, %s107
      %s109 = sphi 0, %s107
      %s110 = sphi 0, %s109
      %s124 = sphi 0, %s110
      %s128 = sphi 0, %s128
      %s130 = sphi 0, %s128
      %s131 = sphi 0, %s130
      %s145 = sphi 0, %s131
      %s149 = sphi 0, %s149
      %s151 = sphi 0, %s149
      %s152 = sphi 0, %s151
      %s166 = sphi 0, %s152
      %s170 = sphi 0, %s170
      %s172 = sphi 0, %s170
      %s173 = sphi 0, %s172
      %s187 = sphi 0, %s173
      %s191 = sphi 0, %s191
      %s193 = sphi 0, %s191
      %s194 = sphi 0, %s193
      %s208 = sphi 0, %s194
      %s212 = sphi 0, %s212
      %s214 = sphi 0, %s212
      %s215 = sphi 0, %s214
      %s229 = sphi 0, %s215
      %s235 = sphi 0, %s237
      %s238 = sphi 0, %s235
      %s239 = sphi 0, %s238
      %s255 = sphi 0, %s239
    $region4: #{tpu_custom_call.1} parent=1 // loop_header_branch
      %29 = sbr.rel (%p27) target = $region8
    $region5: #{tpu_custom_call.1} parent=1 // loop_body
      %s31 = ssub.s32 %s26, 1
      %s32 = ssub.s32 %s26, 2
      %s33 = sadd.s32 %s26, 1
      %s34 = ssub.s32 %s26, %s33
      %p35 = scmp.eq.s32.totalorder %s34, 0
      %s37 = sadd.s32 %s36, 1
      %s38 = scalar_select %p35, %s36, %s37
      %p41 = pneg %p35
      %p42 = scmp.eq.s32.totalorder %s26, 1
      %p43 = por %p41, %p42
      %p44 = scmp.ne.s32.totalorder %s36, %s39
      %p45 = scmp.eq.s32.totalorder %s26, 0
      %p46 = por %p44, %p45
      %p47 = scmp.ne.s32.totalorder %s36, %s39
      %p48 = scmp.eq.s32.totalorder %s31, 1
      %p49 = por %p47, %p48
      %p50 = scmp.ne.s32.totalorder %s39, %s40
      %p51 = scmp.eq.s32.totalorder %s31, 0
      %p52 = por %p50, %p51
      %p53 = scmp.ne.s32.totalorder %s39, %s40
      %p54 = scmp.eq.s32.totalorder %s32, 1
      %p55 = por %p53, %p54
      %p57 = scmp.ne.s32.totalorder %s40, %s56
      %p58 = scmp.eq.s32.totalorder %s32, 0
      %p59 = por %p57, %p58
      %s60 = ssub.s32 %s26, %s33
      %p61 = scmp.eq.s32.totalorder %s60, 0
      %s63 = sadd.s32 %s62, 1
      %s64 = scalar_select %p61, %s62, %s63
      %p67 = pneg %p61
      %p68 = scmp.eq.s32.totalorder %s26, 1
      %p69 = por %p67, %p68
      %p70 = scmp.ne.s32.totalorder %s62, %s65
      %p71 = scmp.eq.s32.totalorder %s26, 0
      %p72 = por %p70, %p71
      %p73 = scmp.ne.s32.totalorder %s62, %s65
      %p74 = scmp.eq.s32.totalorder %s31, 1
      %p75 = por %p73, %p74
      %p76 = scmp.ne.s32.totalorder %s65, %s66
      %p77 = scmp.eq.s32.totalorder %s31, 0
      %p78 = por %p76, %p77
      %p79 = scmp.ne.s32.totalorder %s65, %s66
      %p80 = scmp.eq.s32.totalorder %s32, 1
      %p81 = por %p79, %p80
      %p83 = scmp.ne.s32.totalorder %s66, %s82
      %p84 = scmp.eq.s32.totalorder %s32, 0
      %p85 = por %p83, %p84
      %s87 = sadd.s32 %s86, 1
      %p90 = scmp.eq.s32.totalorder %s26, 1
      %p91 = scmp.ne.s32.totalorder %s86, %s88
      %p92 = scmp.eq.s32.totalorder %s26, 0
      %p93 = por %p91, %p92
      %p94 = scmp.ne.s32.totalorder %s86, %s88
      %p95 = scmp.eq.s32.totalorder %s31, 1
      %p96 = por %p94, %p95
      %p97 = scmp.ne.s32.totalorder %s88, %s89
      %p98 = scmp.eq.s32.totalorder %s31, 0
      %p99 = por %p97, %p98
      %p100 = scmp.ne.s32.totalorder %s88, %s89
      %p101 = scmp.eq.s32.totalorder %s32, 1
      %p102 = por %p100, %p101
      %p104 = scmp.ne.s32.totalorder %s89, %s103
      %p105 = scmp.eq.s32.totalorder %s32, 0
      %p106 = por %p104, %p105
      %s108 = sadd.s32 %s107, 1
      %p111 = scmp.eq.s32.totalorder %s26, 1
      %p112 = scmp.ne.s32.totalorder %s107, %s109
      %p113 = scmp.eq.s32.totalorder %s26, 0
      %p114 = por %p112, %p113
      %p115 = scmp.ne.s32.totalorder %s107, %s109
      %p116 = scmp.eq.s32.totalorder %s31, 1
      %p117 = por %p115, %p116
      %p118 = scmp.ne.s32.totalorder %s109, %s110
      %p119 = scmp.eq.s32.totalorder %s31, 0
      %p120 = por %p118, %p119
      %p121 = scmp.ne.s32.totalorder %s109, %s110
      %p122 = scmp.eq.s32.totalorder %s32, 1
      %p123 = por %p121, %p122
      %p125 = scmp.ne.s32.totalorder %s110, %s124
      %p126 = scmp.eq.s32.totalorder %s32, 0
      %p127 = por %p125, %p126
      %s129 = sadd.s32 %s128, 1
      %p132 = scmp.eq.s32.totalorder %s26, 1
      %p133 = scmp.ne.s32.totalorder %s128, %s130
      %p134 = scmp.eq.s32.totalorder %s26, 0
      %p135 = por %p133, %p134
      %p136 = scmp.ne.s32.totalorder %s128, %s130
      %p137 = scmp.eq.s32.totalorder %s31, 1
      %p138 = por %p136, %p137
      %p139 = scmp.ne.s32.totalorder %s130, %s131
      %p140 = scmp.eq.s32.totalorder %s31, 0
      %p141 = por %p139, %p140
      %p142 = scmp.ne.s32.totalorder %s130, %s131
      %p143 = scmp.eq.s32.totalorder %s32, 1
      %p144 = por %p142, %p143
      %p146 = scmp.ne.s32.totalorder %s131, %s145
      %p147 = scmp.eq.s32.totalorder %s32, 0
      %p148 = por %p146, %p147
      %s150 = sadd.s32 %s149, 1
      %p153 = scmp.eq.s32.totalorder %s26, 1
      %p154 = scmp.ne.s32.totalorder %s149, %s151
      %p155 = scmp.eq.s32.totalorder %s26, 0
      %p156 = por %p154, %p155
      %p157 = scmp.ne.s32.totalorder %s149, %s151
      %p158 = scmp.eq.s32.totalorder %s31, 1
      %p159 = por %p157, %p158
      %p160 = scmp.ne.s32.totalorder %s151, %s152
      %p161 = scmp.eq.s32.totalorder %s31, 0
      %p162 = por %p160, %p161
      %p163 = scmp.ne.s32.totalorder %s151, %s152
      %p164 = scmp.eq.s32.totalorder %s32, 1
      %p165 = por %p163, %p164
      %p167 = scmp.ne.s32.totalorder %s152, %s166
      %p168 = scmp.eq.s32.totalorder %s32, 0
      %p169 = por %p167, %p168
      %s171 = sadd.s32 %s170, 1
      %p174 = scmp.eq.s32.totalorder %s26, 1
      %p175 = scmp.ne.s32.totalorder %s170, %s172
      %p176 = scmp.eq.s32.totalorder %s26, 0
      %p177 = por %p175, %p176
      %p178 = scmp.ne.s32.totalorder %s170, %s172
      %p179 = scmp.eq.s32.totalorder %s31, 1
      %p180 = por %p178, %p179
      %p181 = scmp.ne.s32.totalorder %s172, %s173
      %p182 = scmp.eq.s32.totalorder %s31, 0
      %p183 = por %p181, %p182
      %p184 = scmp.ne.s32.totalorder %s172, %s173
      %p185 = scmp.eq.s32.totalorder %s32, 1
      %p186 = por %p184, %p185
      %p188 = scmp.ne.s32.totalorder %s173, %s187
      %p189 = scmp.eq.s32.totalorder %s32, 0
      %p190 = por %p188, %p189
      %s192 = sadd.s32 %s191, 1
      %p195 = scmp.eq.s32.totalorder %s26, 1
      %p196 = scmp.ne.s32.totalorder %s191, %s193
      %p197 = scmp.eq.s32.totalorder %s26, 0
      %p198 = por %p196, %p197
      %p199 = scmp.ne.s32.totalorder %s191, %s193
      %p200 = scmp.eq.s32.totalorder %s31, 1
      %p201 = por %p199, %p200
      %p202 = scmp.ne.s32.totalorder %s193, %s194
      %p203 = scmp.eq.s32.totalorder %s31, 0
      %p204 = por %p202, %p203
      %p205 = scmp.ne.s32.totalorder %s193, %s194
      %p206 = scmp.eq.s32.totalorder %s32, 1
      %p207 = por %p205, %p206
      %p209 = scmp.ne.s32.totalorder %s194, %s208
      %p210 = scmp.eq.s32.totalorder %s32, 0
      %p211 = por %p209, %p210
      %s213 = sadd.s32 %s212, 1
      %p216 = scmp.eq.s32.totalorder %s26, 1
      %p217 = scmp.ne.s32.totalorder %s212, %s214
      %p218 = scmp.eq.s32.totalorder %s26, 0
      %p219 = por %p217, %p218
      %p220 = scmp.ne.s32.totalorder %s212, %s214
      %p221 = scmp.eq.s32.totalorder %s31, 1
      %p222 = por %p220, %p221
      %p223 = scmp.ne.s32.totalorder %s214, %s215
      %p224 = scmp.eq.s32.totalorder %s31, 0
      %p225 = por %p223, %p224
      %p226 = scmp.ne.s32.totalorder %s214, %s215
      %p227 = scmp.eq.s32.totalorder %s32, 1
      %p228 = por %p226, %p227
      %p230 = scmp.ne.s32.totalorder %s215, %s229
      %p231 = scmp.eq.s32.totalorder %s32, 0
      %p232 = por %p230, %p231
      %s233 = ssub.s32 %s26, %s33
      %p234 = scmp.eq.s32.totalorder %s233, 0
      %s236 = sadd.s32 %s235, 1
      %s237 = scalar_select %p234, %s235, %s236
      %p240 = pneg %p234
      %p241 = scmp.eq.s32.totalorder %s26, 1
      %p242 = por %p240, %p241
      %p243 = scmp.ne.s32.totalorder %s235, %s238
      %p244 = scmp.eq.s32.totalorder %s26, 0
      %p245 = por %p243, %p244
      %p246 = scmp.ne.s32.totalorder %s235, %s238
      %p247 = scmp.eq.s32.totalorder %s31, 1
      %p248 = por %p246, %p247
      %p249 = scmp.ne.s32.totalorder %s238, %s239
      %p250 = scmp.eq.s32.totalorder %s31, 0
      %p251 = por %p249, %p250
      %p252 = scmp.ne.s32.totalorder %s238, %s239
      %p253 = scmp.eq.s32.totalorder %s32, 1
      %p254 = por %p252, %p253
      %p256 = scmp.ne.s32.totalorder %s239, %s255
      %p257 = scmp.eq.s32.totalorder %s32, 0
      %p258 = por %p256, %p257
      %p259 = scmp.le.s32.totalorder 1, %s26
      %p260 = scmp.lt.s32.totalorder %s26, 3
      %p261 = pnand %p259, %p260
      %p262 = pneg %p261
      // Predicated region
      $region9: #{tpu_custom_call.1} parent=5 // pred_check
        _
      $region10: #{tpu_custom_call.1} parent=5 // pred_check_branch
        %264 = sbr.rel (%p261) target = $region12
      $region11: #{tpu_custom_call.1} parent=5 // pred_region
        %s265 = ssub.s32 %s26, 1
        // Predicated region
        $region13: #{tpu_custom_call.1} parent=11 // pred_check
          %p266 = pneg %p99
        $region14: #{tpu_custom_call.1} parent=11 // pred_check_branch
          %268 = sbr.rel (%p266) target = $region16
        $region15: #{tpu_custom_call.1} parent=11 // pred_region
          _
        $region16: #{tpu_custom_call.1} parent=11 // pred_fallthru
          _
        // Predicated region
        $region17: #{tpu_custom_call.1} parent=11 // pred_check
          %p269 = pneg %p120
        $region18: #{tpu_custom_call.1} parent=11 // pred_check_branch
          %271 = sbr.rel (%p269) target = $region20
        $region19: #{tpu_custom_call.1} parent=11 // pred_region
          _
        $region20: #{tpu_custom_call.1} parent=11 // pred_fallthru
          _
        // Predicated region
        $region21: #{tpu_custom_call.1} parent=11 // pred_check
          %p272 = pneg %p141
        $region22: #{tpu_custom_call.1} parent=11 // pred_check_branch
          %274 = sbr.rel (%p272) target = $region24
        $region23: #{tpu_custom_call.1} parent=11 // pred_region
          %s276 = ssub.s32 512, 512
          %277 = vsyncadd [#allocation10], %s276
          %s278 = sshll.u32 [#allocation11], 4
          %s279 = int_to_ptr.vmem [resolvable:$true] %s278
          %284 = dma.hbm_to_vmem [thread:$0]  %s4, 512, %s279, [#allocation10], 128, 128, 8
        $region24: #{tpu_custom_call.1} parent=11 // pred_fallthru
          _
        // Predicated region
        $region25: #{tpu_custom_call.1} parent=11 // pred_check
          %p285 = pneg %p162
        $region26: #{tpu_custom_call.1} parent=11 // pred_check_branch
          %287 = sbr.rel (%p285) target = $region28
        $region27: #{tpu_custom_call.1} parent=11 // pred_region
          %s289 = ssub.s32 512, 512
          %290 = vsyncadd [#allocation13], %s289
          %s291 = sshll.u32 [#allocation12], 4
          %s292 = int_to_ptr.vmem [resolvable:$true] %s291
          %297 = dma.hbm_to_vmem [thread:$0]  %s5, 512, %s292, [#allocation13], 128, 128, 8
        $region28: #{tpu_custom_call.1} parent=11 // pred_fallthru
          _
        // Predicated region
        $region29: #{tpu_custom_call.1} parent=11 // pred_check
          %p298 = pneg %p183
        $region30: #{tpu_custom_call.1} parent=11 // pred_check_branch
          %300 = sbr.rel (%p298) target = $region32
        $region31: #{tpu_custom_call.1} parent=11 // pred_region
          %s302 = ssub.s32 512, 512
          %303 = vsyncadd [#allocation13], %s302
          %s304 = sshll.u32 [#allocation14], 4
          %s305 = int_to_ptr.vmem [resolvable:$true] %s304
          %310 = dma.hbm_to_vmem [thread:$0]  %s6, 512, %s305, [#allocation13], 128, 128, 8
        $region32: #{tpu_custom_call.1} parent=11 // pred_fallthru
          _
        // Predicated region
        $region33: #{tpu_custom_call.1} parent=11 // pred_check
          %p311 = pneg %p204
        $region34: #{tpu_custom_call.1} parent=11 // pred_check_branch
          %313 = sbr.rel (%p311) target = $region36
        $region35: #{tpu_custom_call.1} parent=11 // pred_region
          %s315 = ssub.s32 512, 512
          %316 = vsyncadd [#allocation16], %s315
          %s317 = sshll.u32 [#allocation15], 4
          %s318 = int_to_ptr.vmem [resolvable:$true] %s317
          %323 = dma.hbm_to_vmem [thread:$0]  %s7, 512, %s318, [#allocation16], 128, 128, 8
        $region36: #{tpu_custom_call.1} parent=11 // pred_fallthru
          _
        // Predicated region
        $region37: #{tpu_custom_call.1} parent=11 // pred_check
          %p324 = pneg %p225
        $region38: #{tpu_custom_call.1} parent=11 // pred_check_branch
          %326 = sbr.rel (%p324) target = $region40
        $region39: #{tpu_custom_call.1} parent=11 // pred_region
          _
        $region40: #{tpu_custom_call.1} parent=11 // pred_fallthru
          _
      $region12: #{tpu_custom_call.1} parent=5 // pred_fallthru
        _
      %p327 = scmp.lt.s32.totalorder %s26, 2
      // Predicated region
      $region41: #{tpu_custom_call.1} parent=5 // pred_check
        %p328 = pneg %p327
      $region42: #{tpu_custom_call.1} parent=5 // pred_check_branch
        %330 = sbr.rel (%p328) target = $region44
      $region43: #{tpu_custom_call.1} parent=5 // pred_region
        // Predicated region
        $region45: #{tpu_custom_call.1} parent=43 // pred_check
          %p331 = pneg %p46
        $region46: #{tpu_custom_call.1} parent=43 // pred_check_branch
          %333 = sbr.rel (%p331) target = $region48
        $region47: #{tpu_custom_call.1} parent=43 // pred_region
          %s334 = sand.u32 %s36, 1
          %s335 = scalar_lea.sflag [#allocation7], %s334
          %s336 = sand.u32 %s36, 1
          %s337 = smul.addr %s336, 16
          %s338 = scalar_lea.vmem [#allocation6], %s337
          %s340 = ssub.s32 256, 256
          %341 = vsyncadd %s335, %s340
          %s342 = smul.addr %s26, 2
          %s343 = smul.addr %s342, 128
          %s344 = scalar_lea.hbm %s0, %s343
          %s345 = sshll.u32 %s338, 4
          %s346 = int_to_ptr.vmem [resolvable:$true] %s345
          %351 = dma.hbm_to_vmem [thread:$0]  %s344, 256, %s346, %s335, 128, 128, 8
        $region48: #{tpu_custom_call.1} parent=43 // pred_fallthru
          _
        // Predicated region
        $region49: #{tpu_custom_call.1} parent=43 // pred_check
          %p352 = pneg %p72
        $region50: #{tpu_custom_call.1} parent=43 // pred_check_branch
          %354 = sbr.rel (%p352) target = $region52
        $region51: #{tpu_custom_call.1} parent=43 // pred_region
          %s355 = sand.u32 %s26, 1
          %s356 = scalar_lea.sflag [#allocation10], %s355
          %s357 = sand.u32 %s62, 1
          %s358 = scalar_lea.vmem [#allocation9], %s357
          %s360 = ssub.s32 16, 16
          %361 = vsyncadd %s356, %s360
          %s362 = smul.addr %s26, 16
          %s363 = scalar_lea.hbm %s1, %s362
          %s365 = sshll.u32 %s358, 4
          %s366 = int_to_ptr.vmem [resolvable:$true] %s365
          %368 = dma.hbm_to_vmem [thread:$0]  %s363, 16, %s366, %s356
        $region52: #{tpu_custom_call.1} parent=43 // pred_fallthru
          _
      $region44: #{tpu_custom_call.1} parent=5 // pred_fallthru
        _
      %p369 = scmp.le.s32.totalorder 1, %s26
      %p370 = scmp.lt.s32.totalorder %s26, 3
      %p371 = pnand %p369, %p370
      %p372 = pneg %p371
      // Predicated region
      $region53: #{tpu_custom_call.1} parent=5 // pred_check
        _
      $region54: #{tpu_custom_call.1} parent=5 // pred_check_branch
        %374 = sbr.rel (%p371) target = $region56
      $region55: #{tpu_custom_call.1} parent=5 // pred_region
        %s375 = ssub.s32 %s26, 1
        %s376 = sand.u32 %s39, 1
        %s377 = scalar_lea.sflag [#allocation7], %s376
        %s378 = sand.u32 %s39, 1
        %s379 = smul.addr %s378, 16
        %s380 = scalar_lea.vmem [#allocation6], %s379
        // Predicated region
        $region57: #{tpu_custom_call.1} parent=55 // pred_check
          %p381 = pneg %p52
        $region58: #{tpu_custom_call.1} parent=55 // pred_check_branch
          %383 = sbr.rel (%p381) target = $region60
        $region59: #{tpu_custom_call.1} parent=55 // pred_region
          %384 = dma.done %s377, 256
        $region60: #{tpu_custom_call.1} parent=55 // pred_fallthru
          _
        %s385 = sand.u32 %s31, 1
        %s386 = scalar_lea.sflag [#allocation10], %s385
        %s387 = sand.u32 %s65, 1
        %s388 = scalar_lea.vmem [#allocation9], %s387
        // Predicated region
        $region61: #{tpu_custom_call.1} parent=55 // pred_check
          %p389 = pneg %p78
        $region62: #{tpu_custom_call.1} parent=55 // pred_check_branch
          %391 = sbr.rel (%p389) target = $region64
        $region63: #{tpu_custom_call.1} parent=55 // pred_region
          %392 = dma.done %s386, 16
        $region64: #{tpu_custom_call.1} parent=55 // pred_fallthru
          _
        // Predicated region
        $region65: #{tpu_custom_call.1} parent=55 // pred_check
          %p393 = pneg %p141
        $region66: #{tpu_custom_call.1} parent=55 // pred_check_branch
          %395 = sbr.rel (%p393) target = $region68
        $region67: #{tpu_custom_call.1} parent=55 // pred_region
          %396 = dma.done [#allocation10], 512
        $region68: #{tpu_custom_call.1} parent=55 // pred_fallthru
          _
        // Predicated region
        $region69: #{tpu_custom_call.1} parent=55 // pred_check
          %p397 = pneg %p162
        $region70: #{tpu_custom_call.1} parent=55 // pred_check_branch
          %399 = sbr.rel (%p397) target = $region72
        $region71: #{tpu_custom_call.1} parent=55 // pred_region
          %400 = dma.done [#allocation13], 512
        $region72: #{tpu_custom_call.1} parent=55 // pred_fallthru
          _
        // Predicated region
        $region73: #{tpu_custom_call.1} parent=55 // pred_check
          %p401 = pneg %p183
        $region74: #{tpu_custom_call.1} parent=55 // pred_check_branch
          %403 = sbr.rel (%p401) target = $region76
        $region75: #{tpu_custom_call.1} parent=55 // pred_region
          %404 = dma.done [#allocation13], 512
        $region76: #{tpu_custom_call.1} parent=55 // pred_fallthru
          _
        // Predicated region
        $region77: #{tpu_custom_call.1} parent=55 // pred_check
          %p405 = pneg %p204
        $region78: #{tpu_custom_call.1} parent=55 // pred_check_branch
          %407 = sbr.rel (%p405) target = $region80
        $region79: #{tpu_custom_call.1} parent=55 // pred_region
          %408 = dma.done [#allocation16], 512
        $region80: #{tpu_custom_call.1} parent=55 // pred_fallthru
          _
        %s409 = sand.u32 %s39, 1
        %s410 = scalar_lea.sflag [#allocation7], %s409
        %s411 = sand.u32 %s39, 1
        %s412 = smul.addr %s411, 16
        %s413 = scalar_lea.vmem [#allocation6], %s412
        %p414 = pneg %p52
        %p415 = pneg %p49
        %s416 = sand.u32 %s31, 1
        %s417 = scalar_lea.sflag [#allocation10], %s416
        %s418 = sand.u32 %s65, 1
        %s419 = scalar_lea.vmem [#allocation9], %s418
        %p420 = pneg %p78
        %p421 = pneg %p75
        %p422 = pneg %p99
        %p423 = pneg %p96
        %p424 = pneg %p120
        %p425 = pneg %p117
        %p426 = pneg %p141
        %p427 = pneg %p138
        %p428 = pneg %p162
        %p429 = pneg %p159
        %p430 = pneg %p183
        %p431 = pneg %p180
        %p432 = pneg %p204
        %p433 = pneg %p201
        %p434 = pneg %p225
        %p435 = pneg %p222
        %p436 = pneg %p251
        %p437 = pneg %p248
        %s438 = sand.u32 %s238, 1
        %s439 = scalar_lea.sflag [#allocation8], %s438
        %s440 = sand.u32 %s238, 1
        %s441 = smul.addr %s440, 16
        %s442 = scalar_lea.vmem [#allocation17], %s441
        %v443 = vld [vmem:[%s380] sm:$0xff]
        %v444 = vld [vmem:[%s380 + $0x8] sm:$0xff]
        %v445 = vld [vmem:[%s2] sm:$0x1]
        %v446 = vld [vmem:[%s3] sm:$0x1]
        %vm447 = vcmask 261120
        %v448 = vsel %vm447, %v443, 0.0
        %449 = vadd.xlane.f32.xlu0 %v448
        %v450 = vpop.xlane.xlu0 %449
        %v451 = vsel %vm447, %v444, 0.0
        %452 = vadd.xlane.f32.xlu0 %v451
        %v453 = vpop.xlane.xlu0 %452
        %v454 = vrcp.pop 32.0
        %v455 = vmul.f32 %v450, %v454
        %v456 = vmul.f32 %v453, %v454
        %v457 = vsub.f32 %v443, %v455
        %v458 = vsub.f32 %v444, %v456
        %v459 = vmul.f32 %v457, %v457
        %v460 = vmul.f32 %v458, %v458
        %v461 = vsel %vm447, %v459, 0.0
        %462 = vadd.xlane.f32.xlu0 %v461
        %v463 = vpop.xlane.xlu0 %462
        %v464 = vsel %vm447, %v460, 0.0
        %465 = vadd.xlane.f32.xlu0 %v464
        %v466 = vpop.xlane.xlu0 %465
        %v467 = vmul.f32 %v463, %v454
        %v468 = vmul.f32 %v466, %v454
        %v469 = vadd.f32 %v467, 1e-05
        %v470 = vadd.f32 %v468, 1e-05
        %v471 = vrsqrt.pop %v469
        %v472 = vrsqrt.pop %v470
        %v473 = vmul.f32 %v457, %v471
        %v474 = vmul.f32 %v458, %v472
        %v476 = vlaneseq
        %v477 = vshrl.u32 %v476, 7
        %v478 = vsub.s32 0, %v477
        %v479 = vrot.slane %v445, %v478
        %v481 = vmul.f32 %v473, %v479
        %v482 = vmul.f32 %v474, %v479
        %v484 = vlaneseq
        %v485 = vshrl.u32 %v484, 7
        %v486 = vsub.s32 0, %v485
        %v487 = vrot.slane %v446, %v486
        %v489 = vadd.f32 %v481, %v487
        %v490 = vadd.f32 %v482, %v487
        %v491 = vld [vmem:[#allocation11] sm:$0xff]
        %v492 = vld [vmem:[#allocation11 + $0x8] sm:$0xff]
        %v493 = vld [vmem:[#allocation11 + $0x10] sm:$0xff]
        %v494 = vld [vmem:[#allocation11 + $0x18] sm:$0xff]
        %v496 = vsel %vm447, %v489, 0
        %v499 = vsel %vm447, %v490, 0
        %501 = vmatprep.subr.mxu0 0.0
        %502 = vmatpush1.msra.mxu0 0.0
        %503 = vmatprep.subr.mxu0 0.0
        %504 = vmatpush1.msra.mxu0 0.0
        %505 = vmatprep.subr.mxu0 0.0
        %506 = vmatpush1.msra.mxu0 0.0
        %507 = vmatprep.subr.mxu0 0.0
        %508 = vmatpush1.msra.mxu0 0.0
        %509 = vmatprep.subr.mxu0 0.0
        %510 = vmatpush1.msra.mxu0 0.0
        %511 = vmatprep.subr.mxu0 0.0
        %512 = vmatpush1.msra.mxu0 0.0
        %513 = vmatprep.subr.mxu0 0.0
        %514 = vmatpush1.msra.mxu0 0.0
        %515 = vmatprep.subr.mxu0 0.0
        %516 = vmatpush1.msra.mxu0 0.0
        %517 = vmatprep.subr.mxu0 0.0
        %518 = vmatpush1.msra.mxu0 0.0
        %519 = vmatprep.subr.mxu0 0.0
        %520 = vmatpush1.msra.mxu0 0.0
        %521 = vmatprep.subr.mxu0 0.0
        %522 = vmatpush1.msra.mxu0 0.0
        %523 = vmatprep.subr.mxu0 0.0
        %524 = vmatpush1.msra.mxu0 0.0
        %525 = vmatprep.subr.mxu0 0.0
        %526 = vmatpush1.msra.mxu0 %v494
        %527 = vmatprep.subr.mxu0 0.0
        %528 = vmatpush1.msra.mxu0 %v493
        %529 = vmatprep.subr.mxu0 0.0
        %530 = vmatpush1.msra.mxu0 %v492
        %531 = vmatprep.subr.mxu0 0.0
        %532 = vmatpush1.msra.mxu0 %v491
        %533 = vmatprep.subr.mxu0 0.0
        %534 = vmatpush2.msra.mxu0 0.0
        %535 = vmatprep.subr.mxu0 0.0
        %536 = vmatpush2.msra.mxu0 0.0
        %537 = vmatprep.subr.mxu0 0.0
        %538 = vmatpush2.msra.mxu0 0.0
        %539 = vmatprep.subr.mxu0 0.0
        %540 = vmatpush2.msra.mxu0 0.0
        %541 = vmatprep.subr.mxu0 0.0
        %542 = vmatpush2.msra.mxu0 0.0
        %543 = vmatprep.subr.mxu0 0.0
        %544 = vmatpush2.msra.mxu0 0.0
        %545 = vmatprep.subr.mxu0 0.0
        %546 = vmatpush2.msra.mxu0 0.0
        %547 = vmatprep.subr.mxu0 0.0
        %548 = vmatpush2.msra.mxu0 0.0
        %549 = vmatprep.subr.mxu0 0.0
        %550 = vmatpush2.msra.mxu0 0.0
        %551 = vmatprep.subr.mxu0 0.0
        %552 = vmatpush2.msra.mxu0 0.0
        %553 = vmatprep.subr.mxu0 0.0
        %554 = vmatpush2.msra.mxu0 0.0
        %555 = vmatprep.subr.mxu0 0.0
        %556 = vmatpush2.msra.mxu0 0.0
        %557 = vmatprep.subr.mxu0 0.0
        %558 = vmatpush2.msra.mxu0 0.0
        %559 = vmatprep.subr.mxu0 0.0
        %560 = vmatpush2.msra.mxu0 0.0
        %561 = vmatprep.subr.mxu0 0.0
        %562 = vmatpush2.msra.mxu0 0.0
        %563 = vmatprep.subr.mxu0 0.0
        %564 = vmatpush2.msra.mxu0 0.0
        %565 = vmatprep.mubr.f32.mxu0 0.0
        %566 = vmatmul.mubr.f32.gmra.mxu0 %v496
        %v567 = vpop.f32.mrf.mxu0
        %v568 = vadd.f32 0.0, %v567
        %v569 = vpop.f32.mrf.mxu0
        %570 = vmatprep.mubr.f32.mxu0 0.0
        %571 = vmatmul.mubr.f32.gmra.mxu0 %v499
        %v572 = vpop.f32.mrf.mxu0
        %v573 = vadd.f32 0.0, %v572
        %v574 = vpop.f32.mrf.mxu0
        %575 = vdwg.mxu0
        %576 = vst.msk [vmem:[#allocation2] sm:$0xff] %vm447, %v568
        %577 = vst.msk [vmem:[#allocation2 + $0x8] sm:$0xff] %vm447, %v573
        %v578 = vld [vmem:[#allocation12] sm:$0xff]
        %v579 = vld [vmem:[#allocation12 + $0x8] sm:$0xff]
        %v580 = vld [vmem:[#allocation12 + $0x10] sm:$0xff]
        %v581 = vld [vmem:[#allocation12 + $0x18] sm:$0xff]
        %582 = vmatprep.subr.mxu0 0.0
        %583 = vmatpush1.msra.mxu0 0.0
        %584 = vmatprep.subr.mxu0 0.0
        %585 = vmatpush1.msra.mxu0 0.0
        %586 = vmatprep.subr.mxu0 0.0
        %587 = vmatpush1.msra.mxu0 0.0
        %588 = vmatprep.subr.mxu0 0.0
        %589 = vmatpush1.msra.mxu0 0.0
        %590 = vmatprep.subr.mxu0 0.0
        %591 = vmatpush1.msra.mxu0 0.0
        %592 = vmatprep.subr.mxu0 0.0
        %593 = vmatpush1.msra.mxu0 0.0
        %594 = vmatprep.subr.mxu0 0.0
        %595 = vmatpush1.msra.mxu0 0.0
        %596 = vmatprep.subr.mxu0 0.0
        %597 = vmatpush1.msra.mxu0 0.0
        %598 = vmatprep.subr.mxu0 0.0
        %599 = vmatpush1.msra.mxu0 0.0
        %600 = vmatprep.subr.mxu0 0.0
        %601 = vmatpush1.msra.mxu0 0.0
        %602 = vmatprep.subr.mxu0 0.0
        %603 = vmatpush1.msra.mxu0 0.0
        %604 = vmatprep.subr.mxu0 0.0
        %605 = vmatpush1.msra.mxu0 0.0
        %606 = vmatprep.subr.mxu0 0.0
        %607 = vmatpush1.msra.mxu0 %v581
        %608 = vmatprep.subr.mxu0 0.0
        %609 = vmatpush1.msra.mxu0 %v580
        %610 = vmatprep.subr.mxu0 0.0
        %611 = vmatpush1.msra.mxu0 %v579
        %612 = vmatprep.subr.mxu0 0.0
        %613 = vmatpush1.msra.mxu0 %v578
        %614 = vmatprep.subr.mxu0 0.0
        %615 = vmatpush2.msra.mxu0 0.0
        %616 = vmatprep.subr.mxu0 0.0
        %617 = vmatpush2.msra.mxu0 0.0
        %618 = vmatprep.subr.mxu0 0.0
        %619 = vmatpush2.msra.mxu0 0.0
        %620 = vmatprep.subr.mxu0 0.0
        %621 = vmatpush2.msra.mxu0 0.0
        %622 = vmatprep.subr.mxu0 0.0
        %623 = vmatpush2.msra.mxu0 0.0
        %624 = vmatprep.subr.mxu0 0.0
        %625 = vmatpush2.msra.mxu0 0.0
        %626 = vmatprep.subr.mxu0 0.0
        %627 = vmatpush2.msra.mxu0 0.0
        %628 = vmatprep.subr.mxu0 0.0
        %629 = vmatpush2.msra.mxu0 0.0
        %630 = vmatprep.subr.mxu0 0.0
        %631 = vmatpush2.msra.mxu0 0.0
        %632 = vmatprep.subr.mxu0 0.0
        %633 = vmatpush2.msra.mxu0 0.0
        %634 = vmatprep.subr.mxu0 0.0
        %635 = vmatpush2.msra.mxu0 0.0
        %636 = vmatprep.subr.mxu0 0.0
        %637 = vmatpush2.msra.mxu0 0.0
        %638 = vmatprep.subr.mxu0 0.0
        %639 = vmatpush2.msra.mxu0 0.0
        %640 = vmatprep.subr.mxu0 0.0
        %641 = vmatpush2.msra.mxu0 0.0
        %642 = vmatprep.subr.mxu0 0.0
        %643 = vmatpush2.msra.mxu0 0.0
        %644 = vmatprep.subr.mxu0 0.0
        %645 = vmatpush2.msra.mxu0 0.0
        %646 = vmatprep.mubr.f32.mxu0 0.0
        %647 = vmatmul.mubr.f32.gmra.mxu0 %v496
        %v648 = vpop.f32.mrf.mxu0
        %v649 = vadd.f32 0.0, %v648
        %v650 = vpop.f32.mrf.mxu0
        %651 = vmatprep.mubr.f32.mxu0 0.0
        %652 = vmatmul.mubr.f32.gmra.mxu0 %v499
        %v653 = vpop.f32.mrf.mxu0
        %v654 = vadd.f32 0.0, %v653
        %v655 = vpop.f32.mrf.mxu0
        %656 = vdwg.mxu0
        %657 = vst.msk [vmem:[#allocation3] sm:$0xff] %vm447, %v649
        %658 = vst.msk [vmem:[#allocation3 + $0x8] sm:$0xff] %vm447, %v654
        %v659 = vld [vmem:[#allocation14] sm:$0xff]
        %v660 = vld [vmem:[#allocation14 + $0x8] sm:$0xff]
        %v661 = vld [vmem:[#allocation14 + $0x10] sm:$0xff]
        %v662 = vld [vmem:[#allocation14 + $0x18] sm:$0xff]
        %663 = vmatprep.subr.mxu0 0.0
        %664 = vmatpush1.msra.mxu0 0.0
        %665 = vmatprep.subr.mxu0 0.0
        %666 = vmatpush1.msra.mxu0 0.0
        %667 = vmatprep.subr.mxu0 0.0
        %668 = vmatpush1.msra.mxu0 0.0
        %669 = vmatprep.subr.mxu0 0.0
        %670 = vmatpush1.msra.mxu0 0.0
        %671 = vmatprep.subr.mxu0 0.0
        %672 = vmatpush1.msra.mxu0 0.0
        %673 = vmatprep.subr.mxu0 0.0
        %674 = vmatpush1.msra.mxu0 0.0
        %675 = vmatprep.subr.mxu0 0.0
        %676 = vmatpush1.msra.mxu0 0.0
        %677 = vmatprep.subr.mxu0 0.0
        %678 = vmatpush1.msra.mxu0 0.0
        %679 = vmatprep.subr.mxu0 0.0
        %680 = vmatpush1.msra.mxu0 0.0
        %681 = vmatprep.subr.mxu0 0.0
        %682 = vmatpush1.msra.mxu0 0.0
        %683 = vmatprep.subr.mxu0 0.0
        %684 = vmatpush1.msra.mxu0 0.0
        %685 = vmatprep.subr.mxu0 0.0
        %686 = vmatpush1.msra.mxu0 0.0
        %687 = vmatprep.subr.mxu0 0.0
        %688 = vmatpush1.msra.mxu0 %v662
        %689 = vmatprep.subr.mxu0 0.0
        %690 = vmatpush1.msra.mxu0 %v661
        %691 = vmatprep.subr.mxu0 0.0
        %692 = vmatpush1.msra.mxu0 %v660
        %693 = vmatprep.subr.mxu0 0.0
        %694 = vmatpush1.msra.mxu0 %v659
        %695 = vmatprep.subr.mxu0 0.0
        %696 = vmatpush2.msra.mxu0 0.0
        %697 = vmatprep.subr.mxu0 0.0
        %698 = vmatpush2.msra.mxu0 0.0
        %699 = vmatprep.subr.mxu0 0.0
        %700 = vmatpush2.msra.mxu0 0.0
        %701 = vmatprep.subr.mxu0 0.0
        %702 = vmatpush2.msra.mxu0 0.0
        %703 = vmatprep.subr.mxu0 0.0
        %704 = vmatpush2.msra.mxu0 0.0
        %705 = vmatprep.subr.mxu0 0.0
        %706 = vmatpush2.msra.mxu0 0.0
        %707 = vmatprep.subr.mxu0 0.0
        %708 = vmatpush2.msra.mxu0 0.0
        %709 = vmatprep.subr.mxu0 0.0
        %710 = vmatpush2.msra.mxu0 0.0
        %711 = vmatprep.subr.mxu0 0.0
        %712 = vmatpush2.msra.mxu0 0.0
        %713 = vmatprep.subr.mxu0 0.0
        %714 = vmatpush2.msra.mxu0 0.0
        %715 = vmatprep.subr.mxu0 0.0
        %716 = vmatpush2.msra.mxu0 0.0
        %717 = vmatprep.subr.mxu0 0.0
        %718 = vmatpush2.msra.mxu0 0.0
        %719 = vmatprep.subr.mxu0 0.0
        %720 = vmatpush2.msra.mxu0 0.0
        %721 = vmatprep.subr.mxu0 0.0
        %722 = vmatpush2.msra.mxu0 0.0
        %723 = vmatprep.subr.mxu0 0.0
        %724 = vmatpush2.msra.mxu0 0.0
        %725 = vmatprep.subr.mxu0 0.0
        %726 = vmatpush2.msra.mxu0 0.0
        %727 = vmatprep.mubr.f32.mxu0 0.0
        %728 = vmatmul.mubr.f32.gmra.mxu0 %v496
        %v729 = vpop.f32.mrf.mxu0
        %v730 = vadd.f32 0.0, %v729
        %v731 = vpop.f32.mrf.mxu0
        %732 = vmatprep.mubr.f32.mxu0 0.0
        %733 = vmatmul.mubr.f32.gmra.mxu0 %v499
        %v734 = vpop.f32.mrf.mxu0
        %v735 = vadd.f32 0.0, %v734
        %v736 = vpop.f32.mrf.mxu0
        %737 = vdwg.mxu0
        %738 = vst.msk [vmem:[#allocation4] sm:$0xff] %vm447, %v730
        %739 = vst.msk [vmem:[#allocation4 + $0x8] sm:$0xff] %vm447, %v735
        %v740 = vld [vmem:[%s388] sm:$0x1]
        %vm741 = vcmp.gt.f32.partialorder %v740, 0.5
        %v742 = vsel %vm741, 0.0, -3.4028235e+38
        %v743 = vld [vmem:[#allocation2] sm:$0xff]
        %v744 = vld [vmem:[#allocation2 + $0x8] sm:$0xff]
        %v745 = vld [vmem:[#allocation3] sm:$0xff]
        %v746 = vld [vmem:[#allocation3 + $0x8] sm:$0xff]
        %vm747 = vcmask 64512
        %v748 = vsel %vm747, %v743, 0.0
        %749 = vadd.xlane.f32.xlu0 %v748
        %v750 = vpop.xlane.xlu0 %749
        %v751 = vsel %vm747, %v744, 0.0
        %752 = vadd.xlane.f32.xlu0 %v751
        %v753 = vpop.xlane.xlu0 %752
        %v754 = vrcp.pop 8.0
        %v755 = vmul.f32 %v750, %v754
        %v756 = vmul.f32 %v753, %v754
        %v757 = vsub.f32 %v743, %v755
        %v758 = vsub.f32 %v744, %v756
        %v759 = vsel %vm747, %v745, 0.0
        %760 = vadd.xlane.f32.xlu0 %v759
        %v761 = vpop.xlane.xlu0 %760
        %v762 = vsel %vm747, %v746, 0.0
        %763 = vadd.xlane.f32.xlu0 %v762
        %v764 = vpop.xlane.xlu0 %763
        %v765 = vmul.f32 %v761, %v754
        %v766 = vmul.f32 %v764, %v754
        %v767 = vsub.f32 %v745, %v765
        %v768 = vsub.f32 %v746, %v766
        %v769 = vmul.f32 %v757, %v757
        %v770 = vmul.f32 %v758, %v758
        %v771 = vsel %vm747, %v769, 0.0
        %772 = vadd.xlane.f32.xlu0 %v771
        %v773 = vpop.xlane.xlu0 %772
        %v774 = vsel %vm747, %v770, 0.0
        %775 = vadd.xlane.f32.xlu0 %v774
        %v776 = vpop.xlane.xlu0 %775
        %v777 = vadd.f32 %v773, 1e-12
        %v778 = vadd.f32 %v776, 1e-12
        %v779 = vrsqrt.pop %v777
        %v780 = vrsqrt.pop %v778
        %v781 = vmul.f32 %v757, %v779
        %v782 = vmul.f32 %v758, %v780
        %v783 = vmul.f32 %v767, %v767
        %v784 = vmul.f32 %v768, %v768
        %v785 = vsel %vm747, %v783, 0.0
        %786 = vadd.xlane.f32.xlu0 %v785
        %v787 = vpop.xlane.xlu0 %786
        %v788 = vsel %vm747, %v784, 0.0
        %789 = vadd.xlane.f32.xlu0 %v788
        %v790 = vpop.xlane.xlu0 %789
        %v791 = vadd.f32 %v787, 1e-12
        %v792 = vadd.f32 %v790, 1e-12
        %v793 = vrsqrt.pop %v791
        %v794 = vrsqrt.pop %v792
        %v795 = vmul.f32 %v767, %v793
        %v796 = vmul.f32 %v768, %v794
        %v798 = vlaneseq
        %v799 = vshrl.u32 %v798, 7
        %v800 = vsub.s32 0, %v799
        %v801 = vrot.slane %v742, %v800
        %v804 = vsel %vm747, %v781, 0
        %v807 = vsel %vm747, %v782, 0
        %v810 = vsel %vm747, %v795, 0
        %v813 = vsel %vm747, %v796, 0
        %815 = vmatprep.subr.mxu0 0.0
        %816 = vmatpush1.xpose.msra.mxu0 0.0
        %817 = vmatprep.subr.mxu0 0.0
        %818 = vmatpush1.xpose.msra.mxu0 0.0
        %819 = vmatprep.subr.mxu0 0.0
        %820 = vmatpush1.xpose.msra.mxu0 0.0
        %821 = vmatprep.subr.mxu0 0.0
        %822 = vmatpush1.xpose.msra.mxu0 0.0
        %823 = vmatprep.subr.mxu0 0.0
        %824 = vmatpush1.xpose.msra.mxu0 0.0
        %825 = vmatprep.subr.mxu0 0.0
        %826 = vmatpush1.xpose.msra.mxu0 0.0
        %827 = vmatprep.subr.mxu0 0.0
        %828 = vmatpush1.xpose.msra.mxu0 0.0
        %829 = vmatprep.subr.mxu0 0.0
        %830 = vmatpush1.xpose.msra.mxu0 0.0
        %831 = vmatprep.subr.mxu0 0.0
        %832 = vmatpush1.xpose.msra.mxu0 0.0
        %833 = vmatprep.subr.mxu0 0.0
        %834 = vmatpush1.xpose.msra.mxu0 0.0
        %835 = vmatprep.subr.mxu0 0.0
        %836 = vmatpush1.xpose.msra.mxu0 0.0
        %837 = vmatprep.subr.mxu0 0.0
        %838 = vmatpush1.xpose.msra.mxu0 0.0
        %839 = vmatprep.subr.mxu0 0.0
        %840 = vmatpush1.xpose.msra.mxu0 0.0
        %841 = vmatprep.subr.mxu0 0.0
        %842 = vmatpush1.xpose.msra.mxu0 0.0
        %843 = vmatprep.subr.mxu0 0.0
        %844 = vmatpush1.xpose.msra.mxu0 %v813
        %845 = vmatprep.subr.mxu0 0.0
        %846 = vmatpush1.xpose.msra.mxu0 %v810
        %847 = vmatprep.subr.mxu0 0.0
        %848 = vmatpush2.xpose.msra.mxu0 0.0
        %849 = vmatprep.subr.mxu0 0.0
        %850 = vmatpush2.xpose.msra.mxu0 0.0
        %851 = vmatprep.subr.mxu0 0.0
        %852 = vmatpush2.xpose.msra.mxu0 0.0
        %853 = vmatprep.subr.mxu0 0.0
        %854 = vmatpush2.xpose.msra.mxu0 0.0
        %855 = vmatprep.subr.mxu0 0.0
        %856 = vmatpush2.xpose.msra.mxu0 0.0
        %857 = vmatprep.subr.mxu0 0.0
        %858 = vmatpush2.xpose.msra.mxu0 0.0
        %859 = vmatprep.subr.mxu0 0.0
        %860 = vmatpush2.xpose.msra.mxu0 0.0
        %861 = vmatprep.subr.mxu0 0.0
        %862 = vmatpush2.xpose.msra.mxu0 0.0
        %863 = vmatprep.subr.mxu0 0.0
        %864 = vmatpush2.xpose.msra.mxu0 0.0
        %865 = vmatprep.subr.mxu0 0.0
        %866 = vmatpush2.xpose.msra.mxu0 0.0
        %867 = vmatprep.subr.mxu0 0.0
        %868 = vmatpush2.xpose.msra.mxu0 0.0
        %869 = vmatprep.subr.mxu0 0.0
        %870 = vmatpush2.xpose.msra.mxu0 0.0
        %871 = vmatprep.subr.mxu0 0.0
        %872 = vmatpush2.xpose.msra.mxu0 0.0
        %873 = vmatprep.subr.mxu0 0.0
        %874 = vmatpush2.xpose.msra.mxu0 0.0
        %875 = vmatprep.subr.mxu0 0.0
        %876 = vmatpush2.xpose.msra.mxu0 0.0
        %877 = vmatprep.subr.mxu0 0.0
        %878 = vmatpush2.xpose.msra.mxu0 0.0
        %879 = vmatprep.mubr.f32.mxu0 0.0
        %880 = vmatmul.mubr.f32.gmra.mxu0 %v804
        %v881 = vpop.f32.mrf.mxu0
        %v882 = vadd.f32 %v801, %v881
        %v883 = vpop.f32.mrf.mxu0
        %884 = vmatprep.mubr.f32.mxu0 0.0
        %885 = vmatmul.mubr.f32.gmra.mxu0 %v807
        %v886 = vpop.f32.mrf.mxu0
        %v887 = vadd.f32 %v801, %v886
        %v888 = vpop.f32.mrf.mxu0
        %889 = vdwg.mxu0
        %vm890 = vcmask 130048
        %v891 = vsel %vm890, %v882, -inf
        %892 = vmax.xlane.f32.xlu0 %v891
        %v893 = vpop.xlane.xlu0 %892
        %v894 = vsel %vm890, %v887, -inf
        %895 = vmax.xlane.f32.xlu0 %v894
        %v896 = vpop.xlane.xlu0 %895
        %v897 = vsub.f32 %v882, %v893
        %v898 = vsub.f32 %v887, %v896
        %v899 = vmul.f32 %v897, 1.442695
        %v900 = vpow.pop %v899
        %v901 = vmul.f32 %v898, 1.442695
        %v902 = vpow.pop %v901
        %v903 = vsel %vm890, %v900, 0.0
        %904 = vadd.xlane.f32.xlu0 %v903
        %v905 = vpop.xlane.xlu0 %904
        %v906 = vsel %vm890, %v902, 0.0
        %907 = vadd.xlane.f32.xlu0 %v906
        %v908 = vpop.xlane.xlu0 %907
        %v909 = vrcp.pop %v905
        %v910 = vrcp.pop %v908
        %v911 = vmul.f32 %v900, %v909
        %v912 = vmul.f32 %v902, %v910
        %v913 = vld [vmem:[#allocation4] sm:$0xff]
        %v914 = vld [vmem:[#allocation4 + $0x8] sm:$0xff]
        %v916 = vsel %vm890, %v911, 0
        %v919 = vsel %vm890, %v912, 0
        %921 = vmatprep.subr.mxu0 0.0
        %922 = vmatpush1.msra.mxu0 0.0
        %923 = vmatprep.subr.mxu0 0.0
        %924 = vmatpush1.msra.mxu0 0.0
        %925 = vmatprep.subr.mxu0 0.0
        %926 = vmatpush1.msra.mxu0 0.0
        %927 = vmatprep.subr.mxu0 0.0
        %928 = vmatpush1.msra.mxu0 0.0
        %929 = vmatprep.subr.mxu0 0.0
        %930 = vmatpush1.msra.mxu0 0.0
        %931 = vmatprep.subr.mxu0 0.0
        %932 = vmatpush1.msra.mxu0 0.0
        %933 = vmatprep.subr.mxu0 0.0
        %934 = vmatpush1.msra.mxu0 0.0
        %935 = vmatprep.subr.mxu0 0.0
        %936 = vmatpush1.msra.mxu0 0.0
        %937 = vmatprep.subr.mxu0 0.0
        %938 = vmatpush1.msra.mxu0 0.0
        %939 = vmatprep.subr.mxu0 0.0
        %940 = vmatpush1.msra.mxu0 0.0
        %941 = vmatprep.subr.mxu0 0.0
        %942 = vmatpush1.msra.mxu0 0.0
        %943 = vmatprep.subr.mxu0 0.0
        %944 = vmatpush1.msra.mxu0 0.0
        %945 = vmatprep.subr.mxu0 0.0
        %946 = vmatpush1.msra.mxu0 0.0
        %947 = vmatprep.subr.mxu0 0.0
        %948 = vmatpush1.msra.mxu0 0.0
        %949 = vmatprep.subr.mxu0 0.0
        %950 = vmatpush1.msra.mxu0 %v914
        %951 = vmatprep.subr.mxu0 0.0
        %952 = vmatpush1.msra.mxu0 %v913
        %953 = vmatprep.subr.mxu0 0.0
        %954 = vmatpush2.msra.mxu0 0.0
        %955 = vmatprep.subr.mxu0 0.0
        %956 = vmatpush2.msra.mxu0 0.0
        %957 = vmatprep.subr.mxu0 0.0
        %958 = vmatpush2.msra.mxu0 0.0
        %959 = vmatprep.subr.mxu0 0.0
        %960 = vmatpush2.msra.mxu0 0.0
        %961 = vmatprep.subr.mxu0 0.0
        %962 = vmatpush2.msra.mxu0 0.0
        %963 = vmatprep.subr.mxu0 0.0
        %964 = vmatpush2.msra.mxu0 0.0
        %965 = vmatprep.subr.mxu0 0.0
        %966 = vmatpush2.msra.mxu0 0.0
        %967 = vmatprep.subr.mxu0 0.0
        %968 = vmatpush2.msra.mxu0 0.0
        %969 = vmatprep.subr.mxu0 0.0
        %970 = vmatpush2.msra.mxu0 0.0
        %971 = vmatprep.subr.mxu0 0.0
        %972 = vmatpush2.msra.mxu0 0.0
        %973 = vmatprep.subr.mxu0 0.0
        %974 = vmatpush2.msra.mxu0 0.0
        %975 = vmatprep.subr.mxu0 0.0
        %976 = vmatpush2.msra.mxu0 0.0
        %977 = vmatprep.subr.mxu0 0.0
        %978 = vmatpush2.msra.mxu0 0.0
        %979 = vmatprep.subr.mxu0 0.0
        %980 = vmatpush2.msra.mxu0 0.0
        %981 = vmatprep.subr.mxu0 0.0
        %982 = vmatpush2.msra.mxu0 0.0
        %983 = vmatprep.subr.mxu0 0.0
        %984 = vmatpush2.msra.mxu0 0.0
        %985 = vmatprep.mubr.f32.mxu0 0.0
        %986 = vmatmul.mubr.f32.gmra.mxu0 %v916
        %v987 = vpop.f32.mrf.mxu0
        %v988 = vadd.f32 0.0, %v987
        %v989 = vpop.f32.mrf.mxu0
        %990 = vmatprep.mubr.f32.mxu0 0.0
        %991 = vmatmul.mubr.f32.gmra.mxu0 %v919
        %v992 = vpop.f32.mrf.mxu0
        %v993 = vadd.f32 0.0, %v992
        %v994 = vpop.f32.mrf.mxu0
        %995 = vdwg.mxu0
        %996 = vst.msk [vmem:[#allocation5] sm:$0xff] %vm747, %v988
        %997 = vst.msk [vmem:[#allocation5 + $0x8] sm:$0xff] %vm747, %v993
        %v998 = vld [vmem:[#allocation2] sm:$0xff]
        %v999 = vld [vmem:[#allocation2 + $0x8] sm:$0xff]
        %v1000 = vld [vmem:[#allocation3] sm:$0xff]
        %v1001 = vld [vmem:[#allocation3 + $0x8] sm:$0xff]
        %1004 = vrot.lane.b32.xlu0 %v998, 120
        %v1005 = vpop.permute.xlu0 %1004
        %1006 = vrot.lane.b32.xlu0 %v999, 120
        %v1007 = vpop.permute.xlu0 %1006
        %v1010 = vsel %vm747, %v1005, 0.0
        %1011 = vadd.xlane.f32.xlu0 %v1010
        %v1012 = vpop.xlane.xlu0 %1011
        %v1013 = vsel %vm747, %v1007, 0.0
        %1014 = vadd.xlane.f32.xlu0 %v1013
        %v1015 = vpop.xlane.xlu0 %1014
        %v1016 = vmul.f32 %v1012, %v754
        %v1017 = vmul.f32 %v1015, %v754
        %v1018 = vsub.f32 %v998, %v1016
        %v1019 = vsub.f32 %v999, %v1017
        %1022 = vrot.lane.b32.xlu0 %v1000, 120
        %v1023 = vpop.permute.xlu0 %1022
        %1024 = vrot.lane.b32.xlu0 %v1001, 120
        %v1025 = vpop.permute.xlu0 %1024
        %v1028 = vsel %vm747, %v1023, 0.0
        %1029 = vadd.xlane.f32.xlu0 %v1028
        %v1030 = vpop.xlane.xlu0 %1029
        %v1031 = vsel %vm747, %v1025, 0.0
        %1032 = vadd.xlane.f32.xlu0 %v1031
        %v1033 = vpop.xlane.xlu0 %1032
        %v1034 = vmul.f32 %v1030, %v754
        %v1035 = vmul.f32 %v1033, %v754
        %v1036 = vsub.f32 %v1000, %v1034
        %v1037 = vsub.f32 %v1001, %v1035
        %v1038 = vmul.f32 %v1018, %v1018
        %v1039 = vmul.f32 %v1019, %v1019
        %1042 = vrot.lane.b32.xlu0 %v1038, 120
        %v1043 = vpop.permute.xlu0 %1042
        %1044 = vrot.lane.b32.xlu0 %v1039, 120
        %v1045 = vpop.permute.xlu0 %1044
        %v1048 = vsel %vm747, %v1043, 0.0
        %1049 = vadd.xlane.f32.xlu0 %v1048
        %v1050 = vpop.xlane.xlu0 %1049
        %v1051 = vsel %vm747, %v1045, 0.0
        %1052 = vadd.xlane.f32.xlu0 %v1051
        %v1053 = vpop.xlane.xlu0 %1052
        %v1054 = vadd.f32 %v1050, 1e-12
        %v1055 = vadd.f32 %v1053, 1e-12
        %v1056 = vrsqrt.pop %v1054
        %v1057 = vrsqrt.pop %v1055
        %v1058 = vmul.f32 %v1018, %v1056
        %v1059 = vmul.f32 %v1019, %v1057
        %v1060 = vmul.f32 %v1036, %v1036
        %v1061 = vmul.f32 %v1037, %v1037
        %1064 = vrot.lane.b32.xlu0 %v1060, 120
        %v1065 = vpop.permute.xlu0 %1064
        %1066 = vrot.lane.b32.xlu0 %v1061, 120
        %v1067 = vpop.permute.xlu0 %1066
        %v1070 = vsel %vm747, %v1065, 0.0
        %1071 = vadd.xlane.f32.xlu0 %v1070
        %v1072 = vpop.xlane.xlu0 %1071
        %v1073 = vsel %vm747, %v1067, 0.0
        %1074 = vadd.xlane.f32.xlu0 %v1073
        %v1075 = vpop.xlane.xlu0 %1074
        %v1076 = vadd.f32 %v1072, 1e-12
        %v1077 = vadd.f32 %v1075, 1e-12
        %v1078 = vrsqrt.pop %v1076
        %v1079 = vrsqrt.pop %v1077
        %v1080 = vmul.f32 %v1036, %v1078
        %v1081 = vmul.f32 %v1037, %v1079
        %1084 = vrot.lane.b32.xlu0 %v1058, 120
        %v1085 = vpop.permute.xlu0 %1084
        %1086 = vrot.lane.b32.xlu0 %v1059, 120
        %v1087 = vpop.permute.xlu0 %1086
        %1090 = vrot.lane.b32.xlu0 %v1080, 120
        %v1091 = vpop.permute.xlu0 %1090
        %1092 = vrot.lane.b32.xlu0 %v1081, 120
        %v1093 = vpop.permute.xlu0 %1092
        %v1094 = vsel %vm747, %v1085, 0
        %v1096 = vsel %vm747, %v1087, 0
        %v1098 = vsel %vm747, %v1091, 0
        %v1100 = vsel %vm747, %v1093, 0
        %1102 = vmatprep.subr.mxu0 0.0
        %1103 = vmatpush1.xpose.msra.mxu0 0.0
        %1104 = vmatprep.subr.mxu0 0.0
        %1105 = vmatpush1.xpose.msra.mxu0 0.0
        %1106 = vmatprep.subr.mxu0 0.0
        %1107 = vmatpush1.xpose.msra.mxu0 0.0
        %1108 = vmatprep.subr.mxu0 0.0
        %1109 = vmatpush1.xpose.msra.mxu0 0.0
        %1110 = vmatprep.subr.mxu0 0.0
        %1111 = vmatpush1.xpose.msra.mxu0 0.0
        %1112 = vmatprep.subr.mxu0 0.0
        %1113 = vmatpush1.xpose.msra.mxu0 0.0
        %1114 = vmatprep.subr.mxu0 0.0
        %1115 = vmatpush1.xpose.msra.mxu0 0.0
        %1116 = vmatprep.subr.mxu0 0.0
        %1117 = vmatpush1.xpose.msra.mxu0 0.0
        %1118 = vmatprep.subr.mxu0 0.0
        %1119 = vmatpush1.xpose.msra.mxu0 0.0
        %1120 = vmatprep.subr.mxu0 0.0
        %1121 = vmatpush1.xpose.msra.mxu0 0.0
        %1122 = vmatprep.subr.mxu0 0.0
        %1123 = vmatpush1.xpose.msra.mxu0 0.0
        %1124 = vmatprep.subr.mxu0 0.0
        %1125 = vmatpush1.xpose.msra.mxu0 0.0
        %1126 = vmatprep.subr.mxu0 0.0
        %1127 = vmatpush1.xpose.msra.mxu0 0.0
        %1128 = vmatprep.subr.mxu0 0.0
        %1129 = vmatpush1.xpose.msra.mxu0 0.0
        %1130 = vmatprep.subr.mxu0 0.0
        %1131 = vmatpush1.xpose.msra.mxu0 %v1100
        %1132 = vmatprep.subr.mxu0 0.0
        %1133 = vmatpush1.xpose.msra.mxu0 %v1098
        %1134 = vmatprep.subr.mxu0 0.0
        %1135 = vmatpush2.xpose.msra.mxu0 0.0
        %1136 = vmatprep.subr.mxu0 0.0
        %1137 = vmatpush2.xpose.msra.mxu0 0.0
        %1138 = vmatprep.subr.mxu0 0.0
        %1139 = vmatpush2.xpose.msra.mxu0 0.0
        %1140 = vmatprep.subr.mxu0 0.0
        %1141 = vmatpush2.xpose.msra.mxu0 0.0
        %1142 = vmatprep.subr.mxu0 0.0
        %1143 = vmatpush2.xpose.msra.mxu0 0.0
        %1144 = vmatprep.subr.mxu0 0.0
        %1145 = vmatpush2.xpose.msra.mxu0 0.0
        %1146 = vmatprep.subr.mxu0 0.0
        %1147 = vmatpush2.xpose.msra.mxu0 0.0
        %1148 = vmatprep.subr.mxu0 0.0
        %1149 = vmatpush2.xpose.msra.mxu0 0.0
        %1150 = vmatprep.subr.mxu0 0.0
        %1151 = vmatpush2.xpose.msra.mxu0 0.0
        %1152 = vmatprep.subr.mxu0 0.0
        %1153 = vmatpush2.xpose.msra.mxu0 0.0
        %1154 = vmatprep.subr.mxu0 0.0
        %1155 = vmatpush2.xpose.msra.mxu0 0.0
        %1156 = vmatprep.subr.mxu0 0.0
        %1157 = vmatpush2.xpose.msra.mxu0 0.0
        %1158 = vmatprep.subr.mxu0 0.0
        %1159 = vmatpush2.xpose.msra.mxu0 0.0
        %1160 = vmatprep.subr.mxu0 0.0
        %1161 = vmatpush2.xpose.msra.mxu0 0.0
        %1162 = vmatprep.subr.mxu0 0.0
        %1163 = vmatpush2.xpose.msra.mxu0 0.0
        %1164 = vmatprep.subr.mxu0 0.0
        %1165 = vmatpush2.xpose.msra.mxu0 0.0
        %1166 = vmatprep.mubr.f32.mxu0 0.0
        %1167 = vmatmul.mubr.f32.gmra.mxu0 %v1094
        %v1168 = vpop.f32.mrf.mxu0
        %v1169 = vadd.f32 %v801, %v1168
        %v1170 = vpop.f32.mrf.mxu0
        %1171 = vmatprep.mubr.f32.mxu0 0.0
        %1172 = vmatmul.mubr.f32.gmra.mxu0 %v1096
        %v1173 = vpop.f32.mrf.mxu0
        %v1174 = vadd.f32 %v801, %v1173
        %v1175 = vpop.f32.mrf.mxu0
        %1176 = vdwg.mxu0
        %v1177 = vsel %vm890, %v1169, -inf
        %1178 = vmax.xlane.f32.xlu0 %v1177
        %v1179 = vpop.xlane.xlu0 %1178
        %v1180 = vsel %vm890, %v1174, -inf
        %1181 = vmax.xlane.f32.xlu0 %v1180
        %v1182 = vpop.xlane.xlu0 %1181
        %v1183 = vsub.f32 %v1169, %v1179
        %v1184 = vsub.f32 %v1174, %v1182
        %v1185 = vmul.f32 %v1183, 1.442695
        %v1186 = vpow.pop %v1185
        %v1187 = vmul.f32 %v1184, 1.442695
        %v1188 = vpow.pop %v1187
        %v1189 = vsel %vm890, %v1186, 0.0
        %1190 = vadd.xlane.f32.xlu0 %v1189
        %v1191 = vpop.xlane.xlu0 %1190
        %v1192 = vsel %vm890, %v1188, 0.0
        %1193 = vadd.xlane.f32.xlu0 %v1192
        %v1194 = vpop.xlane.xlu0 %1193
        %v1195 = vrcp.pop %v1191
        %v1196 = vrcp.pop %v1194
        %v1197 = vmul.f32 %v1186, %v1195
        %v1198 = vmul.f32 %v1188, %v1196
        %v1199 = vld [vmem:[#allocation4] sm:$0xff]
        %v1200 = vld [vmem:[#allocation4 + $0x8] sm:$0xff]
        %1203 = vrot.lane.b32.xlu0 %v1199, 120
        %v1204 = vpop.permute.xlu0 %1203
        %1205 = vrot.lane.b32.xlu0 %v1200, 120
        %v1206 = vpop.permute.xlu0 %1205
        %v1210 = vsel %vm890, %v1197, 0
        %v1213 = vsel %vm890, %v1198, 0
        %1215 = vmatprep.subr.mxu0 0.0
        %1216 = vmatpush1.msra.mxu0 0.0
        %1217 = vmatprep.subr.mxu0 0.0
        %1218 = vmatpush1.msra.mxu0 0.0
        %1219 = vmatprep.subr.mxu0 0.0
        %1220 = vmatpush1.msra.mxu0 0.0
        %1221 = vmatprep.subr.mxu0 0.0
        %1222 = vmatpush1.msra.mxu0 0.0
        %1223 = vmatprep.subr.mxu0 0.0
        %1224 = vmatpush1.msra.mxu0 0.0
        %1225 = vmatprep.subr.mxu0 0.0
        %1226 = vmatpush1.msra.mxu0 0.0
        %1227 = vmatprep.subr.mxu0 0.0
        %1228 = vmatpush1.msra.mxu0 0.0
        %1229 = vmatprep.subr.mxu0 0.0
        %1230 = vmatpush1.msra.mxu0 0.0
        %1231 = vmatprep.subr.mxu0 0.0
        %1232 = vmatpush1.msra.mxu0 0.0
        %1233 = vmatprep.subr.mxu0 0.0
        %1234 = vmatpush1.msra.mxu0 0.0
        %1235 = vmatprep.subr.mxu0 0.0
        %1236 = vmatpush1.msra.mxu0 0.0
        %1237 = vmatprep.subr.mxu0 0.0
        %1238 = vmatpush1.msra.mxu0 0.0
        %1239 = vmatprep.subr.mxu0 0.0
        %1240 = vmatpush1.msra.mxu0 0.0
        %1241 = vmatprep.subr.mxu0 0.0
        %1242 = vmatpush1.msra.mxu0 0.0
        %1243 = vmatprep.subr.mxu0 0.0
        %1244 = vmatpush1.msra.mxu0 %v1206
        %1245 = vmatprep.subr.mxu0 0.0
        %1246 = vmatpush1.msra.mxu0 %v1204
        %1247 = vmatprep.subr.mxu0 0.0
        %1248 = vmatpush2.msra.mxu0 0.0
        %1249 = vmatprep.subr.mxu0 0.0
        %1250 = vmatpush2.msra.mxu0 0.0
        %1251 = vmatprep.subr.mxu0 0.0
        %1252 = vmatpush2.msra.mxu0 0.0
        %1253 = vmatprep.subr.mxu0 0.0
        %1254 = vmatpush2.msra.mxu0 0.0
        %1255 = vmatprep.subr.mxu0 0.0
        %1256 = vmatpush2.msra.mxu0 0.0
        %1257 = vmatprep.subr.mxu0 0.0
        %1258 = vmatpush2.msra.mxu0 0.0
        %1259 = vmatprep.subr.mxu0 0.0
        %1260 = vmatpush2.msra.mxu0 0.0
        %1261 = vmatprep.subr.mxu0 0.0
        %1262 = vmatpush2.msra.mxu0 0.0
        %1263 = vmatprep.subr.mxu0 0.0
        %1264 = vmatpush2.msra.mxu0 0.0
        %1265 = vmatprep.subr.mxu0 0.0
        %1266 = vmatpush2.msra.mxu0 0.0
        %1267 = vmatprep.subr.mxu0 0.0
        %1268 = vmatpush2.msra.mxu0 0.0
        %1269 = vmatprep.subr.mxu0 0.0
        %1270 = vmatpush2.msra.mxu0 0.0
        %1271 = vmatprep.subr.mxu0 0.0
        %1272 = vmatpush2.msra.mxu0 0.0
        %1273 = vmatprep.subr.mxu0 0.0
        %1274 = vmatpush2.msra.mxu0 0.0
        %1275 = vmatprep.subr.mxu0 0.0
        %1276 = vmatpush2.msra.mxu0 0.0
        %1277 = vmatprep.subr.mxu0 0.0
        %1278 = vmatpush2.msra.mxu0 0.0
        %1279 = vmatprep.mubr.f32.mxu0 0.0
        %1280 = vmatmul.mubr.f32.gmra.mxu0 %v1210
        %v1281 = vpop.f32.mrf.mxu0
        %v1282 = vadd.f32 0.0, %v1281
        %v1283 = vpop.f32.mrf.mxu0
        %1284 = vmatprep.mubr.f32.mxu0 0.0
        %1285 = vmatmul.mubr.f32.gmra.mxu0 %v1213
        %v1286 = vpop.f32.mrf.mxu0
        %v1287 = vadd.f32 0.0, %v1286
        %v1288 = vpop.f32.mrf.mxu0
        %1289 = vdwg.mxu0
        %1292 = vrot.lane.b32.xlu0 %v1282, 8
        %v1293 = vpop.permute.xlu0 %1292
        %1294 = vrot.lane.b32.xlu0 %v1287, 8
        %v1295 = vpop.permute.xlu0 %1294
        %vm1298 = vcmask 130112
        %1299 = vst.msk [vmem:[#allocation5] sm:$0xff] %vm1298, %v1293
        %1300 = vst.msk [vmem:[#allocation5 + $0x8] sm:$0xff] %vm1298, %v1295
        %v1301 = vld [vmem:[#allocation2] sm:$0xff]
        %v1302 = vld [vmem:[#allocation2 + $0x8] sm:$0xff]
        %v1303 = vld [vmem:[#allocation3] sm:$0xff]
        %v1304 = vld [vmem:[#allocation3 + $0x8] sm:$0xff]
        %1307 = vrot.lane.b32.xlu0 %v1301, 112
        %v1308 = vpop.permute.xlu0 %1307
        %1309 = vrot.lane.b32.xlu0 %v1302, 112
        %v1310 = vpop.permute.xlu0 %1309
        %v1313 = vsel %vm747, %v1308, 0.0
        %1314 = vadd.xlane.f32.xlu0 %v1313
        %v1315 = vpop.xlane.xlu0 %1314
        %v1316 = vsel %vm747, %v1310, 0.0
        %1317 = vadd.xlane.f32.xlu0 %v1316
        %v1318 = vpop.xlane.xlu0 %1317
        %v1319 = vmul.f32 %v1315, %v754
        %v1320 = vmul.f32 %v1318, %v754
        %v1321 = vsub.f32 %v1301, %v1319
        %v1322 = vsub.f32 %v1302, %v1320
        %1325 = vrot.lane.b32.xlu0 %v1303, 112
        %v1326 = vpop.permute.xlu0 %1325
        %1327 = vrot.lane.b32.xlu0 %v1304, 112
        %v1328 = vpop.permute.xlu0 %1327
        %v1331 = vsel %vm747, %v1326, 0.0
        %1332 = vadd.xlane.f32.xlu0 %v1331
        %v1333 = vpop.xlane.xlu0 %1332
        %v1334 = vsel %vm747, %v1328, 0.0
        %1335 = vadd.xlane.f32.xlu0 %v1334
        %v1336 = vpop.xlane.xlu0 %1335
        %v1337 = vmul.f32 %v1333, %v754
        %v1338 = vmul.f32 %v1336, %v754
        %v1339 = vsub.f32 %v1303, %v1337
        %v1340 = vsub.f32 %v1304, %v1338
        %v1341 = vmul.f32 %v1321, %v1321
        %v1342 = vmul.f32 %v1322, %v1322
        %1345 = vrot.lane.b32.xlu0 %v1341, 112
        %v1346 = vpop.permute.xlu0 %1345
        %1347 = vrot.lane.b32.xlu0 %v1342, 112
        %v1348 = vpop.permute.xlu0 %1347
        %v1351 = vsel %vm747, %v1346, 0.0
        %1352 = vadd.xlane.f32.xlu0 %v1351
        %v1353 = vpop.xlane.xlu0 %1352
        %v1354 = vsel %vm747, %v1348, 0.0
        %1355 = vadd.xlane.f32.xlu0 %v1354
        %v1356 = vpop.xlane.xlu0 %1355
        %v1357 = vadd.f32 %v1353, 1e-12
        %v1358 = vadd.f32 %v1356, 1e-12
        %v1359 = vrsqrt.pop %v1357
        %v1360 = vrsqrt.pop %v1358
        %v1361 = vmul.f32 %v1321, %v1359
        %v1362 = vmul.f32 %v1322, %v1360
        %v1363 = vmul.f32 %v1339, %v1339
        %v1364 = vmul.f32 %v1340, %v1340
        %1367 = vrot.lane.b32.xlu0 %v1363, 112
        %v1368 = vpop.permute.xlu0 %1367
        %1369 = vrot.lane.b32.xlu0 %v1364, 112
        %v1370 = vpop.permute.xlu0 %1369
        %v1373 = vsel %vm747, %v1368, 0.0
        %1374 = vadd.xlane.f32.xlu0 %v1373
        %v1375 = vpop.xlane.xlu0 %1374
        %v1376 = vsel %vm747, %v1370, 0.0
        %1377 = vadd.xlane.f32.xlu0 %v1376
        %v1378 = vpop.xlane.xlu0 %1377
        %v1379 = vadd.f32 %v1375, 1e-12
        %v1380 = vadd.f32 %v1378, 1e-12
        %v1381 = vrsqrt.pop %v1379
        %v1382 = vrsqrt.pop %v1380
        %v1383 = vmul.f32 %v1339, %v1381
        %v1384 = vmul.f32 %v1340, %v1382
        %1387 = vrot.lane.b32.xlu0 %v1361, 112
        %v1388 = vpop.permute.xlu0 %1387
        %1389 = vrot.lane.b32.xlu0 %v1362, 112
        %v1390 = vpop.permute.xlu0 %1389
        %1393 = vrot.lane.b32.xlu0 %v1383, 112
        %v1394 = vpop.permute.xlu0 %1393
        %1395 = vrot.lane.b32.xlu0 %v1384, 112
        %v1396 = vpop.permute.xlu0 %1395
        %v1397 = vsel %vm747, %v1388, 0
        %v1399 = vsel %vm747, %v1390, 0
        %v1401 = vsel %vm747, %v1394, 0
        %v1403 = vsel %vm747, %v1396, 0
        %1405 = vmatprep.subr.mxu0 0.0
        %1406 = vmatpush1.xpose.msra.mxu0 0.0
        %1407 = vmatprep.subr.mxu0 0.0
        %1408 = vmatpush1.xpose.msra.mxu0 0.0
        %1409 = vmatprep.subr.mxu0 0.0
        %1410 = vmatpush1.xpose.msra.mxu0 0.0
        %1411 = vmatprep.subr.mxu0 0.0
        %1412 = vmatpush1.xpose.msra.mxu0 0.0
        %1413 = vmatprep.subr.mxu0 0.0
        %1414 = vmatpush1.xpose.msra.mxu0 0.0
        %1415 = vmatprep.subr.mxu0 0.0
        %1416 = vmatpush1.xpose.msra.mxu0 0.0
        %1417 = vmatprep.subr.mxu0 0.0
        %1418 = vmatpush1.xpose.msra.mxu0 0.0
        %1419 = vmatprep.subr.mxu0 0.0
        %1420 = vmatpush1.xpose.msra.mxu0 0.0
        %1421 = vmatprep.subr.mxu0 0.0
        %1422 = vmatpush1.xpose.msra.mxu0 0.0
        %1423 = vmatprep.subr.mxu0 0.0
        %1424 = vmatpush1.xpose.msra.mxu0 0.0
        %1425 = vmatprep.subr.mxu0 0.0
        %1426 = vmatpush1.xpose.msra.mxu0 0.0
        %1427 = vmatprep.subr.mxu0 0.0
        %1428 = vmatpush1.xpose.msra.mxu0 0.0
        %1429 = vmatprep.subr.mxu0 0.0
        %1430 = vmatpush1.xpose.msra.mxu0 0.0
        %1431 = vmatprep.subr.mxu0 0.0
        %1432 = vmatpush1.xpose.msra.mxu0 0.0
        %1433 = vmatprep.subr.mxu0 0.0
        %1434 = vmatpush1.xpose.msra.mxu0 %v1403
        %1435 = vmatprep.subr.mxu0 0.0
        %1436 = vmatpush1.xpose.msra.mxu0 %v1401
        %1437 = vmatprep.subr.mxu0 0.0
        %1438 = vmatpush2.xpose.msra.mxu0 0.0
        %1439 = vmatprep.subr.mxu0 0.0
        %1440 = vmatpush2.xpose.msra.mxu0 0.0
        %1441 = vmatprep.subr.mxu0 0.0
        %1442 = vmatpush2.xpose.msra.mxu0 0.0
        %1443 = vmatprep.subr.mxu0 0.0
        %1444 = vmatpush2.xpose.msra.mxu0 0.0
        %1445 = vmatprep.subr.mxu0 0.0
        %1446 = vmatpush2.xpose.msra.mxu0 0.0
        %1447 = vmatprep.subr.mxu0 0.0
        %1448 = vmatpush2.xpose.msra.mxu0 0.0
        %1449 = vmatprep.subr.mxu0 0.0
        %1450 = vmatpush2.xpose.msra.mxu0 0.0
        %1451 = vmatprep.subr.mxu0 0.0
        %1452 = vmatpush2.xpose.msra.mxu0 0.0
        %1453 = vmatprep.subr.mxu0 0.0
        %1454 = vmatpush2.xpose.msra.mxu0 0.0
        %1455 = vmatprep.subr.mxu0 0.0
        %1456 = vmatpush2.xpose.msra.mxu0 0.0
        %1457 = vmatprep.subr.mxu0 0.0
        %1458 = vmatpush2.xpose.msra.mxu0 0.0
        %1459 = vmatprep.subr.mxu0 0.0
        %1460 = vmatpush2.xpose.msra.mxu0 0.0
        %1461 = vmatprep.subr.mxu0 0.0
        %1462 = vmatpush2.xpose.msra.mxu0 0.0
        %1463 = vmatprep.subr.mxu0 0.0
        %1464 = vmatpush2.xpose.msra.mxu0 0.0
        %1465 = vmatprep.subr.mxu0 0.0
        %1466 = vmatpush2.xpose.msra.mxu0 0.0
        %1467 = vmatprep.subr.mxu0 0.0
        %1468 = vmatpush2.xpose.msra.mxu0 0.0
        %1469 = vmatprep.mubr.f32.mxu0 0.0
        %1470 = vmatmul.mubr.f32.gmra.mxu0 %v1397
        %v1471 = vpop.f32.mrf.mxu0
        %v1472 = vadd.f32 %v801, %v1471
        %v1473 = vpop.f32.mrf.mxu0
        %1474 = vmatprep.mubr.f32.mxu0 0.0
        %1475 = vmatmul.mubr.f32.gmra.mxu0 %v1399
        %v1476 = vpop.f32.mrf.mxu0
        %v1477 = vadd.f32 %v801, %v1476
        %v1478 = vpop.f32.mrf.mxu0
        %1479 = vdwg.mxu0
        %v1480 = vsel %vm890, %v1472, -inf
        %1481 = vmax.xlane.f32.xlu0 %v1480
        %v1482 = vpop.xlane.xlu0 %1481
        %v1483 = vsel %vm890, %v1477, -inf
        %1484 = vmax.xlane.f32.xlu0 %v1483
        %v1485 = vpop.xlane.xlu0 %1484
        %v1486 = vsub.f32 %v1472, %v1482
        %v1487 = vsub.f32 %v1477, %v1485
        %v1488 = vmul.f32 %v1486, 1.442695
        %v1489 = vpow.pop %v1488
        %v1490 = vmul.f32 %v1487, 1.442695
        %v1491 = vpow.pop %v1490
        %v1492 = vsel %vm890, %v1489, 0.0
        %1493 = vadd.xlane.f32.xlu0 %v1492
        %v1494 = vpop.xlane.xlu0 %1493
        %v1495 = vsel %vm890, %v1491, 0.0
        %1496 = vadd.xlane.f32.xlu0 %v1495
        %v1497 = vpop.xlane.xlu0 %1496
        %v1498 = vrcp.pop %v1494
        %v1499 = vrcp.pop %v1497
        %v1500 = vmul.f32 %v1489, %v1498
        %v1501 = vmul.f32 %v1491, %v1499
        %v1502 = vld [vmem:[#allocation4] sm:$0xff]
        %v1503 = vld [vmem:[#allocation4 + $0x8] sm:$0xff]
        %1506 = vrot.lane.b32.xlu0 %v1502, 112
        %v1507 = vpop.permute.xlu0 %1506
        %1508 = vrot.lane.b32.xlu0 %v1503, 112
        %v1509 = vpop.permute.xlu0 %1508
        %v1513 = vsel %vm890, %v1500, 0
        %v1516 = vsel %vm890, %v1501, 0
        %1518 = vmatprep.subr.mxu0 0.0
        %1519 = vmatpush1.msra.mxu0 0.0
        %1520 = vmatprep.subr.mxu0 0.0
        %1521 = vmatpush1.msra.mxu0 0.0
        %1522 = vmatprep.subr.mxu0 0.0
        %1523 = vmatpush1.msra.mxu0 0.0
        %1524 = vmatprep.subr.mxu0 0.0
        %1525 = vmatpush1.msra.mxu0 0.0
        %1526 = vmatprep.subr.mxu0 0.0
        %1527 = vmatpush1.msra.mxu0 0.0
        %1528 = vmatprep.subr.mxu0 0.0
        %1529 = vmatpush1.msra.mxu0 0.0
        %1530 = vmatprep.subr.mxu0 0.0
        %1531 = vmatpush1.msra.mxu0 0.0
        %1532 = vmatprep.subr.mxu0 0.0
        %1533 = vmatpush1.msra.mxu0 0.0
        %1534 = vmatprep.subr.mxu0 0.0
        %1535 = vmatpush1.msra.mxu0 0.0
        %1536 = vmatprep.subr.mxu0 0.0
        %1537 = vmatpush1.msra.mxu0 0.0
        %1538 = vmatprep.subr.mxu0 0.0
        %1539 = vmatpush1.msra.mxu0 0.0
        %1540 = vmatprep.subr.mxu0 0.0
        %1541 = vmatpush1.msra.mxu0 0.0
        %1542 = vmatprep.subr.mxu0 0.0
        %1543 = vmatpush1.msra.mxu0 0.0
        %1544 = vmatprep.subr.mxu0 0.0
        %1545 = vmatpush1.msra.mxu0 0.0
        %1546 = vmatprep.subr.mxu0 0.0
        %1547 = vmatpush1.msra.mxu0 %v1509
        %1548 = vmatprep.subr.mxu0 0.0
        %1549 = vmatpush1.msra.mxu0 %v1507
        %1550 = vmatprep.subr.mxu0 0.0
        %1551 = vmatpush2.msra.mxu0 0.0
        %1552 = vmatprep.subr.mxu0 0.0
        %1553 = vmatpush2.msra.mxu0 0.0
        %1554 = vmatprep.subr.mxu0 0.0
        %1555 = vmatpush2.msra.mxu0 0.0
        %1556 = vmatprep.subr.mxu0 0.0
        %1557 = vmatpush2.msra.mxu0 0.0
        %1558 = vmatprep.subr.mxu0 0.0
        %1559 = vmatpush2.msra.mxu0 0.0
        %1560 = vmatprep.subr.mxu0 0.0
        %1561 = vmatpush2.msra.mxu0 0.0
        %1562 = vmatprep.subr.mxu0 0.0
        %1563 = vmatpush2.msra.mxu0 0.0
        %1564 = vmatprep.subr.mxu0 0.0
        %1565 = vmatpush2.msra.mxu0 0.0
        %1566 = vmatprep.subr.mxu0 0.0
        %1567 = vmatpush2.msra.mxu0 0.0
        %1568 = vmatprep.subr.mxu0 0.0
        %1569 = vmatpush2.msra.mxu0 0.0
        %1570 = vmatprep.subr.mxu0 0.0
        %1571 = vmatpush2.msra.mxu0 0.0
        %1572 = vmatprep.subr.mxu0 0.0
        %1573 = vmatpush2.msra.mxu0 0.0
        %1574 = vmatprep.subr.mxu0 0.0
        %1575 = vmatpush2.msra.mxu0 0.0
        %1576 = vmatprep.subr.mxu0 0.0
        %1577 = vmatpush2.msra.mxu0 0.0
        %1578 = vmatprep.subr.mxu0 0.0
        %1579 = vmatpush2.msra.mxu0 0.0
        %1580 = vmatprep.subr.mxu0 0.0
        %1581 = vmatpush2.msra.mxu0 0.0
        %1582 = vmatprep.mubr.f32.mxu0 0.0
        %1583 = vmatmul.mubr.f32.gmra.mxu0 %v1513
        %v1584 = vpop.f32.mrf.mxu0
        %v1585 = vadd.f32 0.0, %v1584
        %v1586 = vpop.f32.mrf.mxu0
        %1587 = vmatprep.mubr.f32.mxu0 0.0
        %1588 = vmatmul.mubr.f32.gmra.mxu0 %v1516
        %v1589 = vpop.f32.mrf.mxu0
        %v1590 = vadd.f32 0.0, %v1589
        %v1591 = vpop.f32.mrf.mxu0
        %1592 = vdwg.mxu0
        %1595 = vrot.lane.b32.xlu0 %v1585, 16
        %v1596 = vpop.permute.xlu0 %1595
        %1597 = vrot.lane.b32.xlu0 %v1590, 16
        %v1598 = vpop.permute.xlu0 %1597
        %vm1601 = vcmask 195712
        %1602 = vst.msk [vmem:[#allocation5] sm:$0xff] %vm1601, %v1596
        %1603 = vst.msk [vmem:[#allocation5 + $0x8] sm:$0xff] %vm1601, %v1598
        %v1604 = vld [vmem:[#allocation2] sm:$0xff]
        %v1605 = vld [vmem:[#allocation2 + $0x8] sm:$0xff]
        %v1606 = vld [vmem:[#allocation3] sm:$0xff]
        %v1607 = vld [vmem:[#allocation3 + $0x8] sm:$0xff]
        %1610 = vrot.lane.b32.xlu0 %v1604, 104
        %v1611 = vpop.permute.xlu0 %1610
        %1612 = vrot.lane.b32.xlu0 %v1605, 104
        %v1613 = vpop.permute.xlu0 %1612
        %v1616 = vsel %vm747, %v1611, 0.0
        %1617 = vadd.xlane.f32.xlu0 %v1616
        %v1618 = vpop.xlane.xlu0 %1617
        %v1619 = vsel %vm747, %v1613, 0.0
        %1620 = vadd.xlane.f32.xlu0 %v1619
        %v1621 = vpop.xlane.xlu0 %1620
        %v1622 = vmul.f32 %v1618, %v754
        %v1623 = vmul.f32 %v1621, %v754
        %v1624 = vsub.f32 %v1604, %v1622
        %v1625 = vsub.f32 %v1605, %v1623
        %1628 = vrot.lane.b32.xlu0 %v1606, 104
        %v1629 = vpop.permute.xlu0 %1628
        %1630 = vrot.lane.b32.xlu0 %v1607, 104
        %v1631 = vpop.permute.xlu0 %1630
        %v1634 = vsel %vm747, %v1629, 0.0
        %1635 = vadd.xlane.f32.xlu0 %v1634
        %v1636 = vpop.xlane.xlu0 %1635
        %v1637 = vsel %vm747, %v1631, 0.0
        %1638 = vadd.xlane.f32.xlu0 %v1637
        %v1639 = vpop.xlane.xlu0 %1638
        %v1640 = vmul.f32 %v1636, %v754
        %v1641 = vmul.f32 %v1639, %v754
        %v1642 = vsub.f32 %v1606, %v1640
        %v1643 = vsub.f32 %v1607, %v1641
        %v1644 = vmul.f32 %v1624, %v1624
        %v1645 = vmul.f32 %v1625, %v1625
        %1648 = vrot.lane.b32.xlu0 %v1644, 104
        %v1649 = vpop.permute.xlu0 %1648
        %1650 = vrot.lane.b32.xlu0 %v1645, 104
        %v1651 = vpop.permute.xlu0 %1650
        %v1654 = vsel %vm747, %v1649, 0.0
        %1655 = vadd.xlane.f32.xlu0 %v1654
        %v1656 = vpop.xlane.xlu0 %1655
        %v1657 = vsel %vm747, %v1651, 0.0
        %1658 = vadd.xlane.f32.xlu0 %v1657
        %v1659 = vpop.xlane.xlu0 %1658
        %v1660 = vadd.f32 %v1656, 1e-12
        %v1661 = vadd.f32 %v1659, 1e-12
        %v1662 = vrsqrt.pop %v1660
        %v1663 = vrsqrt.pop %v1661
        %v1664 = vmul.f32 %v1624, %v1662
        %v1665 = vmul.f32 %v1625, %v1663
        %v1666 = vmul.f32 %v1642, %v1642
        %v1667 = vmul.f32 %v1643, %v1643
        %1670 = vrot.lane.b32.xlu0 %v1666, 104
        %v1671 = vpop.permute.xlu0 %1670
        %1672 = vrot.lane.b32.xlu0 %v1667, 104
        %v1673 = vpop.permute.xlu0 %1672
        %v1676 = vsel %vm747, %v1671, 0.0
        %1677 = vadd.xlane.f32.xlu0 %v1676
        %v1678 = vpop.xlane.xlu0 %1677
        %v1679 = vsel %vm747, %v1673, 0.0
        %1680 = vadd.xlane.f32.xlu0 %v1679
        %v1681 = vpop.xlane.xlu0 %1680
        %v1682 = vadd.f32 %v1678, 1e-12
        %v1683 = vadd.f32 %v1681, 1e-12
        %v1684 = vrsqrt.pop %v1682
        %v1685 = vrsqrt.pop %v1683
        %v1686 = vmul.f32 %v1642, %v1684
        %v1687 = vmul.f32 %v1643, %v1685
        %1690 = vrot.lane.b32.xlu0 %v1664, 104
        %v1691 = vpop.permute.xlu0 %1690
        %1692 = vrot.lane.b32.xlu0 %v1665, 104
        %v1693 = vpop.permute.xlu0 %1692
        %1696 = vrot.lane.b32.xlu0 %v1686, 104
        %v1697 = vpop.permute.xlu0 %1696
        %1698 = vrot.lane.b32.xlu0 %v1687, 104
        %v1699 = vpop.permute.xlu0 %1698
        %v1700 = vsel %vm747, %v1691, 0
        %v1702 = vsel %vm747, %v1693, 0
        %v1704 = vsel %vm747, %v1697, 0
        %v1706 = vsel %vm747, %v1699, 0
        %1708 = vmatprep.subr.mxu0 0.0
        %1709 = vmatpush1.xpose.msra.mxu0 0.0
        %1710 = vmatprep.subr.mxu0 0.0
        %1711 = vmatpush1.xpose.msra.mxu0 0.0
        %1712 = vmatprep.subr.mxu0 0.0
        %1713 = vmatpush1.xpose.msra.mxu0 0.0
        %1714 = vmatprep.subr.mxu0 0.0
        %1715 = vmatpush1.xpose.msra.mxu0 0.0
        %1716 = vmatprep.subr.mxu0 0.0
        %1717 = vmatpush1.xpose.msra.mxu0 0.0
        %1718 = vmatprep.subr.mxu0 0.0
        %1719 = vmatpush1.xpose.msra.mxu0 0.0
        %1720 = vmatprep.subr.mxu0 0.0
        %1721 = vmatpush1.xpose.msra.mxu0 0.0
        %1722 = vmatprep.subr.mxu0 0.0
        %1723 = vmatpush1.xpose.msra.mxu0 0.0
        %1724 = vmatprep.subr.mxu0 0.0
        %1725 = vmatpush1.xpose.msra.mxu0 0.0
        %1726 = vmatprep.subr.mxu0 0.0
        %1727 = vmatpush1.xpose.msra.mxu0 0.0
        %1728 = vmatprep.subr.mxu0 0.0
        %1729 = vmatpush1.xpose.msra.mxu0 0.0
        %1730 = vmatprep.subr.mxu0 0.0
        %1731 = vmatpush1.xpose.msra.mxu0 0.0
        %1732 = vmatprep.subr.mxu0 0.0
        %1733 = vmatpush1.xpose.msra.mxu0 0.0
        %1734 = vmatprep.subr.mxu0 0.0
        %1735 = vmatpush1.xpose.msra.mxu0 0.0
        %1736 = vmatprep.subr.mxu0 0.0
        %1737 = vmatpush1.xpose.msra.mxu0 %v1706
        %1738 = vmatprep.subr.mxu0 0.0
        %1739 = vmatpush1.xpose.msra.mxu0 %v1704
        %1740 = vmatprep.subr.mxu0 0.0
        %1741 = vmatpush2.xpose.msra.mxu0 0.0
        %1742 = vmatprep.subr.mxu0 0.0
        %1743 = vmatpush2.xpose.msra.mxu0 0.0
        %1744 = vmatprep.subr.mxu0 0.0
        %1745 = vmatpush2.xpose.msra.mxu0 0.0
        %1746 = vmatprep.subr.mxu0 0.0
        %1747 = vmatpush2.xpose.msra.mxu0 0.0
        %1748 = vmatprep.subr.mxu0 0.0
        %1749 = vmatpush2.xpose.msra.mxu0 0.0
        %1750 = vmatprep.subr.mxu0 0.0
        %1751 = vmatpush2.xpose.msra.mxu0 0.0
        %1752 = vmatprep.subr.mxu0 0.0
        %1753 = vmatpush2.xpose.msra.mxu0 0.0
        %1754 = vmatprep.subr.mxu0 0.0
        %1755 = vmatpush2.xpose.msra.mxu0 0.0
        %1756 = vmatprep.subr.mxu0 0.0
        %1757 = vmatpush2.xpose.msra.mxu0 0.0
        %1758 = vmatprep.subr.mxu0 0.0
        %1759 = vmatpush2.xpose.msra.mxu0 0.0
        %1760 = vmatprep.subr.mxu0 0.0
        %1761 = vmatpush2.xpose.msra.mxu0 0.0
        %1762 = vmatprep.subr.mxu0 0.0
        %1763 = vmatpush2.xpose.msra.mxu0 0.0
        %1764 = vmatprep.subr.mxu0 0.0
        %1765 = vmatpush2.xpose.msra.mxu0 0.0
        %1766 = vmatprep.subr.mxu0 0.0
        %1767 = vmatpush2.xpose.msra.mxu0 0.0
        %1768 = vmatprep.subr.mxu0 0.0
        %1769 = vmatpush2.xpose.msra.mxu0 0.0
        %1770 = vmatprep.subr.mxu0 0.0
        %1771 = vmatpush2.xpose.msra.mxu0 0.0
        %1772 = vmatprep.mubr.f32.mxu0 0.0
        %1773 = vmatmul.mubr.f32.gmra.mxu0 %v1700
        %v1774 = vpop.f32.mrf.mxu0
        %v1775 = vadd.f32 %v801, %v1774
        %v1776 = vpop.f32.mrf.mxu0
        %1777 = vmatprep.mubr.f32.mxu0 0.0
        %1778 = vmatmul.mubr.f32.gmra.mxu0 %v1702
        %v1779 = vpop.f32.mrf.mxu0
        %v1780 = vadd.f32 %v801, %v1779
        %v1781 = vpop.f32.mrf.mxu0
        %1782 = vdwg.mxu0
        %v1783 = vsel %vm890, %v1775, -inf
        %1784 = vmax.xlane.f32.xlu0 %v1783
        %v1785 = vpop.xlane.xlu0 %1784
        %v1786 = vsel %vm890, %v1780, -inf
        %1787 = vmax.xlane.f32.xlu0 %v1786
        %v1788 = vpop.xlane.xlu0 %1787
        %v1789 = vsub.f32 %v1775, %v1785
        %v1790 = vsub.f32 %v1780, %v1788
        %v1791 = vmul.f32 %v1789, 1.442695
        %v1792 = vpow.pop %v1791
        %v1793 = vmul.f32 %v1790, 1.442695
        %v1794 = vpow.pop %v1793
        %v1795 = vsel %vm890, %v1792, 0.0
        %1796 = vadd.xlane.f32.xlu0 %v1795
        %v1797 = vpop.xlane.xlu0 %1796
        %v1798 = vsel %vm890, %v1794, 0.0
        %1799 = vadd.xlane.f32.xlu0 %v1798
        %v1800 = vpop.xlane.xlu0 %1799
        %v1801 = vrcp.pop %v1797
        %v1802 = vrcp.pop %v1800
        %v1803 = vmul.f32 %v1792, %v1801
        %v1804 = vmul.f32 %v1794, %v1802
        %v1805 = vld [vmem:[#allocation4] sm:$0xff]
        %v1806 = vld [vmem:[#allocation4 + $0x8] sm:$0xff]
        %1809 = vrot.lane.b32.xlu0 %v1805, 104
        %v1810 = vpop.permute.xlu0 %1809
        %1811 = vrot.lane.b32.xlu0 %v1806, 104
        %v1812 = vpop.permute.xlu0 %1811
        %v1816 = vsel %vm890, %v1803, 0
        %v1819 = vsel %vm890, %v1804, 0
        %1821 = vmatprep.subr.mxu0 0.0
        %1822 = vmatpush1.msra.mxu0 0.0
        %1823 = vmatprep.subr.mxu0 0.0
        %1824 = vmatpush1.msra.mxu0 0.0
        %1825 = vmatprep.subr.mxu0 0.0
        %1826 = vmatpush1.msra.mxu0 0.0
        %1827 = vmatprep.subr.mxu0 0.0
        %1828 = vmatpush1.msra.mxu0 0.0
        %1829 = vmatprep.subr.mxu0 0.0
        %1830 = vmatpush1.msra.mxu0 0.0
        %1831 = vmatprep.subr.mxu0 0.0
        %1832 = vmatpush1.msra.mxu0 0.0
        %1833 = vmatprep.subr.mxu0 0.0
        %1834 = vmatpush1.msra.mxu0 0.0
        %1835 = vmatprep.subr.mxu0 0.0
        %1836 = vmatpush1.msra.mxu0 0.0
        %1837 = vmatprep.subr.mxu0 0.0
        %1838 = vmatpush1.msra.mxu0 0.0
        %1839 = vmatprep.subr.mxu0 0.0
        %1840 = vmatpush1.msra.mxu0 0.0
        %1841 = vmatprep.subr.mxu0 0.0
        %1842 = vmatpush1.msra.mxu0 0.0
        %1843 = vmatprep.subr.mxu0 0.0
        %1844 = vmatpush1.msra.mxu0 0.0
        %1845 = vmatprep.subr.mxu0 0.0
        %1846 = vmatpush1.msra.mxu0 0.0
        %1847 = vmatprep.subr.mxu0 0.0
        %1848 = vmatpush1.msra.mxu0 0.0
        %1849 = vmatprep.subr.mxu0 0.0
        %1850 = vmatpush1.msra.mxu0 %v1812
        %1851 = vmatprep.subr.mxu0 0.0
        %1852 = vmatpush1.msra.mxu0 %v1810
        %1853 = vmatprep.subr.mxu0 0.0
        %1854 = vmatpush2.msra.mxu0 0.0
        %1855 = vmatprep.subr.mxu0 0.0
        %1856 = vmatpush2.msra.mxu0 0.0
        %1857 = vmatprep.subr.mxu0 0.0
        %1858 = vmatpush2.msra.mxu0 0.0
        %1859 = vmatprep.subr.mxu0 0.0
        %1860 = vmatpush2.msra.mxu0 0.0
        %1861 = vmatprep.subr.mxu0 0.0
        %1862 = vmatpush2.msra.mxu0 0.0
        %1863 = vmatprep.subr.mxu0 0.0
        %1864 = vmatpush2.msra.mxu0 0.0
        %1865 = vmatprep.subr.mxu0 0.0
        %1866 = vmatpush2.msra.mxu0 0.0
        %1867 = vmatprep.subr.mxu0 0.0
        %1868 = vmatpush2.msra.mxu0 0.0
        %1869 = vmatprep.subr.mxu0 0.0
        %1870 = vmatpush2.msra.mxu0 0.0
        %1871 = vmatprep.subr.mxu0 0.0
        %1872 = vmatpush2.msra.mxu0 0.0
        %1873 = vmatprep.subr.mxu0 0.0
        %1874 = vmatpush2.msra.mxu0 0.0
        %1875 = vmatprep.subr.mxu0 0.0
        %1876 = vmatpush2.msra.mxu0 0.0
        %1877 = vmatprep.subr.mxu0 0.0
        %1878 = vmatpush2.msra.mxu0 0.0
        %1879 = vmatprep.subr.mxu0 0.0
        %1880 = vmatpush2.msra.mxu0 0.0
        %1881 = vmatprep.subr.mxu0 0.0
        %1882 = vmatpush2.msra.mxu0 0.0
        %1883 = vmatprep.subr.mxu0 0.0
        %1884 = vmatpush2.msra.mxu0 0.0
        %1885 = vmatprep.mubr.f32.mxu0 0.0
        %1886 = vmatmul.mubr.f32.gmra.mxu0 %v1816
        %v1887 = vpop.f32.mrf.mxu0
        %v1888 = vadd.f32 0.0, %v1887
        %v1889 = vpop.f32.mrf.mxu0
        %1890 = vmatprep.mubr.f32.mxu0 0.0
        %1891 = vmatmul.mubr.f32.gmra.mxu0 %v1819
        %v1892 = vpop.f32.mrf.mxu0
        %v1893 = vadd.f32 0.0, %v1892
        %v1894 = vpop.f32.mrf.mxu0
        %1895 = vdwg.mxu0
        %1898 = vrot.lane.b32.xlu0 %v1888, 24
        %v1899 = vpop.permute.xlu0 %1898
        %1900 = vrot.lane.b32.xlu0 %v1893, 24
        %v1901 = vpop.permute.xlu0 %1900
        %vm1904 = vcmask 261312
        %1905 = vst.msk [vmem:[#allocation5] sm:$0xff] %vm1904, %v1899
        %1906 = vst.msk [vmem:[#allocation5 + $0x8] sm:$0xff] %vm1904, %v1901
        %v1907 = vld [vmem:[#allocation5] sm:$0xff]
        %v1908 = vld [vmem:[#allocation5 + $0x8] sm:$0xff]
        %v1909 = vld [vmem:[#allocation15] sm:$0xff]
        %v1910 = vld [vmem:[#allocation15 + $0x8] sm:$0xff]
        %v1911 = vld [vmem:[#allocation15 + $0x10] sm:$0xff]
        %v1912 = vld [vmem:[#allocation15 + $0x18] sm:$0xff]
        %v1913 = vld [vmem:[%s8] sm:$0x1]
        %v1915 = vlaneseq
        %v1916 = vshrl.u32 %v1915, 7
        %v1917 = vsub.s32 0, %v1916
        %v1918 = vrot.slane %v1913, %v1917
        %v1921 = vsel %vm447, %v1907, 0
        %v1924 = vsel %vm447, %v1908, 0
        %1926 = vmatprep.subr.mxu0 0.0
        %1927 = vmatpush1.msra.mxu0 0.0
        %1928 = vmatprep.subr.mxu0 0.0
        %1929 = vmatpush1.msra.mxu0 0.0
        %1930 = vmatprep.subr.mxu0 0.0
        %1931 = vmatpush1.msra.mxu0 0.0
        %1932 = vmatprep.subr.mxu0 0.0
        %1933 = vmatpush1.msra.mxu0 0.0
        %1934 = vmatprep.subr.mxu0 0.0
        %1935 = vmatpush1.msra.mxu0 0.0
        %1936 = vmatprep.subr.mxu0 0.0
        %1937 = vmatpush1.msra.mxu0 0.0
        %1938 = vmatprep.subr.mxu0 0.0
        %1939 = vmatpush1.msra.mxu0 0.0
        %1940 = vmatprep.subr.mxu0 0.0
        %1941 = vmatpush1.msra.mxu0 0.0
        %1942 = vmatprep.subr.mxu0 0.0
        %1943 = vmatpush1.msra.mxu0 0.0
        %1944 = vmatprep.subr.mxu0 0.0
        %1945 = vmatpush1.msra.mxu0 0.0
        %1946 = vmatprep.subr.mxu0 0.0
        %1947 = vmatpush1.msra.mxu0 0.0
        %1948 = vmatprep.subr.mxu0 0.0
        %1949 = vmatpush1.msra.mxu0 0.0
        %1950 = vmatprep.subr.mxu0 0.0
        %1951 = vmatpush1.msra.mxu0 %v1912
        %1952 = vmatprep.subr.mxu0 0.0
        %1953 = vmatpush1.msra.mxu0 %v1911
        %1954 = vmatprep.subr.mxu0 0.0
        %1955 = vmatpush1.msra.mxu0 %v1910
        %1956 = vmatprep.subr.mxu0 0.0
        %1957 = vmatpush1.msra.mxu0 %v1909
        %1958 = vmatprep.subr.mxu0 0.0
        %1959 = vmatpush2.msra.mxu0 0.0
        %1960 = vmatprep.subr.mxu0 0.0
        %1961 = vmatpush2.msra.mxu0 0.0
        %1962 = vmatprep.subr.mxu0 0.0
        %1963 = vmatpush2.msra.mxu0 0.0
        %1964 = vmatprep.subr.mxu0 0.0
        %1965 = vmatpush2.msra.mxu0 0.0
        %1966 = vmatprep.subr.mxu0 0.0
        %1967 = vmatpush2.msra.mxu0 0.0
        %1968 = vmatprep.subr.mxu0 0.0
        %1969 = vmatpush2.msra.mxu0 0.0
        %1970 = vmatprep.subr.mxu0 0.0
        %1971 = vmatpush2.msra.mxu0 0.0
        %1972 = vmatprep.subr.mxu0 0.0
        %1973 = vmatpush2.msra.mxu0 0.0
        %1974 = vmatprep.subr.mxu0 0.0
        %1975 = vmatpush2.msra.mxu0 0.0
        %1976 = vmatprep.subr.mxu0 0.0
        %1977 = vmatpush2.msra.mxu0 0.0
        %1978 = vmatprep.subr.mxu0 0.0
        %1979 = vmatpush2.msra.mxu0 0.0
        %1980 = vmatprep.subr.mxu0 0.0
        %1981 = vmatpush2.msra.mxu0 0.0
        %1982 = vmatprep.subr.mxu0 0.0
        %1983 = vmatpush2.msra.mxu0 0.0
        %1984 = vmatprep.subr.mxu0 0.0
        %1985 = vmatpush2.msra.mxu0 0.0
        %1986 = vmatprep.subr.mxu0 0.0
        %1987 = vmatpush2.msra.mxu0 0.0
        %1988 = vmatprep.subr.mxu0 0.0
        %1989 = vmatpush2.msra.mxu0 0.0
        %1990 = vmatprep.mubr.f32.mxu0 0.0
        %1991 = vmatmul.mubr.f32.gmra.mxu0 %v1921
        %v1992 = vpop.f32.mrf.mxu0
        %v1993 = vadd.f32 %v1918, %v1992
        %v1994 = vpop.f32.mrf.mxu0
        %1995 = vmatprep.mubr.f32.mxu0 0.0
        %1996 = vmatmul.mubr.f32.gmra.mxu0 %v1924
        %v1997 = vpop.f32.mrf.mxu0
        %v1998 = vadd.f32 %v1918, %v1997
        %v1999 = vpop.f32.mrf.mxu0
        %2000 = vdwg.mxu0
        %v2001 = vld [vmem:[%s380] sm:$0xff]
        %v2002 = vld [vmem:[%s380 + $0x8] sm:$0xff]
        %v2003 = vadd.f32 %v2001, %v1993
        %v2004 = vadd.f32 %v2002, %v1998
        %2005 = vst.msk [vmem:[%s442] sm:$0xff] %vm447, %v2003
        %2006 = vst.msk [vmem:[%s442 + $0x8] sm:$0xff] %vm447, %v2004
        %s2007 = sand.u32 %s238, 1
        %s2008 = scalar_lea.sflag [#allocation8], %s2007
        %s2009 = sand.u32 %s238, 1
        %s2010 = smul.addr %s2009, 16
        %s2011 = scalar_lea.vmem [#allocation17], %s2010
        // Predicated region
        $region81: #{tpu_custom_call.1} parent=55 // pred_check
          %p2012 = pneg %p248
        $region82: #{tpu_custom_call.1} parent=55 // pred_check_branch
          %2014 = sbr.rel (%p2012) target = $region84
        $region83: #{tpu_custom_call.1} parent=55 // pred_region
          %s2016 = ssub.s32 256, 256
          %2017 = vsyncadd %s2008, %s2016
          %s2018 = smul.addr %s31, 2
          %s2019 = smul.addr %s2018, 128
          %s2020 = scalar_lea.hbm %s9, %s2019
          %s2021 = sshll.u32 %s2011, 4
          %s2022 = int_to_ptr.vmem [resolvable:$true] %s2021
          %2027 = dma.vmem_to_hbm [thread:$0]  %s2022, 256, %s2020, %s2008, 128, 128, 8
        $region84: #{tpu_custom_call.1} parent=55 // pred_fallthru
          _
      $region56: #{tpu_custom_call.1} parent=5 // pred_fallthru
        _
      %p2028 = scmp.le.s32.totalorder 2, %s26
      // Predicated region
      $region85: #{tpu_custom_call.1} parent=5 // pred_check
        %p2029 = pneg %p2028
      $region86: #{tpu_custom_call.1} parent=5 // pred_check_branch
        %2031 = sbr.rel (%p2029) target = $region88
      $region87: #{tpu_custom_call.1} parent=5 // pred_region
        %s2032 = ssub.s32 %s26, 2
        // Predicated region
        $region89: #{tpu_custom_call.1} parent=87 // pred_check
          %p2033 = pneg %p254
        $region90: #{tpu_custom_call.1} parent=87 // pred_check_branch
          %2035 = sbr.rel (%p2033) target = $region92
        $region91: #{tpu_custom_call.1} parent=87 // pred_region
          %s2036 = sand.u32 %s239, 1
          %s2037 = scalar_lea.sflag [#allocation8], %s2036
          %s2038 = sand.u32 %s239, 1
          %s2039 = smul.addr %s2038, 16
          %s2040 = scalar_lea.vmem [#allocation17], %s2039
          %2041 = dma.done %s2037, 256
        $region92: #{tpu_custom_call.1} parent=87 // pred_fallthru
          _
      $region88: #{tpu_custom_call.1} parent=5 // pred_fallthru
        _
    $region6: #{tpu_custom_call.1} parent=1 // loop_footer
      %s30 = sadd.s32 1, %s26
    $region7: #{tpu_custom_call.1} parent=1 // loop_footer_branch
      %25 = sbr.rel target = $region3
    $region8: #{tpu_custom_call.1} parent=1 // loop_exit
      _
    %2042 = vsyncpa [#allocation7], 1
    %s2043 = scalar_lea.sflag [#allocation7], 1
    %2044 = vsyncpa %s2043, 1
    %2045 = vsyncpa [#allocation10], 1
    %s2046 = scalar_lea.sflag [#allocation10], 1
    %2047 = vsyncpa %s2046, 1
    %2048 = vsyncpa [#allocation13], 1
    %2049 = vsyncpa [#allocation16], 1
    %2050 = vsyncpa [#allocation8], 1
    %s2051 = scalar_lea.sflag [#allocation8], 1
    %2052 = vsyncpa %s2051, 1

// kernel: tpu_custom_call.1
$region0: #{tpu_custom_call.1}
  #allocation0 [shape = 'u32[]', space=smem, size = 0x4, offset = 0x4, fixed_abs, tag = 'smem constant byte address 0x4 - core index']
  #allocation1 [shape = 'u32[144,128]{1,0:T(1,128)}', space=vmem, size = 0x12000, scoped, tag = 'internal scratch']
  #allocation2 [shape = 'f32[16,32]{1,0:T(8,128)}', space=vmem, size = 0x2000, scoped, tag = 'scratch operand']
  #allocation3 [shape = 'f32[16,32]{1,0:T(8,128)}', space=vmem, size = 0x2000, scoped, tag = 'scratch operand']
  #allocation4 [shape = 'f32[16,32]{1,0:T(8,128)}', space=vmem, size = 0x2000, scoped, tag = 'scratch operand']
  #allocation5 [shape = 'f32[16,32]{1,0:T(8,128)}', space=vmem, size = 0x2000, scoped, tag = 'scratch operand']
  %s0 = inlined_call_operand.hbm [shape: f32[2,16,32], index: 0, kind: input, shape index: {}]
  %s1 = inlined_call_operand.hbm [shape: f32[2,1,16], index: 1, kind: input, shape index: {}]
  %s2 = inlined_call_operand.vmem [shape: f32[1,32], index: 2, kind: input, shape index: {}]
  %s3 = inlined_call_operand.vmem [shape: f32[1,32], index: 3, kind: input, shape index: {}]
  %s4 = inlined_call_operand.hbm [shape: f32[32,32], index: 4, kind: input, shape index: {}]
  %s5 = inlined_call_operand.hbm [shape: f32[32,32], index: 5, kind: input, shape index: {}]
  %s6 = inlined_call_operand.hbm [shape: f32[32,32], index: 6, kind: input, shape index: {}]
  %s7 = inlined_call_operand.hbm [shape: f32[32,32], index: 7, kind: input, shape index: {}]
  %s8 = inlined_call_operand.vmem [shape: f32[1,32], index: 8, kind: input, shape index: {}]
  %s9 = inlined_call_operand.hbm [shape: f32[2,16,32], index: 9, kind: output, shape index: {}]
  %s10 = sld [smem:[#allocation0]]
  $region93: #{tpu_custom_call.1} parent=0
    _
  %s12 = ssub.s32 1, %s10
  %s13 = scalar_select 0, %s12, %s10
  $region1: #{tpu_custom_call.1} parent=0
    #allocation6 [shape = 'u8[16384]{0}', space=vmem, size = 0x4000, scoped, tag = 'input window, operand 0']
    #allocation7 [shape = 's32[2]{0}', space=sflag, size = 0x8, scoped, tag = 'scoped memory for tpu_custom_call.1']
    #allocation8 [shape = 's32[2]{0}', space=sflag, size = 0x8, scoped, tag = 'scoped memory for tpu_custom_call.1']
    #allocation9 [shape = 'u8[1024]{0}', space=vmem, size = 0x400, scoped, tag = 'input window, operand 1']
    #allocation10 [shape = 's32[2]{0}', space=sflag, size = 0x8, scoped, tag = 'scoped memory for tpu_custom_call.1']
    #allocation11 [shape = 'u8[16384]{0}', space=vmem, size = 0x4000, scoped, tag = 'input window, operand 4, single buffered']
    #allocation12 [shape = 'u8[16384]{0}', space=vmem, size = 0x4000, scoped, tag = 'input window, operand 5, single buffered']
    #allocation13 [shape = 's32[1]{0}', space=sflag, size = 0x4, scoped, tag = 'scoped memory for tpu_custom_call.1']
    #allocation14 [shape = 'u8[16384]{0}', space=vmem, size = 0x4000, scoped, tag = 'input window, operand 6, single buffered']
    #allocation15 [shape = 'u8[16384]{0}', space=vmem, size = 0x4000, scoped, tag = 'input window, operand 7, single buffered']
    #allocation16 [shape = 's32[1]{0}', space=sflag, size = 0x4, scoped, tag = 'scoped memory for tpu_custom_call.1']
    #allocation17 [shape = 'u8[16384]{0}', space=vmem, size = 0x4000, scoped, tag = 'output window, operand 0']
    %14 = vsyncpa [#allocation7], 0
    %s15 = scalar_lea.sflag [#allocation7], 1
    %16 = vsyncpa %s15, 0
    %17 = vsyncpa [#allocation10], 0
    %s18 = scalar_lea.sflag [#allocation10], 1
    %19 = vsyncpa %s18, 0
    %20 = vsyncpa [#allocation13], 0
    %21 = vsyncpa [#allocation16], 0
    %22 = vsyncpa [#allocation8], 0
    %s23 = scalar_lea.sflag [#allocation8], 1
    %24 = vsyncpa %s23, 0
    loop: start=0, step=1, limit=4
    $region2: #{tpu_custom_call.1} parent=1 // loop_pre_header
      _
    $region3: #{tpu_custom_call.1} parent=1 // loop_header
      %s26 = sphi 0, %s30
      %p27 = scmp.ge.s32.totalorder %s26, 4
      %s36 = sphi 0, %s38
      %s39 = sphi 0, %s36
      %s40 = sphi 0, %s39
      %s56 = sphi 0, %s40
      %s62 = sphi 0, %s64
      %s65 = sphi 0, %s62
      %s66 = sphi 0, %s65
      %s82 = sphi 0, %s66
      %s86 = sphi 0, %s86
      %s88 = sphi 0, %s86
      %s89 = sphi 0, %s88
      %s103 = sphi 0, %s89
      %s107 = sphi 0, %s107
      %s109 = sphi 0, %s107
      %s110 = sphi 0, %s109
      %s124 = sphi 0, %s110
      %s128 = sphi 0, %s128
      %s130 = sphi 0, %s128
      %s131 = sphi 0, %s130
      %s145 = sphi 0, %s131
      %s149 = sphi 0, %s149
      %s151 = sphi 0, %s149
      %s152 = sphi 0, %s151
      %s166 = sphi 0, %s152
      %s170 = sphi 0, %s170
      %s172 = sphi 0, %s170
      %s173 = sphi 0, %s172
      %s187 = sphi 0, %s173
      %s191 = sphi 0, %s191
      %s193 = sphi 0, %s191
      %s194 = sphi 0, %s193
      %s208 = sphi 0, %s194
      %s212 = sphi 0, %s212
      %s214 = sphi 0, %s212
      %s215 = sphi 0, %s214
      %s229 = sphi 0, %s215
      %s235 = sphi 0, %s237
      %s238 = sphi 0, %s235
      %s239 = sphi 0, %s238
      %s255 = sphi 0, %s239
    $region4: #{tpu_custom_call.1} parent=1 // loop_header_branch
      %29 = sbr.rel (%p27) target = $region8
    $region5: #{tpu_custom_call.1} parent=1 // loop_body
      %s31 = ssub.s32 %s26, 1
      %s32 = ssub.s32 %s26, 2
      %s33 = sadd.s32 %s26, 1
      %s34 = ssub.s32 %s26, %s33
      %p35 = scmp.eq.s32.totalorder %s34, 0
      %s37 = sadd.s32 %s36, 1
      %s38 = scalar_select %p35, %s36, %s37
      %p41 = pneg %p35
      %p42 = scmp.eq.s32.totalorder %s26, 1
      %p43 = por %p41, %p42
      %p44 = scmp.ne.s32.totalorder %s36, %s39
      %p45 = scmp.eq.s32.totalorder %s26, 0
      %p46 = por %p44, %p45
      %p47 = scmp.ne.s32.totalorder %s36, %s39
      %p48 = scmp.eq.s32.totalorder %s31, 1
      %p49 = por %p47, %p48
      %p50 = scmp.ne.s32.totalorder %s39, %s40
      %p51 = scmp.eq.s32.totalorder %s31, 0
      %p52 = por %p50, %p51
      %p53 = scmp.ne.s32.totalorder %s39, %s40
      %p54 = scmp.eq.s32.totalorder %s32, 1
      %p55 = por %p53, %p54
      %p57 = scmp.ne.s32.totalorder %s40, %s56
      %p58 = scmp.eq.s32.totalorder %s32, 0
      %p59 = por %p57, %p58
      %s60 = ssub.s32 %s26, %s33
      %p61 = scmp.eq.s32.totalorder %s60, 0
      %s63 = sadd.s32 %s62, 1
      %s64 = scalar_select %p61, %s62, %s63
      %p67 = pneg %p61
      %p68 = scmp.eq.s32.totalorder %s26, 1
      %p69 = por %p67, %p68
      %p70 = scmp.ne.s32.totalorder %s62, %s65
      %p71 = scmp.eq.s32.totalorder %s26, 0
      %p72 = por %p70, %p71
      %p73 = scmp.ne.s32.totalorder %s62, %s65
      %p74 = scmp.eq.s32.totalorder %s31, 1
      %p75 = por %p73, %p74
      %p76 = scmp.ne.s32.totalorder %s65, %s66
      %p77 = scmp.eq.s32.totalorder %s31, 0
      %p78 = por %p76, %p77
      %p79 = scmp.ne.s32.totalorder %s65, %s66
      %p80 = scmp.eq.s32.totalorder %s32, 1
      %p81 = por %p79, %p80
      %p83 = scmp.ne.s32.totalorder %s66, %s82
      %p84 = scmp.eq.s32.totalorder %s32, 0
      %p85 = por %p83, %p84
      %s87 = sadd.s32 %s86, 1
      %p90 = scmp.eq.s32.totalorder %s26, 1
      %p91 = scmp.ne.s32.totalorder %s86, %s88
      %p92 = scmp.eq.s32.totalorder %s26, 0
      %p93 = por %p91, %p92
      %p94 = scmp.ne.s32.totalorder %s86, %s88
      %p95 = scmp.eq.s32.totalorder %s31, 1
      %p96 = por %p94, %p95
      %p97 = scmp.ne.s32.totalorder %s88, %s89
      %p98 = scmp.eq.s32.totalorder %s31, 0
      %p99 = por %p97, %p98
      %p100 = scmp.ne.s32.totalorder %s88, %s89
      %p101 = scmp.eq.s32.totalorder %s32, 1
      %p102 = por %p100, %p101
      %p104 = scmp.ne.s32.totalorder %s89, %s103
      %p105 = scmp.eq.s32.totalorder %s32, 0
      %p106 = por %p104, %p105
      %s108 = sadd.s32 %s107, 1
      %p111 = scmp.eq.s32.totalorder %s26, 1
      %p112 = scmp.ne.s32.totalorder %s107, %s109
      %p113 = scmp.eq.s32.totalorder %s26, 0
      %p114 = por %p112, %p113
      %p115 = scmp.ne.s32.totalorder %s107, %s109
      %p116 = scmp.eq.s32.totalorder %s31, 1
      %p117 = por %p115, %p116
      %p118 = scmp.ne.s32.totalorder %s109, %s110
      %p119 = scmp.eq.s32.totalorder %s31, 0
      %p120 = por %p118, %p119
      %p121 = scmp.ne.s32.totalorder %s109, %s110
      %p122 = scmp.eq.s32.totalorder %s32, 1
      %p123 = por %p121, %p122
      %p125 = scmp.ne.s32.totalorder %s110, %s124
      %p126 = scmp.eq.s32.totalorder %s32, 0
      %p127 = por %p125, %p126
      %s129 = sadd.s32 %s128, 1
      %p132 = scmp.eq.s32.totalorder %s26, 1
      %p133 = scmp.ne.s32.totalorder %s128, %s130
      %p134 = scmp.eq.s32.totalorder %s26, 0
      %p135 = por %p133, %p134
      %p136 = scmp.ne.s32.totalorder %s128, %s130
      %p137 = scmp.eq.s32.totalorder %s31, 1
      %p138 = por %p136, %p137
      %p139 = scmp.ne.s32.totalorder %s130, %s131
      %p140 = scmp.eq.s32.totalorder %s31, 0
      %p141 = por %p139, %p140
      %p142 = scmp.ne.s32.totalorder %s130, %s131
      %p143 = scmp.eq.s32.totalorder %s32, 1
      %p144 = por %p142, %p143
      %p146 = scmp.ne.s32.totalorder %s131, %s145
      %p147 = scmp.eq.s32.totalorder %s32, 0
      %p148 = por %p146, %p147
      %s150 = sadd.s32 %s149, 1
      %p153 = scmp.eq.s32.totalorder %s26, 1
      %p154 = scmp.ne.s32.totalorder %s149, %s151
      %p155 = scmp.eq.s32.totalorder %s26, 0
      %p156 = por %p154, %p155
      %p157 = scmp.ne.s32.totalorder %s149, %s151
      %p158 = scmp.eq.s32.totalorder %s31, 1
      %p159 = por %p157, %p158
      %p160 = scmp.ne.s32.totalorder %s151, %s152
      %p161 = scmp.eq.s32.totalorder %s31, 0
      %p162 = por %p160, %p161
      %p163 = scmp.ne.s32.totalorder %s151, %s152
      %p164 = scmp.eq.s32.totalorder %s32, 1
      %p165 = por %p163, %p164
      %p167 = scmp.ne.s32.totalorder %s152, %s166
      %p168 = scmp.eq.s32.totalorder %s32, 0
      %p169 = por %p167, %p168
      %s171 = sadd.s32 %s170, 1
      %p174 = scmp.eq.s32.totalorder %s26, 1
      %p175 = scmp.ne.s32.totalorder %s170, %s172
      %p176 = scmp.eq.s32.totalorder %s26, 0
      %p177 = por %p175, %p176
      %p178 = scmp.ne.s32.totalorder %s170, %s172
      %p179 = scmp.eq.s32.totalorder %s31, 1
      %p180 = por %p178, %p179
      %p181 = scmp.ne.s32.totalorder %s172, %s173
      %p182 = scmp.eq.s32.totalorder %s31, 0
      %p183 = por %p181, %p182
      %p184 = scmp.ne.s32.totalorder %s172, %s173
      %p185 = scmp.eq.s32.totalorder %s32, 1
      %p186 = por %p184, %p185
      %p188 = scmp.ne.s32.totalorder %s173, %s187
      %p189 = scmp.eq.s32.totalorder %s32, 0
      %p190 = por %p188, %p189
      %s192 = sadd.s32 %s191, 1
      %p195 = scmp.eq.s32.totalorder %s26, 1
      %p196 = scmp.ne.s32.totalorder %s191, %s193
      %p197 = scmp.eq.s32.totalorder %s26, 0
      %p198 = por %p196, %p197
      %p199 = scmp.ne.s32.totalorder %s191, %s193
      %p200 = scmp.eq.s32.totalorder %s31, 1
      %p201 = por %p199, %p200
      %p202 = scmp.ne.s32.totalorder %s193, %s194
      %p203 = scmp.eq.s32.totalorder %s31, 0
      %p204 = por %p202, %p203
      %p205 = scmp.ne.s32.totalorder %s193, %s194
      %p206 = scmp.eq.s32.totalorder %s32, 1
      %p207 = por %p205, %p206
      %p209 = scmp.ne.s32.totalorder %s194, %s208
      %p210 = scmp.eq.s32.totalorder %s32, 0
      %p211 = por %p209, %p210
      %s213 = sadd.s32 %s212, 1
      %p216 = scmp.eq.s32.totalorder %s26, 1
      %p217 = scmp.ne.s32.totalorder %s212, %s214
      %p218 = scmp.eq.s32.totalorder %s26, 0
      %p219 = por %p217, %p218
      %p220 = scmp.ne.s32.totalorder %s212, %s214
      %p221 = scmp.eq.s32.totalorder %s31, 1
      %p222 = por %p220, %p221
      %p223 = scmp.ne.s32.totalorder %s214, %s215
      %p224 = scmp.eq.s32.totalorder %s31, 0
      %p225 = por %p223, %p224
      %p226 = scmp.ne.s32.totalorder %s214, %s215
      %p227 = scmp.eq.s32.totalorder %s32, 1
      %p228 = por %p226, %p227
      %p230 = scmp.ne.s32.totalorder %s215, %s229
      %p231 = scmp.eq.s32.totalorder %s32, 0
      %p232 = por %p230, %p231
      %s233 = ssub.s32 %s26, %s33
      %p234 = scmp.eq.s32.totalorder %s233, 0
      %s236 = sadd.s32 %s235, 1
      %s237 = scalar_select %p234, %s235, %s236
      %p240 = pneg %p234
      %p241 = scmp.eq.s32.totalorder %s26, 1
      %p242 = por %p240, %p241
      %p243 = scmp.ne.s32.totalorder %s235, %s238
      %p244 = scmp.eq.s32.totalorder %s26, 0
      %p245 = por %p243, %p244
      %p246 = scmp.ne.s32.totalorder %s235, %s238
      %p247 = scmp.eq.s32.totalorder %s31, 1
      %p248 = por %p246, %p247
      %p249 = scmp.ne.s32.totalorder %s238, %s239
      %p250 = scmp.eq.s32.totalorder %s31, 0
      %p251 = por %p249, %p250
      %p252 = scmp.ne.s32.totalorder %s238, %s239
      %p253 = scmp.eq.s32.totalorder %s32, 1
      %p254 = por %p252, %p253
      %p256 = scmp.ne.s32.totalorder %s239, %s255
      %p257 = scmp.eq.s32.totalorder %s32, 0
      %p258 = por %p256, %p257
      %p259 = scmp.le.s32.totalorder 1, %s26
      %p260 = scmp.lt.s32.totalorder %s26, 3
      %p261 = pnand %p259, %p260
      %p262 = pneg %p261
      // Predicated region
      $region9: #{tpu_custom_call.1} parent=5 // pred_check
        _
      $region10: #{tpu_custom_call.1} parent=5 // pred_check_branch
        %264 = sbr.rel (%p261) target = $region12
      $region11: #{tpu_custom_call.1} parent=5 // pred_region
        %s265 = ssub.s32 %s26, 1
        // Predicated region
        $region13: #{tpu_custom_call.1} parent=11 // pred_check
          %p266 = pneg %p99
        $region14: #{tpu_custom_call.1} parent=11 // pred_check_branch
          %268 = sbr.rel (%p266) target = $region16
        $region15: #{tpu_custom_call.1} parent=11 // pred_region
          _
        $region16: #{tpu_custom_call.1} parent=11 // pred_fallthru
          _
        // Predicated region
        $region17: #{tpu_custom_call.1} parent=11 // pred_check
          %p269 = pneg %p120
        $region18: #{tpu_custom_call.1} parent=11 // pred_check_branch
          %271 = sbr.rel (%p269) target = $region20
        $region19: #{tpu_custom_call.1} parent=11 // pred_region
          _
        $region20: #{tpu_custom_call.1} parent=11 // pred_fallthru
          _
        // Predicated region
        $region21: #{tpu_custom_call.1} parent=11 // pred_check
          %p272 = pneg %p141
        $region22: #{tpu_custom_call.1} parent=11 // pred_check_branch
          %274 = sbr.rel (%p272) target = $region24
        $region23: #{tpu_custom_call.1} parent=11 // pred_region
          %s276 = ssub.s32 512, 512
          %277 = vsyncadd [#allocation10], %s276
          %s278 = sshll.u32 [#allocation11], 4
          %s279 = int_to_ptr.vmem [resolvable:$true] %s278
          %284 = dma.hbm_to_vmem [thread:$0]  %s4, 512, %s279, [#allocation10], 128, 128, 8
        $region24: #{tpu_custom_call.1} parent=11 // pred_fallthru
          _
        // Predicated region
        $region25: #{tpu_custom_call.1} parent=11 // pred_check
          %p285 = pneg %p162
        $region26: #{tpu_custom_call.1} parent=11 // pred_check_branch
          %287 = sbr.rel (%p285) target = $region28
        $region27: #{tpu_custom_call.1} parent=11 // pred_region
          %s289 = ssub.s32 512, 512
          %290 = vsyncadd [#allocation13], %s289
          %s291 = sshll.u32 [#allocation12], 4
          %s292 = int_to_ptr.vmem [resolvable:$true] %s291
          %297 = dma.hbm_to_vmem [thread:$0]  %s5, 512, %s292, [#allocation13], 128, 128, 8
        $region28: #{tpu_custom_call.1} parent=11 // pred_fallthru
          _
        // Predicated region
        $region29: #{tpu_custom_call.1} parent=11 // pred_check
          %p298 = pneg %p183
        $region30: #{tpu_custom_call.1} parent=11 // pred_check_branch
          %300 = sbr.rel (%p298) target = $region32
        $region31: #{tpu_custom_call.1} parent=11 // pred_region
          %s302 = ssub.s32 512, 512
          %303 = vsyncadd [#allocation13], %s302
          %s304 = sshll.u32 [#allocation14], 4
          %s305 = int_to_ptr.vmem [resolvable:$true] %s304
          %310 = dma.hbm_to_vmem [thread:$0]  %s6, 512, %s305, [#allocation13], 128, 128, 8
        $region32: #{tpu_custom_call.1} parent=11 // pred_fallthru
          _
        // Predicated region
        $region33: #{tpu_custom_call.1} parent=11 // pred_check
          %p311 = pneg %p204
        $region34: #{tpu_custom_call.1} parent=11 // pred_check_branch
          %313 = sbr.rel (%p311) target = $region36
        $region35: #{tpu_custom_call.1} parent=11 // pred_region
          %s315 = ssub.s32 512, 512
          %316 = vsyncadd [#allocation16], %s315
          %s317 = sshll.u32 [#allocation15], 4
          %s318 = int_to_ptr.vmem [resolvable:$true] %s317
          %323 = dma.hbm_to_vmem [thread:$0]  %s7, 512, %s318, [#allocation16], 128, 128, 8
        $region36: #{tpu_custom_call.1} parent=11 // pred_fallthru
          _
        // Predicated region
        $region37: #{tpu_custom_call.1} parent=11 // pred_check
          %p324 = pneg %p225
        $region38: #{tpu_custom_call.1} parent=11 // pred_check_branch
          %326 = sbr.rel (%p324) target = $region40
        $region39: #{tpu_custom_call.1} parent=11 // pred_region
          _
        $region40: #{tpu_custom_call.1} parent=11 // pred_fallthru
          _
      $region12: #{tpu_custom_call.1} parent=5 // pred_fallthru
        _
      %p327 = scmp.lt.s32.totalorder %s26, 2
      // Predicated region
      $region41: #{tpu_custom_call.1} parent=5 // pred_check
        %p328 = pneg %p327
      $region42: #{tpu_custom_call.1} parent=5 // pred_check_branch
        %330 = sbr.rel (%p328) target = $region44
      $region43: #{tpu_custom_call.1} parent=5 // pred_region
        // Predicated region
        $region45: #{tpu_custom_call.1} parent=43 // pred_check
          %p331 = pneg %p46
        $region46: #{tpu_custom_call.1} parent=43 // pred_check_branch
          %333 = sbr.rel (%p331) target = $region48
        $region47: #{tpu_custom_call.1} parent=43 // pred_region
          %s334 = sand.u32 %s36, 1
          %s335 = scalar_lea.sflag [#allocation7], %s334
          %s336 = sand.u32 %s36, 1
          %s337 = smul.addr %s336, 16
          %s338 = scalar_lea.vmem [#allocation6], %s337
          %s340 = ssub.s32 256, 256
          %341 = vsyncadd %s335, %s340
          %s342 = smul.addr %s26, 2
          %s343 = smul.addr %s342, 128
          %s344 = scalar_lea.hbm %s0, %s343
          %s345 = sshll.u32 %s338, 4
          %s346 = int_to_ptr.vmem [resolvable:$true] %s345
          %351 = dma.hbm_to_vmem [thread:$0]  %s344, 256, %s346, %s335, 128, 128, 8
        $region48: #{tpu_custom_call.1} parent=43 // pred_fallthru
          _
        // Predicated region
        $region49: #{tpu_custom_call.1} parent=43 // pred_check
          %p352 = pneg %p72
        $region50: #{tpu_custom_call.1} parent=43 // pred_check_branch
          %354 = sbr.rel (%p352) target = $region52
        $region51: #{tpu_custom_call.1} parent=43 // pred_region
          %s355 = sand.u32 %s26, 1
          %s356 = scalar_lea.sflag [#allocation10], %s355
          %s357 = sand.u32 %s62, 1
          %s358 = scalar_lea.vmem [#allocation9], %s357
          %s360 = ssub.s32 16, 16
          %361 = vsyncadd %s356, %s360
          %s362 = smul.addr %s26, 16
          %s363 = scalar_lea.hbm %s1, %s362
          %s365 = sshll.u32 %s358, 4
          %s366 = int_to_ptr.vmem [resolvable:$true] %s365
          %368 = dma.hbm_to_vmem [thread:$0]  %s363, 16, %s366, %s356
        $region52: #{tpu_custom_call.1} parent=43 // pred_fallthru
          _
      $region44: #{tpu_custom_call.1} parent=5 // pred_fallthru
        _
      %p369 = scmp.le.s32.totalorder 1, %s26
      %p370 = scmp.lt.s32.totalorder %s26, 3
      %p371 = pnand %p369, %p370
      %p372 = pneg %p371
      // Predicated region
      $region53: #{tpu_custom_call.1} parent=5 // pred_check
        _
      $region54: #{tpu_custom_call.1} parent=5 // pred_check_branch
        %374 = sbr.rel (%p371) target = $region56
      $region55: #{tpu_custom_call.1} parent=5 // pred_region
        %s375 = ssub.s32 %s26, 1
        %s376 = sand.u32 %s39, 1
        %s377 = scalar_lea.sflag [#allocation7], %s376
        %s378 = sand.u32 %s39, 1
        %s379 = smul.addr %s378, 16
        %s380 = scalar_lea.vmem [#allocation6], %s379
        // Predicated region
        $region57: #{tpu_custom_call.1} parent=55 // pred_check
          %p381 = pneg %p52
        $region58: #{tpu_custom_call.1} parent=55 // pred_check_branch
          %383 = sbr.rel (%p381) target = $region60
        $region59: #{tpu_custom_call.1} parent=55 // pred_region
          %384 = dma.done %s377, 256
        $region60: #{tpu_custom_call.1} parent=55 // pred_fallthru
          _
        %s385 = sand.u32 %s31, 1
        %s386 = scalar_lea.sflag [#allocation10], %s385
        %s387 = sand.u32 %s65, 1
        %s388 = scalar_lea.vmem [#allocation9], %s387
        // Predicated region
        $region61: #{tpu_custom_call.1} parent=55 // pred_check
          %p389 = pneg %p78
        $region62: #{tpu_custom_call.1} parent=55 // pred_check_branch
          %391 = sbr.rel (%p389) target = $region64
        $region63: #{tpu_custom_call.1} parent=55 // pred_region
          %392 = dma.done %s386, 16
        $region64: #{tpu_custom_call.1} parent=55 // pred_fallthru
          _
        // Predicated region
        $region65: #{tpu_custom_call.1} parent=55 // pred_check
          %p393 = pneg %p141
        $region66: #{tpu_custom_call.1} parent=55 // pred_check_branch
          %395 = sbr.rel (%p393) target = $region68
        $region67: #{tpu_custom_call.1} parent=55 // pred_region
          %396 = dma.done [#allocation10], 512
        $region68: #{tpu_custom_call.1} parent=55 // pred_fallthru
          _
        // Predicated region
        $region69: #{tpu_custom_call.1} parent=55 // pred_check
          %p397 = pneg %p162
        $region70: #{tpu_custom_call.1} parent=55 // pred_check_branch
          %399 = sbr.rel (%p397) target = $region72
        $region71: #{tpu_custom_call.1} parent=55 // pred_region
          %400 = dma.done [#allocation13], 512
        $region72: #{tpu_custom_call.1} parent=55 // pred_fallthru
          _
        // Predicated region
        $region73: #{tpu_custom_call.1} parent=55 // pred_check
          %p401 = pneg %p183
        $region74: #{tpu_custom_call.1} parent=55 // pred_check_branch
          %403 = sbr.rel (%p401) target = $region76
        $region75: #{tpu_custom_call.1} parent=55 // pred_region
          %404 = dma.done [#allocation13], 512
        $region76: #{tpu_custom_call.1} parent=55 // pred_fallthru
          _
        // Predicated region
        $region77: #{tpu_custom_call.1} parent=55 // pred_check
          %p405 = pneg %p204
        $region78: #{tpu_custom_call.1} parent=55 // pred_check_branch
          %407 = sbr.rel (%p405) target = $region80
        $region79: #{tpu_custom_call.1} parent=55 // pred_region
          %408 = dma.done [#allocation16], 512
        $region80: #{tpu_custom_call.1} parent=55 // pred_fallthru
          _
        %s409 = sand.u32 %s39, 1
        %s410 = scalar_lea.sflag [#allocation7], %s409
        %s411 = sand.u32 %s39, 1
        %s412 = smul.addr %s411, 16
        %s413 = scalar_lea.vmem [#allocation6], %s412
        %p414 = pneg %p52
        %p415 = pneg %p49
        %s416 = sand.u32 %s31, 1
        %s417 = scalar_lea.sflag [#allocation10], %s416
        %s418 = sand.u32 %s65, 1
        %s419 = scalar_lea.vmem [#allocation9], %s418
        %p420 = pneg %p78
        %p421 = pneg %p75
        %p422 = pneg %p99
        %p423 = pneg %p96
        %p424 = pneg %p120
        %p425 = pneg %p117
        %p426 = pneg %p141
        %p427 = pneg %p138
        %p428 = pneg %p162
        %p429 = pneg %p159
        %p430 = pneg %p183
        %p431 = pneg %p180
        %p432 = pneg %p204
        %p433 = pneg %p201
        %p434 = pneg %p225
        %p435 = pneg %p222
        %p436 = pneg %p251
        %p437 = pneg %p248
        %s438 = sand.u32 %s238, 1
        %s439 = scalar_lea.sflag [#allocation8], %s438
        %s440 = sand.u32 %s238, 1
        %s441 = smul.addr %s440, 16
        %s442 = scalar_lea.vmem [#allocation17], %s441
        %v443 = vld [vmem:[%s380] sm:$0xff]
        %v444 = vld [vmem:[%s380 + $0x8] sm:$0xff]
        %v445 = vld [vmem:[%s2] sm:$0x1]
        %v446 = vld [vmem:[%s3] sm:$0x1]
        %vm447 = vcmask 261120
        %v448 = vsel %vm447, %v443, 0.0
        %449 = vadd.xlane.f32.xlu0 %v448
        %v450 = vpop.xlane.xlu0 %449
        %v451 = vsel %vm447, %v444, 0.0
        %452 = vadd.xlane.f32.xlu0 %v451
        %v453 = vpop.xlane.xlu0 %452
        %v454 = vrcp.pop 32.0
        %v455 = vmul.f32 %v450, %v454
        %v456 = vmul.f32 %v453, %v454
        %v457 = vsub.f32 %v443, %v455
        %v458 = vsub.f32 %v444, %v456
        %v459 = vmul.f32 %v457, %v457
        %v460 = vmul.f32 %v458, %v458
        %v461 = vsel %vm447, %v459, 0.0
        %462 = vadd.xlane.f32.xlu0 %v461
        %v463 = vpop.xlane.xlu0 %462
        %v464 = vsel %vm447, %v460, 0.0
        %465 = vadd.xlane.f32.xlu0 %v464
        %v466 = vpop.xlane.xlu0 %465
        %v467 = vmul.f32 %v463, %v454
        %v468 = vmul.f32 %v466, %v454
        %v469 = vadd.f32 %v467, 1e-05
        %v470 = vadd.f32 %v468, 1e-05
        %v471 = vrsqrt.pop %v469
        %v472 = vrsqrt.pop %v470
        %v473 = vmul.f32 %v457, %v471
        %v474 = vmul.f32 %v458, %v472
        %v476 = vlaneseq
        %v477 = vshrl.u32 %v476, 7
        %v478 = vsub.s32 0, %v477
        %v479 = vrot.slane %v445, %v478
        %v481 = vmul.f32 %v473, %v479
        %v482 = vmul.f32 %v474, %v479
        %v484 = vlaneseq
        %v485 = vshrl.u32 %v484, 7
        %v486 = vsub.s32 0, %v485
        %v487 = vrot.slane %v446, %v486
        %v489 = vadd.f32 %v481, %v487
        %v490 = vadd.f32 %v482, %v487
        %v491 = vld [vmem:[#allocation11] sm:$0xff]
        %v492 = vld [vmem:[#allocation11 + $0x8] sm:$0xff]
        %v493 = vld [vmem:[#allocation11 + $0x10] sm:$0xff]
        %v494 = vld [vmem:[#allocation11 + $0x18] sm:$0xff]
        %v496 = vsel %vm447, %v489, 0
        %v499 = vsel %vm447, %v490, 0
        %501 = vmatprep.subr.mxu0 0.0
        %502 = vmatpush1.msra.mxu0 0.0
        %503 = vmatprep.subr.mxu0 0.0
        %504 = vmatpush1.msra.mxu0 0.0
        %505 = vmatprep.subr.mxu0 0.0
        %506 = vmatpush1.msra.mxu0 0.0
        %507 = vmatprep.subr.mxu0 0.0
        %508 = vmatpush1.msra.mxu0 0.0
        %509 = vmatprep.subr.mxu0 0.0
        %510 = vmatpush1.msra.mxu0 0.0
        %511 = vmatprep.subr.mxu0 0.0
        %512 = vmatpush1.msra.mxu0 0.0
        %513 = vmatprep.subr.mxu0 0.0
        %514 = vmatpush1.msra.mxu0 0.0
        %515 = vmatprep.subr.mxu0 0.0
        %516 = vmatpush1.msra.mxu0 0.0
        %517 = vmatprep.subr.mxu0 0.0
        %518 = vmatpush1.msra.mxu0 0.0
        %519 = vmatprep.subr.mxu0 0.0
        %520 = vmatpush1.msra.mxu0 0.0
        %521 = vmatprep.subr.mxu0 0.0
        %522 = vmatpush1.msra.mxu0 0.0
        %523 = vmatprep.subr.mxu0 0.0
        %524 = vmatpush1.msra.mxu0 0.0
        %525 = vmatprep.subr.mxu0 0.0
        %526 = vmatpush1.msra.mxu0 %v494
        %527 = vmatprep.subr.mxu0 0.0
        %528 = vmatpush1.msra.mxu0 %v493
        %529 = vmatprep.subr.mxu0 0.0
        %530 = vmatpush1.msra.mxu0 %v492
        %531 = vmatprep.subr.mxu0 0.0
        %532 = vmatpush1.msra.mxu0 %v491
        %533 = vmatprep.subr.mxu0 0.0
        %534 = vmatpush2.msra.mxu0 0.0
        %535 = vmatprep.subr.mxu0 0.0
        %536 = vmatpush2.msra.mxu0 0.0
        %537 = vmatprep.subr.mxu0 0.0
        %538 = vmatpush2.msra.mxu0 0.0
        %539 = vmatprep.subr.mxu0 0.0
        %540 = vmatpush2.msra.mxu0 0.0
        %541 = vmatprep.subr.mxu0 0.0
        %542 = vmatpush2.msra.mxu0 0.0
        %543 = vmatprep.subr.mxu0 0.0
        %544 = vmatpush2.msra.mxu0 0.0
        %545 = vmatprep.subr.mxu0 0.0
        %546 = vmatpush2.msra.mxu0 0.0
        %547 = vmatprep.subr.mxu0 0.0
        %548 = vmatpush2.msra.mxu0 0.0
        %549 = vmatprep.subr.mxu0 0.0
        %550 = vmatpush2.msra.mxu0 0.0
        %551 = vmatprep.subr.mxu0 0.0
        %552 = vmatpush2.msra.mxu0 0.0
        %553 = vmatprep.subr.mxu0 0.0
        %554 = vmatpush2.msra.mxu0 0.0
        %555 = vmatprep.subr.mxu0 0.0
        %556 = vmatpush2.msra.mxu0 0.0
        %557 = vmatprep.subr.mxu0 0.0
        %558 = vmatpush2.msra.mxu0 0.0
        %559 = vmatprep.subr.mxu0 0.0
        %560 = vmatpush2.msra.mxu0 0.0
        %561 = vmatprep.subr.mxu0 0.0
        %562 = vmatpush2.msra.mxu0 0.0
        %563 = vmatprep.subr.mxu0 0.0
        %564 = vmatpush2.msra.mxu0 0.0
        %565 = vmatprep.mubr.f32.mxu0 0.0
        %566 = vmatmul.mubr.f32.gmra.mxu0 %v496
        %v567 = vpop.f32.mrf.mxu0
        %v568 = vadd.f32 0.0, %v567
        %v569 = vpop.f32.mrf.mxu0
        %570 = vmatprep.mubr.f32.mxu0 0.0
        %571 = vmatmul.mubr.f32.gmra.mxu0 %v499
        %v572 = vpop.f32.mrf.mxu0
        %v573 = vadd.f32 0.0, %v572
        %v574 = vpop.f32.mrf.mxu0
        %575 = vdwg.mxu0
        %576 = vst.msk [vmem:[#allocation2] sm:$0xff] %vm447, %v568
        %577 = vst.msk [vmem:[#allocation2 + $0x8] sm:$0xff] %vm447, %v573
        %v578 = vld [vmem:[#allocation12] sm:$0xff]
        %v579 = vld [vmem:[#allocation12 + $0x8] sm:$0xff]
        %v580 = vld [vmem:[#allocation12 + $0x10] sm:$0xff]
        %v581 = vld [vmem:[#allocation12 + $0x18] sm:$0xff]
        %582 = vmatprep.subr.mxu0 0.0
        %583 = vmatpush1.msra.mxu0 0.0
        %584 = vmatprep.subr.mxu0 0.0
        %585 = vmatpush1.msra.mxu0 0.0
        %586 = vmatprep.subr.mxu0 0.0
        %587 = vmatpush1.msra.mxu0 0.0
        %588 = vmatprep.subr.mxu0 0.0
        %589 = vmatpush1.msra.mxu0 0.0
        %590 = vmatprep.subr.mxu0 0.0
        %591 = vmatpush1.msra.mxu0 0.0
        %592 = vmatprep.subr.mxu0 0.0
        %593 = vmatpush1.msra.mxu0 0.0
        %594 = vmatprep.subr.mxu0 0.0
        %595 = vmatpush1.msra.mxu0 0.0
        %596 = vmatprep.subr.mxu0 0.0
        %597 = vmatpush1.msra.mxu0 0.0
        %598 = vmatprep.subr.mxu0 0.0
        %599 = vmatpush1.msra.mxu0 0.0
        %600 = vmatprep.subr.mxu0 0.0
        %601 = vmatpush1.msra.mxu0 0.0
        %602 = vmatprep.subr.mxu0 0.0
        %603 = vmatpush1.msra.mxu0 0.0
        %604 = vmatprep.subr.mxu0 0.0
        %605 = vmatpush1.msra.mxu0 0.0
        %606 = vmatprep.subr.mxu0 0.0
        %607 = vmatpush1.msra.mxu0 %v581
        %608 = vmatprep.subr.mxu0 0.0
        %609 = vmatpush1.msra.mxu0 %v580
        %610 = vmatprep.subr.mxu0 0.0
        %611 = vmatpush1.msra.mxu0 %v579
        %612 = vmatprep.subr.mxu0 0.0
        %613 = vmatpush1.msra.mxu0 %v578
        %614 = vmatprep.subr.mxu0 0.0
        %615 = vmatpush2.msra.mxu0 0.0
        %616 = vmatprep.subr.mxu0 0.0
        %617 = vmatpush2.msra.mxu0 0.0
        %618 = vmatprep.subr.mxu0 0.0
        %619 = vmatpush2.msra.mxu0 0.0
        %620 = vmatprep.subr.mxu0 0.0
        %621 = vmatpush2.msra.mxu0 0.0
        %622 = vmatprep.subr.mxu0 0.0
        %623 = vmatpush2.msra.mxu0 0.0
        %624 = vmatprep.subr.mxu0 0.0
        %625 = vmatpush2.msra.mxu0 0.0
        %626 = vmatprep.subr.mxu0 0.0
        %627 = vmatpush2.msra.mxu0 0.0
        %628 = vmatprep.subr.mxu0 0.0
        %629 = vmatpush2.msra.mxu0 0.0
        %630 = vmatprep.subr.mxu0 0.0
        %631 = vmatpush2.msra.mxu0 0.0
        %632 = vmatprep.subr.mxu0 0.0
        %633 = vmatpush2.msra.mxu0 0.0
        %634 = vmatprep.subr.mxu0 0.0
        %635 = vmatpush2.msra.mxu0 0.0
        %636 = vmatprep.subr.mxu0 0.0
        %637 = vmatpush2.msra.mxu0 0.0
        %638 = vmatprep.subr.mxu0 0.0
        %639 = vmatpush2.msra.mxu0 0.0
        %640 = vmatprep.subr.mxu0 0.0
        %641 = vmatpush2.msra.mxu0 0.0
        %642 = vmatprep.subr.mxu0 0.0
        %643 = vmatpush2.msra.mxu0 0.0
        %644 = vmatprep.subr.mxu0 0.0
        %645 = vmatpush2.msra.mxu0 0.0
        %646 = vmatprep.mubr.f32.mxu0 0.0
        %647 = vmatmul.mubr.f32.gmra.mxu0 %v496
        %v648 = vpop.f32.mrf.mxu0
        %v649 = vadd.f32 0.0, %v648
        %v650 = vpop.f32.mrf.mxu0
        %651 = vmatprep.mubr.f32.mxu0 0.0
        %652 = vmatmul.mubr.f32.gmra.mxu0 %v499
        %v653 = vpop.f32.mrf.mxu0
        %v654 = vadd.f32 0.0, %v653
        %v655 = vpop.f32.mrf.mxu0
        %656 = vdwg.mxu0
        %657 = vst.msk [vmem:[#allocation3] sm:$0xff] %vm447, %v649
        %658 = vst.msk [vmem:[#allocation3 + $0x8] sm:$0xff] %vm447, %v654
        %v659 = vld [vmem:[#allocation14] sm:$0xff]
        %v660 = vld [vmem:[#allocation14 + $0x8] sm:$0xff]
        %v661 = vld [vmem:[#allocation14 + $0x10] sm:$0xff]
        %v662 = vld [vmem:[#allocation14 + $0x18] sm:$0xff]
        %663 = vmatprep.subr.mxu0 0.0
        %664 = vmatpush1.msra.mxu0 0.0
        %665 = vmatprep.subr.mxu0 0.0
        %666 = vmatpush1.msra.mxu0 0.0
        %667 = vmatprep.subr.mxu0 0.0
        %668 = vmatpush1.msra.mxu0 0.0
        %669 = vmatprep.subr.mxu0 0.0
        %670 = vmatpush1.msra.mxu0 0.0
        %671 = vmatprep.subr.mxu0 0.0
        %672 = vmatpush1.msra.mxu0 0.0
        %673 = vmatprep.subr.mxu0 0.0
        %674 = vmatpush1.msra.mxu0 0.0
        %675 = vmatprep.subr.mxu0 0.0
        %676 = vmatpush1.msra.mxu0 0.0
        %677 = vmatprep.subr.mxu0 0.0
        %678 = vmatpush1.msra.mxu0 0.0
        %679 = vmatprep.subr.mxu0 0.0
        %680 = vmatpush1.msra.mxu0 0.0
        %681 = vmatprep.subr.mxu0 0.0
        %682 = vmatpush1.msra.mxu0 0.0
        %683 = vmatprep.subr.mxu0 0.0
        %684 = vmatpush1.msra.mxu0 0.0
        %685 = vmatprep.subr.mxu0 0.0
        %686 = vmatpush1.msra.mxu0 0.0
        %687 = vmatprep.subr.mxu0 0.0
        %688 = vmatpush1.msra.mxu0 %v662
        %689 = vmatprep.subr.mxu0 0.0
        %690 = vmatpush1.msra.mxu0 %v661
        %691 = vmatprep.subr.mxu0 0.0
        %692 = vmatpush1.msra.mxu0 %v660
        %693 = vmatprep.subr.mxu0 0.0
        %694 = vmatpush1.msra.mxu0 %v659
        %695 = vmatprep.subr.mxu0 0.0
        %696 = vmatpush2.msra.mxu0 0.0
        %697 = vmatprep.subr.mxu0 0.0
        %698 = vmatpush2.msra.mxu0 0.0
        %699 = vmatprep.subr.mxu0 0.0
        %700 = vmatpush2.msra.mxu0 0.0
        %701 = vmatprep.subr.mxu0 0.0
        %702 = vmatpush2.msra.mxu0 0.0
        %703 = vmatprep.subr.mxu0 0.0
        %704 = vmatpush2.msra.mxu0 0.0
        %705 = vmatprep.subr.mxu0 0.0
        %706 = vmatpush2.msra.mxu0 0.0
        %707 = vmatprep.subr.mxu0 0.0
        %708 = vmatpush2.msra.mxu0 0.0
        %709 = vmatprep.subr.mxu0 0.0
        %710 = vmatpush2.msra.mxu0 0.0
        %711 = vmatprep.subr.mxu0 0.0
        %712 = vmatpush2.msra.mxu0 0.0
        %713 = vmatprep.subr.mxu0 0.0
        %714 = vmatpush2.msra.mxu0 0.0
        %715 = vmatprep.subr.mxu0 0.0
        %716 = vmatpush2.msra.mxu0 0.0
        %717 = vmatprep.subr.mxu0 0.0
        %718 = vmatpush2.msra.mxu0 0.0
        %719 = vmatprep.subr.mxu0 0.0
        %720 = vmatpush2.msra.mxu0 0.0
        %721 = vmatprep.subr.mxu0 0.0
        %722 = vmatpush2.msra.mxu0 0.0
        %723 = vmatprep.subr.mxu0 0.0
        %724 = vmatpush2.msra.mxu0 0.0
        %725 = vmatprep.subr.mxu0 0.0
        %726 = vmatpush2.msra.mxu0 0.0
        %727 = vmatprep.mubr.f32.mxu0 0.0
        %728 = vmatmul.mubr.f32.gmra.mxu0 %v496
        %v729 = vpop.f32.mrf.mxu0
        %v730 = vadd.f32 0.0, %v729
        %v731 = vpop.f32.mrf.mxu0
        %732 = vmatprep.mubr.f32.mxu0 0.0
        %733 = vmatmul.mubr.f32.gmra.mxu0 %v499
        %v734 = vpop.f32.mrf.mxu0
        %v735 = vadd.f32 0.0, %v734
        %v736 = vpop.f32.mrf.mxu0
        %737 = vdwg.mxu0
        %738 = vst.msk [vmem:[#allocation4] sm:$0xff] %vm447, %v730
        %739 = vst.msk [vmem:[#allocation4 + $0x8] sm:$0xff] %vm447, %v735
        %v740 = vld [vmem:[%s388] sm:$0x1]
        %vm741 = vcmp.gt.f32.partialorder %v740, 0.5
        %v742 = vsel %vm741, 0.0, -3.4028235e+38
        %v743 = vld [vmem:[#allocation2] sm:$0xff]
        %v744 = vld [vmem:[#allocation2 + $0x8] sm:$0xff]
        %v745 = vld [vmem:[#allocation3] sm:$0xff]
        %v746 = vld [vmem:[#allocation3 + $0x8] sm:$0xff]
        %vm747 = vcmask 64512
        %v748 = vsel %vm747, %v743, 0.0
        %749 = vadd.xlane.f32.xlu0 %v748
        %v750 = vpop.xlane.xlu0 %749
        %v751 = vsel %vm747, %v744, 0.0
        %752 = vadd.xlane.f32.xlu0 %v751
        %v753 = vpop.xlane.xlu0 %752
        %v754 = vrcp.pop 8.0
        %v755 = vmul.f32 %v750, %v754
        %v756 = vmul.f32 %v753, %v754
        %v757 = vsub.f32 %v743, %v755
        %v758 = vsub.f32 %v744, %v756
        %v759 = vsel %vm747, %v745, 0.0
        %760 = vadd.xlane.f32.xlu0 %v759
        %v761 = vpop.xlane.xlu0 %760
        %v762 = vsel %vm747, %v746, 0.0
        %763 = vadd.xlane.f32.xlu0 %v762
        %v764 = vpop.xlane.xlu0 %763
        %v765 = vmul.f32 %v761, %v754
        %v766 = vmul.f32 %v764, %v754
        %v767 = vsub.f32 %v745, %v765
        %v768 = vsub.f32 %v746, %v766
        %v769 = vmul.f32 %v757, %v757
        %v770 = vmul.f32 %v758, %v758
        %v771 = vsel %vm747, %v769, 0.0
        %772 = vadd.xlane.f32.xlu0 %v771
        %v773 = vpop.xlane.xlu0 %772
        %v774 = vsel %vm747, %v770, 0.0
        %775 = vadd.xlane.f32.xlu0 %v774
        %v776 = vpop.xlane.xlu0 %775
        %v777 = vadd.f32 %v773, 1e-12
        %v778 = vadd.f32 %v776, 1e-12
        %v779 = vrsqrt.pop %v777
        %v780 = vrsqrt.pop %v778
        %v781 = vmul.f32 %v757, %v779
        %v782 = vmul.f32 %v758, %v780
        %v783 = vmul.f32 %v767, %v767
        %v784 = vmul.f32 %v768, %v768
        %v785 = vsel %vm747, %v783, 0.0
        %786 = vadd.xlane.f32.xlu0 %v785
        %v787 = vpop.xlane.xlu0 %786
        %v788 = vsel %vm747, %v784, 0.0
        %789 = vadd.xlane.f32.xlu0 %v788
        %v790 = vpop.xlane.xlu0 %789
        %v791 = vadd.f32 %v787, 1e-12
        %v792 = vadd.f32 %v790, 1e-12
        %v793 = vrsqrt.pop %v791
        %v794 = vrsqrt.pop %v792
        %v795 = vmul.f32 %v767, %v793
        %v796 = vmul.f32 %v768, %v794
        %v798 = vlaneseq
        %v799 = vshrl.u32 %v798, 7
        %v800 = vsub.s32 0, %v799
        %v801 = vrot.slane %v742, %v800
        %v804 = vsel %vm747, %v781, 0
        %v807 = vsel %vm747, %v782, 0
        %v810 = vsel %vm747, %v795, 0
        %v813 = vsel %vm747, %v796, 0
        %815 = vmatprep.subr.mxu0 0.0
        %816 = vmatpush1.xpose.msra.mxu0 0.0
        %817 = vmatprep.subr.mxu0 0.0
        %818 = vmatpush1.xpose.msra.mxu0 0.0
        %819 = vmatprep.subr.mxu0 0.0
        %820 = vmatpush1.xpose.msra.mxu0 0.0
        %821 = vmatprep.subr.mxu0 0.0
        %822 = vmatpush1.xpose.msra.mxu0 0.0
        %823 = vmatprep.subr.mxu0 0.0
        %824 = vmatpush1.xpose.msra.mxu0 0.0
        %825 = vmatprep.subr.mxu0 0.0
        %826 = vmatpush1.xpose.msra.mxu0 0.0
        %827 = vmatprep.subr.mxu0 0.0
        %828 = vmatpush1.xpose.msra.mxu0 0.0
        %829 = vmatprep.subr.mxu0 0.0
        %830 = vmatpush1.xpose.msra.mxu0 0.0
        %831 = vmatprep.subr.mxu0 0.0
        %832 = vmatpush1.xpose.msra.mxu0 0.0
        %833 = vmatprep.subr.mxu0 0.0
        %834 = vmatpush1.xpose.msra.mxu0 0.0
        %835 = vmatprep.subr.mxu0 0.0
        %836 = vmatpush1.xpose.msra.mxu0 0.0
        %837 = vmatprep.subr.mxu0 0.0
        %838 = vmatpush1.xpose.msra.mxu0 0.0
        %839 = vmatprep.subr.mxu0 0.0
        %840 = vmatpush1.xpose.msra.mxu0 0.0
        %841 = vmatprep.subr.mxu0 0.0
        %842 = vmatpush1.xpose.msra.mxu0 0.0
        %843 = vmatprep.subr.mxu0 0.0
        %844 = vmatpush1.xpose.msra.mxu0 %v813
        %845 = vmatprep.subr.mxu0 0.0
        %846 = vmatpush1.xpose.msra.mxu0 %v810
        %847 = vmatprep.subr.mxu0 0.0
        %848 = vmatpush2.xpose.msra.mxu0 0.0
        %849 = vmatprep.subr.mxu0 0.0
        %850 = vmatpush2.xpose.msra.mxu0 0.0
        %851 = vmatprep.subr.mxu0 0.0
        %852 = vmatpush2.xpose.msra.mxu0 0.0
        %853 = vmatprep.subr.mxu0 0.0
        %854 = vmatpush2.xpose.msra.mxu0 0.0
        %855 = vmatprep.subr.mxu0 0.0
        %856 = vmatpush2.xpose.msra.mxu0 0.0
        %857 = vmatprep.subr.mxu0 0.0
        %858 = vmatpush2.xpose.msra.mxu0 0.0
        %859 = vmatprep.subr.mxu0 0.0
        %860 = vmatpush2.xpose.msra.mxu0 0.0
        %861 = vmatprep.subr.mxu0 0.0
        %862 = vmatpush2.xpose.msra.mxu0 0.0
        %863 = vmatprep.subr.mxu0 0.0
        %864 = vmatpush2.xpose.msra.mxu0 0.0
        %865 = vmatprep.subr.mxu0 0.0
        %866 = vmatpush2.xpose.msra.mxu0 0.0
        %867 = vmatprep.subr.mxu0 0.0
        %868 = vmatpush2.xpose.msra.mxu0 0.0
        %869 = vmatprep.subr.mxu0 0.0
        %870 = vmatpush2.xpose.msra.mxu0 0.0
        %871 = vmatprep.subr.mxu0 0.0
        %872 = vmatpush2.xpose.msra.mxu0 0.0
        %873 = vmatprep.subr.mxu0 0.0
        %874 = vmatpush2.xpose.msra.mxu0 0.0
        %875 = vmatprep.subr.mxu0 0.0
        %876 = vmatpush2.xpose.msra.mxu0 0.0
        %877 = vmatprep.subr.mxu0 0.0
        %878 = vmatpush2.xpose.msra.mxu0 0.0
        %879 = vmatprep.mubr.f32.mxu0 0.0
        %880 = vmatmul.mubr.f32.gmra.mxu0 %v804
        %v881 = vpop.f32.mrf.mxu0
        %v882 = vadd.f32 %v801, %v881
        %v883 = vpop.f32.mrf.mxu0
        %884 = vmatprep.mubr.f32.mxu0 0.0
        %885 = vmatmul.mubr.f32.gmra.mxu0 %v807
        %v886 = vpop.f32.mrf.mxu0
        %v887 = vadd.f32 %v801, %v886
        %v888 = vpop.f32.mrf.mxu0
        %889 = vdwg.mxu0
        %vm890 = vcmask 130048
        %v891 = vsel %vm890, %v882, -inf
        %892 = vmax.xlane.f32.xlu0 %v891
        %v893 = vpop.xlane.xlu0 %892
        %v894 = vsel %vm890, %v887, -inf
        %895 = vmax.xlane.f32.xlu0 %v894
        %v896 = vpop.xlane.xlu0 %895
        %v897 = vsub.f32 %v882, %v893
        %v898 = vsub.f32 %v887, %v896
        %v899 = vmul.f32 %v897, 1.442695
        %v900 = vpow.pop %v899
        %v901 = vmul.f32 %v898, 1.442695
        %v902 = vpow.pop %v901
        %v903 = vsel %vm890, %v900, 0.0
        %904 = vadd.xlane.f32.xlu0 %v903
        %v905 = vpop.xlane.xlu0 %904
        %v906 = vsel %vm890, %v902, 0.0
        %907 = vadd.xlane.f32.xlu0 %v906
        %v908 = vpop.xlane.xlu0 %907
        %v909 = vrcp.pop %v905
        %v910 = vrcp.pop %v908
        %v911 = vmul.f32 %v900, %v909
        %v912 = vmul.f32 %v902, %v910
        %v913 = vld [vmem:[#allocation4] sm:$0xff]
        %v914 = vld [vmem:[#allocation4 + $0x8] sm:$0xff]
        %v916 = vsel %vm890, %v911, 0
        %v919 = vsel %vm890, %v912, 0
        %921 = vmatprep.subr.mxu0 0.0
        %922 = vmatpush1.msra.mxu0 0.0
        %923 = vmatprep.subr.mxu0 0.0
        %924 = vmatpush1.msra.mxu0 0.0
        %925 = vmatprep.subr.mxu0 0.0
        %926 = vmatpush1.msra.mxu0 0.0
        %927 = vmatprep.subr.mxu0 0.0
        %928 = vmatpush1.msra.mxu0 0.0
        %929 = vmatprep.subr.mxu0 0.0
        %930 = vmatpush1.msra.mxu0 0.0
        %931 = vmatprep.subr.mxu0 0.0
        %932 = vmatpush1.msra.mxu0 0.0
        %933 = vmatprep.subr.mxu0 0.0
        %934 = vmatpush1.msra.mxu0 0.0
        %935 = vmatprep.subr.mxu0 0.0
        %936 = vmatpush1.msra.mxu0 0.0
        %937 = vmatprep.subr.mxu0 0.0
        %938 = vmatpush1.msra.mxu0 0.0
        %939 = vmatprep.subr.mxu0 0.0
        %940 = vmatpush1.msra.mxu0 0.0
        %941 = vmatprep.subr.mxu0 0.0
        %942 = vmatpush1.msra.mxu0 0.0
        %943 = vmatprep.subr.mxu0 0.0
        %944 = vmatpush1.msra.mxu0 0.0
        %945 = vmatprep.subr.mxu0 0.0
        %946 = vmatpush1.msra.mxu0 0.0
        %947 = vmatprep.subr.mxu0 0.0
        %948 = vmatpush1.msra.mxu0 0.0
        %949 = vmatprep.subr.mxu0 0.0
        %950 = vmatpush1.msra.mxu0 %v914
        %951 = vmatprep.subr.mxu0 0.0
        %952 = vmatpush1.msra.mxu0 %v913
        %953 = vmatprep.subr.mxu0 0.0
        %954 = vmatpush2.msra.mxu0 0.0
        %955 = vmatprep.subr.mxu0 0.0
        %956 = vmatpush2.msra.mxu0 0.0
        %957 = vmatprep.subr.mxu0 0.0
        %958 = vmatpush2.msra.mxu0 0.0
        %959 = vmatprep.subr.mxu0 0.0
        %960 = vmatpush2.msra.mxu0 0.0
        %961 = vmatprep.subr.mxu0 0.0
        %962 = vmatpush2.msra.mxu0 0.0
        %963 = vmatprep.subr.mxu0 0.0
        %964 = vmatpush2.msra.mxu0 0.0
        %965 = vmatprep.subr.mxu0 0.0
        %966 = vmatpush2.msra.mxu0 0.0
        %967 = vmatprep.subr.mxu0 0.0
        %968 = vmatpush2.msra.mxu0 0.0
        %969 = vmatprep.subr.mxu0 0.0
        %970 = vmatpush2.msra.mxu0 0.0
        %971 = vmatprep.subr.mxu0 0.0
        %972 = vmatpush2.msra.mxu0 0.0
        %973 = vmatprep.subr.mxu0 0.0
        %974 = vmatpush2.msra.mxu0 0.0
        %975 = vmatprep.subr.mxu0 0.0
        %976 = vmatpush2.msra.mxu0 0.0
        %977 = vmatprep.subr.mxu0 0.0
        %978 = vmatpush2.msra.mxu0 0.0
        %979 = vmatprep.subr.mxu0 0.0
        %980 = vmatpush2.msra.mxu0 0.0
        %981 = vmatprep.subr.mxu0 0.0
        %982 = vmatpush2.msra.mxu0 0.0
        %983 = vmatprep.subr.mxu0 0.0
        %984 = vmatpush2.msra.mxu0 0.0
        %985 = vmatprep.mubr.f32.mxu0 0.0
        %986 = vmatmul.mubr.f32.gmra.mxu0 %v916
        %v987 = vpop.f32.mrf.mxu0
        %v988 = vadd.f32 0.0, %v987
        %v989 = vpop.f32.mrf.mxu0
        %990 = vmatprep.mubr.f32.mxu0 0.0
        %991 = vmatmul.mubr.f32.gmra.mxu0 %v919
        %v992 = vpop.f32.mrf.mxu0
        %v993 = vadd.f32 0.0, %v992
        %v994 = vpop.f32.mrf.mxu0
        %995 = vdwg.mxu0
        %996 = vst.msk [vmem:[#allocation5] sm:$0xff] %vm747, %v988
        %997 = vst.msk [vmem:[#allocation5 + $0x8] sm:$0xff] %vm747, %v993
        %v998 = vld [vmem:[#allocation2] sm:$0xff]
        %v999 = vld [vmem:[#allocation2 + $0x8] sm:$0xff]
        %v1000 = vld [vmem:[#allocation3] sm:$0xff]
        %v1001 = vld [vmem:[#allocation3 + $0x8] sm:$0xff]
        %1004 = vrot.lane.b32.xlu0 %v998, 120
        %v1005 = vpop.permute.xlu0 %1004
        %1006 = vrot.lane.b32.xlu0 %v999, 120
        %v1007 = vpop.permute.xlu0 %1006
        %v1010 = vsel %vm747, %v1005, 0.0
        %1011 = vadd.xlane.f32.xlu0 %v1010
        %v1012 = vpop.xlane.xlu0 %1011
        %v1013 = vsel %vm747, %v1007, 0.0
        %1014 = vadd.xlane.f32.xlu0 %v1013
        %v1015 = vpop.xlane.xlu0 %1014
        %v1016 = vmul.f32 %v1012, %v754
        %v1017 = vmul.f32 %v1015, %v754
        %v1018 = vsub.f32 %v998, %v1016
        %v1019 = vsub.f32 %v999, %v1017
        %1022 = vrot.lane.b32.xlu0 %v1000, 120
        %v1023 = vpop.permute.xlu0 %1022
        %1024 = vrot.lane.b32.xlu0 %v1001, 120
        %v1025 = vpop.permute.xlu0 %1024
        %v1028 = vsel %vm747, %v1023, 0.0
        %1029 = vadd.xlane.f32.xlu0 %v1028
        %v1030 = vpop.xlane.xlu0 %1029
        %v1031 = vsel %vm747, %v1025, 0.0
        %1032 = vadd.xlane.f32.xlu0 %v1031
        %v1033 = vpop.xlane.xlu0 %1032
        %v1034 = vmul.f32 %v1030, %v754
        %v1035 = vmul.f32 %v1033, %v754
        %v1036 = vsub.f32 %v1000, %v1034
        %v1037 = vsub.f32 %v1001, %v1035
        %v1038 = vmul.f32 %v1018, %v1018
        %v1039 = vmul.f32 %v1019, %v1019
        %1042 = vrot.lane.b32.xlu0 %v1038, 120
        %v1043 = vpop.permute.xlu0 %1042
        %1044 = vrot.lane.b32.xlu0 %v1039, 120
        %v1045 = vpop.permute.xlu0 %1044
        %v1048 = vsel %vm747, %v1043, 0.0
        %1049 = vadd.xlane.f32.xlu0 %v1048
        %v1050 = vpop.xlane.xlu0 %1049
        %v1051 = vsel %vm747, %v1045, 0.0
        %1052 = vadd.xlane.f32.xlu0 %v1051
        %v1053 = vpop.xlane.xlu0 %1052
        %v1054 = vadd.f32 %v1050, 1e-12
        %v1055 = vadd.f32 %v1053, 1e-12
        %v1056 = vrsqrt.pop %v1054
        %v1057 = vrsqrt.pop %v1055
        %v1058 = vmul.f32 %v1018, %v1056
        %v1059 = vmul.f32 %v1019, %v1057
        %v1060 = vmul.f32 %v1036, %v1036
        %v1061 = vmul.f32 %v1037, %v1037
        %1064 = vrot.lane.b32.xlu0 %v1060, 120
        %v1065 = vpop.permute.xlu0 %1064
        %1066 = vrot.lane.b32.xlu0 %v1061, 120
        %v1067 = vpop.permute.xlu0 %1066
        %v1070 = vsel %vm747, %v1065, 0.0
        %1071 = vadd.xlane.f32.xlu0 %v1070
        %v1072 = vpop.xlane.xlu0 %1071
        %v1073 = vsel %vm747, %v1067, 0.0
        %1074 = vadd.xlane.f32.xlu0 %v1073
        %v1075 = vpop.xlane.xlu0 %1074
        %v1076 = vadd.f32 %v1072, 1e-12
        %v1077 = vadd.f32 %v1075, 1e-12
        %v1078 = vrsqrt.pop %v1076
        %v1079 = vrsqrt.pop %v1077
        %v1080 = vmul.f32 %v1036, %v1078
        %v1081 = vmul.f32 %v1037, %v1079
        %1084 = vrot.lane.b32.xlu0 %v1058, 120
        %v1085 = vpop.permute.xlu0 %1084
        %1086 = vrot.lane.b32.xlu0 %v1059, 120
        %v1087 = vpop.permute.xlu0 %1086
        %1090 = vrot.lane.b32.xlu0 %v1080, 120
        %v1091 = vpop.permute.xlu0 %1090
        %1092 = vrot.lane.b32.xlu0 %v1081, 120
        %v1093 = vpop.permute.xlu0 %1092
        %v1094 = vsel %vm747, %v1085, 0
        %v1096 = vsel %vm747, %v1087, 0
        %v1098 = vsel %vm747, %v1091, 0
        %v1100 = vsel %vm747, %v1093, 0
        %1102 = vmatprep.subr.mxu0 0.0
        %1103 = vmatpush1.xpose.msra.mxu0 0.0
        %1104 = vmatprep.subr.mxu0 0.0
        %1105 = vmatpush1.xpose.msra.mxu0 0.0
        %1106 = vmatprep.subr.mxu0 0.0
        %1107 = vmatpush1.xpose.msra.mxu0 0.0
        %1108 = vmatprep.subr.mxu0 0.0
        %1109 = vmatpush1.xpose.msra.mxu0 0.0
        %1110 = vmatprep.subr.mxu0 0.0
        %1111 = vmatpush1.xpose.msra.mxu0 0.0
        %1112 = vmatprep.subr.mxu0 0.0
        %1113 = vmatpush1.xpose.msra.mxu0 0.0
        %1114 = vmatprep.subr.mxu0 0.0
        %1115 = vmatpush1.xpose.msra.mxu0 0.0
        %1116 = vmatprep.subr.mxu0 0.0
        %1117 = vmatpush1.xpose.msra.mxu0 0.0
        %1118 = vmatprep.subr.mxu0 0.0
        %1119 = vmatpush1.xpose.msra.mxu0 0.0
        %1120 = vmatprep.subr.mxu0 0.0
        %1121 = vmatpush1.xpose.msra.mxu0 0.0
        %1122 = vmatprep.subr.mxu0 0.0
        %1123 = vmatpush1.xpose.msra.mxu0 0.0
        %1124 = vmatprep.subr.mxu0 0.0
        %1125 = vmatpush1.xpose.msra.mxu0 0.0
        %1126 = vmatprep.subr.mxu0 0.0
        %1127 = vmatpush1.xpose.msra.mxu0 0.0
        %1128 = vmatprep.subr.mxu0 0.0
        %1129 = vmatpush1.xpose.msra.mxu0 0.0
        %1130 = vmatprep.subr.mxu0 0.0
        %1131 = vmatpush1.xpose.msra.mxu0 %v1100
        %1132 = vmatprep.subr.mxu0 0.0
        %1133 = vmatpush1.xpose.msra.mxu0 %v1098
        %1134 = vmatprep.subr.mxu0 0.0
        %1135 = vmatpush2.xpose.msra.mxu0 0.0
        %1136 = vmatprep.subr.mxu0 0.0
        %1137 = vmatpush2.xpose.msra.mxu0 0.0
        %1138 = vmatprep.subr.mxu0 0.0
        %1139 = vmatpush2.xpose.msra.mxu0 0.0
        %1140 = vmatprep.subr.mxu0 0.0
        %1141 = vmatpush2.xpose.msra.mxu0 0.0
        %1142 = vmatprep.subr.mxu0 0.0
        %1143 = vmatpush2.xpose.msra.mxu0 0.0
        %1144 = vmatprep.subr.mxu0 0.0
        %1145 = vmatpush2.xpose.msra.mxu0 0.0
        %1146 = vmatprep.subr.mxu0 0.0
        %1147 = vmatpush2.xpose.msra.mxu0 0.0
        %1148 = vmatprep.subr.mxu0 0.0
        %1149 = vmatpush2.xpose.msra.mxu0 0.0
        %1150 = vmatprep.subr.mxu0 0.0
        %1151 = vmatpush2.xpose.msra.mxu0 0.0
        %1152 = vmatprep.subr.mxu0 0.0
        %1153 = vmatpush2.xpose.msra.mxu0 0.0
        %1154 = vmatprep.subr.mxu0 0.0
        %1155 = vmatpush2.xpose.msra.mxu0 0.0
        %1156 = vmatprep.subr.mxu0 0.0
        %1157 = vmatpush2.xpose.msra.mxu0 0.0
        %1158 = vmatprep.subr.mxu0 0.0
        %1159 = vmatpush2.xpose.msra.mxu0 0.0
        %1160 = vmatprep.subr.mxu0 0.0
        %1161 = vmatpush2.xpose.msra.mxu0 0.0
        %1162 = vmatprep.subr.mxu0 0.0
        %1163 = vmatpush2.xpose.msra.mxu0 0.0
        %1164 = vmatprep.subr.mxu0 0.0
        %1165 = vmatpush2.xpose.msra.mxu0 0.0
        %1166 = vmatprep.mubr.f32.mxu0 0.0
        %1167 = vmatmul.mubr.f32.gmra.mxu0 %v1094
        %v1168 = vpop.f32.mrf.mxu0
        %v1169 = vadd.f32 %v801, %v1168
        %v1170 = vpop.f32.mrf.mxu0
        %1171 = vmatprep.mubr.f32.mxu0 0.0
        %1172 = vmatmul.mubr.f32.gmra.mxu0 %v1096
        %v1173 = vpop.f32.mrf.mxu0
        %v1174 = vadd.f32 %v801, %v1173
        %v1175 = vpop.f32.mrf.mxu0
        %1176 = vdwg.mxu0
        %v1177 = vsel %vm890, %v1169, -inf
        %1178 = vmax.xlane.f32.xlu0 %v1177
        %v1179 = vpop.xlane.xlu0 %1178
        %v1180 = vsel %vm890, %v1174, -inf
        %1181 = vmax.xlane.f32.xlu0 %v1180
        %v1182 = vpop.xlane.xlu0 %1181
        %v1183 = vsub.f32 %v1169, %v1179
        %v1184 = vsub.f32 %v1174, %v1182
        %v1185 = vmul.f32 %v1183, 1.442695
        %v1186 = vpow.pop %v1185
        %v1187 = vmul.f32 %v1184, 1.442695
        %v1188 = vpow.pop %v1187
        %v1189 = vsel %vm890, %v1186, 0.0
        %1190 = vadd.xlane.f32.xlu0 %v1189
        %v1191 = vpop.xlane.xlu0 %1190
        %v1192 = vsel %vm890, %v1188, 0.0
        %1193 = vadd.xlane.f32.xlu0 %v1192
        %v1194 = vpop.xlane.xlu0 %1193
        %v1195 = vrcp.pop %v1191
        %v1196 = vrcp.pop %v1194
        %v1197 = vmul.f32 %v1186, %v1195
        %v1198 = vmul.f32 %v1188, %v1196
        %v1199 = vld [vmem:[#allocation4] sm:$0xff]
        %v1200 = vld [vmem:[#allocation4 + $0x8] sm:$0xff]
        %1203 = vrot.lane.b32.xlu0 %v1199, 120
        %v1204 = vpop.permute.xlu0 %1203
        %1205 = vrot.lane.b32.xlu0 %v1200, 120
        %v1206 = vpop.permute.xlu0 %1205
        %v1210 = vsel %vm890, %v1197, 0
        %v1213 = vsel %vm890, %v1198, 0
        %1215 = vmatprep.subr.mxu0 0.0
        %1216 = vmatpush1.msra.mxu0 0.0
        %1217 = vmatprep.subr.mxu0 0.0
        %1218 = vmatpush1.msra.mxu0 0.0
        %1219 = vmatprep.subr.mxu0 0.0
        %1220 = vmatpush1.msra.mxu0 0.0
        %1221 = vmatprep.subr.mxu0 0.0
        %1222 = vmatpush1.msra.mxu0 0.0
        %1223 = vmatprep.subr.mxu0 0.0
        %1224 = vmatpush1.msra.mxu0 0.0
        %1225 = vmatprep.subr.mxu0 0.0
        %1226 = vmatpush1.msra.mxu0 0.0
        %1227 = vmatprep.subr.mxu0 0.0
        %1228 = vmatpush1.msra.mxu0 0.0
        %1229 = vmatprep.subr.mxu0 0.0
        %1230 = vmatpush1.msra.mxu0 0.0
        %1231 = vmatprep.subr.mxu0 0.0
        %1232 = vmatpush1.msra.mxu0 0.0
        %1233 = vmatprep.subr.mxu0 0.0
        %1234 = vmatpush1.msra.mxu0 0.0
        %1235 = vmatprep.subr.mxu0 0.0
        %1236 = vmatpush1.msra.mxu0 0.0
        %1237 = vmatprep.subr.mxu0 0.0
        %1238 = vmatpush1.msra.mxu0 0.0
        %1239 = vmatprep.subr.mxu0 0.0
        %1240 = vmatpush1.msra.mxu0 0.0
        %1241 = vmatprep.subr.mxu0 0.0
        %1242 = vmatpush1.msra.mxu0 0.0
        %1243 = vmatprep.subr.mxu0 0.0
        %1244 = vmatpush1.msra.mxu0 %v1206
        %1245 = vmatprep.subr.mxu0 0.0
        %1246 = vmatpush1.msra.mxu0 %v1204
        %1247 = vmatprep.subr.mxu0 0.0
        %1248 = vmatpush2.msra.mxu0 0.0
        %1249 = vmatprep.subr.mxu0 0.0
        %1250 = vmatpush2.msra.mxu0 0.0
        %1251 = vmatprep.subr.mxu0 0.0
        %1252 = vmatpush2.msra.mxu0 0.0
        %1253 = vmatprep.subr.mxu0 0.0
        %1254 = vmatpush2.msra.mxu0 0.0
        %1255 = vmatprep.subr.mxu0 0.0
        %1256 = vmatpush2.msra.mxu0 0.0
        %1257 = vmatprep.subr.mxu0 0.0
        %1258 = vmatpush2.msra.mxu0 0.0
        %1259 = vmatprep.subr.mxu0 0.0
        %1260 = vmatpush2.msra.mxu0 0.0
        %1261 = vmatprep.subr.mxu0 0.0
        %1262 = vmatpush2.msra.mxu0 0.0
        %1263 = vmatprep.subr.mxu0 0.0
        %1264 = vmatpush2.msra.mxu0 0.0
        %1265 = vmatprep.subr.mxu0 0.0
        %1266 = vmatpush2.msra.mxu0 0.0
        %1267 = vmatprep.subr.mxu0 0.0
        %1268 = vmatpush2.msra.mxu0 0.0
        %1269 = vmatprep.subr.mxu0 0.0
        %1270 = vmatpush2.msra.mxu0 0.0
        %1271 = vmatprep.subr.mxu0 0.0
        %1272 = vmatpush2.msra.mxu0 0.0
        %1273 = vmatprep.subr.mxu0 0.0
        %1274 = vmatpush2.msra.mxu0 0.0
        %1275 = vmatprep.subr.mxu0 0.0
        %1276 = vmatpush2.msra.mxu0 0.0
        %1277 = vmatprep.subr.mxu0 0.0
        %1278 = vmatpush2.msra.mxu0 0.0
        %1279 = vmatprep.mubr.f32.mxu0 0.0
        %1280 = vmatmul.mubr.f32.gmra.mxu0 %v1210
        %v1281 = vpop.f32.mrf.mxu0
        %v1282 = vadd.f32 0.0, %v1281
        %v1283 = vpop.f32.mrf.mxu0
        %1284 = vmatprep.mubr.f32.mxu0 0.0
        %1285 = vmatmul.mubr.f32.gmra.mxu0 %v1213
        %v1286 = vpop.f32.mrf.mxu0
        %v1287 = vadd.f32 0.0, %v1286
        %v1288 = vpop.f32.mrf.mxu0
        %1289 = vdwg.mxu0
        %1292 = vrot.lane.b32.xlu0 %v1282, 8
        %v1293 = vpop.permute.xlu0 %1292
        %1294 = vrot.lane.b32.xlu0 %v1287, 8
        %v1295 = vpop.permute.xlu0 %1294
        %vm1298 = vcmask 130112
        %1299 = vst.msk [vmem:[#allocation5] sm:$0xff] %vm1298, %v1293
        %1300 = vst.msk [vmem:[#allocation5 + $0x8] sm:$0xff] %vm1298, %v1295
        %v1301 = vld [vmem:[#allocation2] sm:$0xff]
        %v1302 = vld [vmem:[#allocation2 + $0x8] sm:$0xff]
        %v1303 = vld [vmem:[#allocation3] sm:$0xff]
        %v1304 = vld [vmem:[#allocation3 + $0x8] sm:$0xff]
        %1307 = vrot.lane.b32.xlu0 %v1301, 112
        %v1308 = vpop.permute.xlu0 %1307
        %1309 = vrot.lane.b32.xlu0 %v1302, 112
        %v1310 = vpop.permute.xlu0 %1309
        %v1313 = vsel %vm747, %v1308, 0.0
        %1314 = vadd.xlane.f32.xlu0 %v1313
        %v1315 = vpop.xlane.xlu0 %1314
        %v1316 = vsel %vm747, %v1310, 0.0
        %1317 = vadd.xlane.f32.xlu0 %v1316
        %v1318 = vpop.xlane.xlu0 %1317
        %v1319 = vmul.f32 %v1315, %v754
        %v1320 = vmul.f32 %v1318, %v754
        %v1321 = vsub.f32 %v1301, %v1319
        %v1322 = vsub.f32 %v1302, %v1320
        %1325 = vrot.lane.b32.xlu0 %v1303, 112
        %v1326 = vpop.permute.xlu0 %1325
        %1327 = vrot.lane.b32.xlu0 %v1304, 112
        %v1328 = vpop.permute.xlu0 %1327
        %v1331 = vsel %vm747, %v1326, 0.0
        %1332 = vadd.xlane.f32.xlu0 %v1331
        %v1333 = vpop.xlane.xlu0 %1332
        %v1334 = vsel %vm747, %v1328, 0.0
        %1335 = vadd.xlane.f32.xlu0 %v1334
        %v1336 = vpop.xlane.xlu0 %1335
        %v1337 = vmul.f32 %v1333, %v754
        %v1338 = vmul.f32 %v1336, %v754
        %v1339 = vsub.f32 %v1303, %v1337
        %v1340 = vsub.f32 %v1304, %v1338
        %v1341 = vmul.f32 %v1321, %v1321
        %v1342 = vmul.f32 %v1322, %v1322
        %1345 = vrot.lane.b32.xlu0 %v1341, 112
        %v1346 = vpop.permute.xlu0 %1345
        %1347 = vrot.lane.b32.xlu0 %v1342, 112
        %v1348 = vpop.permute.xlu0 %1347
        %v1351 = vsel %vm747, %v1346, 0.0
        %1352 = vadd.xlane.f32.xlu0 %v1351
        %v1353 = vpop.xlane.xlu0 %1352
        %v1354 = vsel %vm747, %v1348, 0.0
        %1355 = vadd.xlane.f32.xlu0 %v1354
        %v1356 = vpop.xlane.xlu0 %1355
        %v1357 = vadd.f32 %v1353, 1e-12
        %v1358 = vadd.f32 %v1356, 1e-12
        %v1359 = vrsqrt.pop %v1357
        %v1360 = vrsqrt.pop %v1358
        %v1361 = vmul.f32 %v1321, %v1359
        %v1362 = vmul.f32 %v1322, %v1360
        %v1363 = vmul.f32 %v1339, %v1339
        %v1364 = vmul.f32 %v1340, %v1340
        %1367 = vrot.lane.b32.xlu0 %v1363, 112
        %v1368 = vpop.permute.xlu0 %1367
        %1369 = vrot.lane.b32.xlu0 %v1364, 112
        %v1370 = vpop.permute.xlu0 %1369
        %v1373 = vsel %vm747, %v1368, 0.0
        %1374 = vadd.xlane.f32.xlu0 %v1373
        %v1375 = vpop.xlane.xlu0 %1374
        %v1376 = vsel %vm747, %v1370, 0.0
        %1377 = vadd.xlane.f32.xlu0 %v1376
        %v1378 = vpop.xlane.xlu0 %1377
        %v1379 = vadd.f32 %v1375, 1e-12
        %v1380 = vadd.f32 %v1378, 1e-12
        %v1381 = vrsqrt.pop %v1379
        %v1382 = vrsqrt.pop %v1380
        %v1383 = vmul.f32 %v1339, %v1381
        %v1384 = vmul.f32 %v1340, %v1382
        %1387 = vrot.lane.b32.xlu0 %v1361, 112
        %v1388 = vpop.permute.xlu0 %1387
        %1389 = vrot.lane.b32.xlu0 %v1362, 112
        %v1390 = vpop.permute.xlu0 %1389
        %1393 = vrot.lane.b32.xlu0 %v1383, 112
        %v1394 = vpop.permute.xlu0 %1393
        %1395 = vrot.lane.b32.xlu0 %v1384, 112
        %v1396 = vpop.permute.xlu0 %1395
        %v1397 = vsel %vm747, %v1388, 0
        %v1399 = vsel %vm747, %v1390, 0
        %v1401 = vsel %vm747, %v1394, 0
        %v1403 = vsel %vm747, %v1396, 0
        %1405 = vmatprep.subr.mxu0 0.0
        %1406 = vmatpush1.xpose.msra.mxu0 0.0
        %1407 = vmatprep.subr.mxu0 0.0
        %1408 = vmatpush1.xpose.msra.mxu0 0.0
        %1409 = vmatprep.subr.mxu0 0.0
        %1410 = vmatpush1.xpose.msra.mxu0 0.0
        %1411 = vmatprep.subr.mxu0 0.0
        %1412 = vmatpush1.xpose.msra.mxu0 0.0
        %1413 = vmatprep.subr.mxu0 0.0
        %1414 = vmatpush1.xpose.msra.mxu0 0.0
        %1415 = vmatprep.subr.mxu0 0.0
        %1416 = vmatpush1.xpose.msra.mxu0 0.0
        %1417 = vmatprep.subr.mxu0 0.0
        %1418 = vmatpush1.xpose.msra.mxu0 0.0
        %1419 = vmatprep.subr.mxu0 0.0
        %1420 = vmatpush1.xpose.msra.mxu0 0.0
        %1421 = vmatprep.subr.mxu0 0.0
        %1422 = vmatpush1.xpose.msra.mxu0 0.0
        %1423 = vmatprep.subr.mxu0 0.0
        %1424 = vmatpush1.xpose.msra.mxu0 0.0
        %1425 = vmatprep.subr.mxu0 0.0
        %1426 = vmatpush1.xpose.msra.mxu0 0.0
        %1427 = vmatprep.subr.mxu0 0.0
        %1428 = vmatpush1.xpose.msra.mxu0 0.0
        %1429 = vmatprep.subr.mxu0 0.0
        %1430 = vmatpush1.xpose.msra.mxu0 0.0
        %1431 = vmatprep.subr.mxu0 0.0
        %1432 = vmatpush1.xpose.msra.mxu0 0.0
        %1433 = vmatprep.subr.mxu0 0.0
        %1434 = vmatpush1.xpose.msra.mxu0 %v1403
        %1435 = vmatprep.subr.mxu0 0.0
        %1436 = vmatpush1.xpose.msra.mxu0 %v1401
        %1437 = vmatprep.subr.mxu0 0.0
        %1438 = vmatpush2.xpose.msra.mxu0 0.0
        %1439 = vmatprep.subr.mxu0 0.0
        %1440 = vmatpush2.xpose.msra.mxu0 0.0
        %1441 = vmatprep.subr.mxu0 0.0
        %1442 = vmatpush2.xpose.msra.mxu0 0.0
        %1443 = vmatprep.subr.mxu0 0.0
        %1444 = vmatpush2.xpose.msra.mxu0 0.0
        %1445 = vmatprep.subr.mxu0 0.0
        %1446 = vmatpush2.xpose.msra.mxu0 0.0
        %1447 = vmatprep.subr.mxu0 0.0
        %1448 = vmatpush2.xpose.msra.mxu0 0.0
        %1449 = vmatprep.subr.mxu0 0.0
        %1450 = vmatpush2.xpose.msra.mxu0 0.0
        %1451 = vmatprep.subr.mxu0 0.0
        %1452 = vmatpush2.xpose.msra.mxu0 0.0
        %1453 = vmatprep.subr.mxu0 0.0
        %1454 = vmatpush2.xpose.msra.mxu0 0.0
        %1455 = vmatprep.subr.mxu0 0.0
        %1456 = vmatpush2.xpose.msra.mxu0 0.0
        %1457 = vmatprep.subr.mxu0 0.0
        %1458 = vmatpush2.xpose.msra.mxu0 0.0
        %1459 = vmatprep.subr.mxu0 0.0
        %1460 = vmatpush2.xpose.msra.mxu0 0.0
        %1461 = vmatprep.subr.mxu0 0.0
        %1462 = vmatpush2.xpose.msra.mxu0 0.0
        %1463 = vmatprep.subr.mxu0 0.0
        %1464 = vmatpush2.xpose.msra.mxu0 0.0
        %1465 = vmatprep.subr.mxu0 0.0
        %1466 = vmatpush2.xpose.msra.mxu0 0.0
        %1467 = vmatprep.subr.mxu0 0.0
        %1468 = vmatpush2.xpose.msra.mxu0 0.0
        %1469 = vmatprep.mubr.f32.mxu0 0.0
        %1470 = vmatmul.mubr.f32.gmra.mxu0 %v1397
        %v1471 = vpop.f32.mrf.mxu0
        %v1472 = vadd.f32 %v801, %v1471
        %v1473 = vpop.f32.mrf.mxu0
        %1474 = vmatprep.mubr.f32.mxu0 0.0
        %1475 = vmatmul.mubr.f32.gmra.mxu0 %v1399
        %v1476 = vpop.f32.mrf.mxu0
        %v1477 = vadd.f32 %v801, %v1476
        %v1478 = vpop.f32.mrf.mxu0
        %1479 = vdwg.mxu0
        %v1480 = vsel %vm890, %v1472, -inf
        %1481 = vmax.xlane.f32.xlu0 %v1480
        %v1482 = vpop.xlane.xlu0 %1481
        %v1483 = vsel %vm890, %v1477, -inf
        %1484 = vmax.xlane.f32.xlu0 %v1483
        %v1485 = vpop.xlane.xlu0 %1484
        %v1486 = vsub.f32 %v1472, %v1482
        %v1487 = vsub.f32 %v1477, %v1485
        %v1488 = vmul.f32 %v1486, 1.442695
        %v1489 = vpow.pop %v1488
        %v1490 = vmul.f32 %v1487, 1.442695
        %v1491 = vpow.pop %v1490
        %v1492 = vsel %vm890, %v1489, 0.0
        %1493 = vadd.xlane.f32.xlu0 %v1492
        %v1494 = vpop.xlane.xlu0 %1493
        %v1495 = vsel %vm890, %v1491, 0.0
        %1496 = vadd.xlane.f32.xlu0 %v1495
        %v1497 = vpop.xlane.xlu0 %1496
        %v1498 = vrcp.pop %v1494
        %v1499 = vrcp.pop %v1497
        %v1500 = vmul.f32 %v1489, %v1498
        %v1501 = vmul.f32 %v1491, %v1499
        %v1502 = vld [vmem:[#allocation4] sm:$0xff]
        %v1503 = vld [vmem:[#allocation4 + $0x8] sm:$0xff]
        %1506 = vrot.lane.b32.xlu0 %v1502, 112
        %v1507 = vpop.permute.xlu0 %1506
        %1508 = vrot.lane.b32.xlu0 %v1503, 112
        %v1509 = vpop.permute.xlu0 %1508
        %v1513 = vsel %vm890, %v1500, 0
        %v1516 = vsel %vm890, %v1501, 0
        %1518 = vmatprep.subr.mxu0 0.0
        %1519 = vmatpush1.msra.mxu0 0.0
        %1520 = vmatprep.subr.mxu0 0.0
        %1521 = vmatpush1.msra.mxu0 0.0
        %1522 = vmatprep.subr.mxu0 0.0
        %1523 = vmatpush1.msra.mxu0 0.0
        %1524 = vmatprep.subr.mxu0 0.0
        %1525 = vmatpush1.msra.mxu0 0.0
        %1526 = vmatprep.subr.mxu0 0.0
        %1527 = vmatpush1.msra.mxu0 0.0
        %1528 = vmatprep.subr.mxu0 0.0
        %1529 = vmatpush1.msra.mxu0 0.0
        %1530 = vmatprep.subr.mxu0 0.0
        %1531 = vmatpush1.msra.mxu0 0.0
        %1532 = vmatprep.subr.mxu0 0.0
        %1533 = vmatpush1.msra.mxu0 0.0
        %1534 = vmatprep.subr.mxu0 0.0
        %1535 = vmatpush1.msra.mxu0 0.0
        %1536 = vmatprep.subr.mxu0 0.0
        %1537 = vmatpush1.msra.mxu0 0.0
        %1538 = vmatprep.subr.mxu0 0.0
        %1539 = vmatpush1.msra.mxu0 0.0
        %1540 = vmatprep.subr.mxu0 0.0
        %1541 = vmatpush1.msra.mxu0 0.0
        %1542 = vmatprep.subr.mxu0 0.0
        %1543 = vmatpush1.msra.mxu0 0.0
        %1544 = vmatprep.subr.mxu0 0.0
        %1545 = vmatpush1.msra.mxu0 0.0
        %1546 = vmatprep.subr.mxu0 0.0
        %1547 = vmatpush1.msra.mxu0 %v1509
        %1548 = vmatprep.subr.mxu0 0.0
        %1549 = vmatpush1.msra.mxu0 %v1507
        %1550 = vmatprep.subr.mxu0 0.0
        %1551 = vmatpush2.msra.mxu0 0.0
        %1552 = vmatprep.subr.mxu0 0.0
        %1553 = vmatpush2.msra.mxu0 0.0
        %1554 = vmatprep.subr.mxu0 0.0
        %1555 = vmatpush2.msra.mxu0 0.0
        %1556 = vmatprep.subr.mxu0 0.0
        %1557 = vmatpush2.msra.mxu0 0.0
        %1558 = vmatprep.subr.mxu0 0.0
        %1559 = vmatpush2.msra.mxu0 0.0
        %1560 = vmatprep.subr.mxu0 0.0
        %1561 = vmatpush2.msra.mxu0 0.0
        %1562 = vmatprep.subr.mxu0 0.0
        %1563 = vmatpush2.msra.mxu0 0.0
        %1564 = vmatprep.subr.mxu0 0.0
        %1565 = vmatpush2.msra.mxu0 0.0
        %1566 = vmatprep.subr.mxu0 0.0
        %1567 = vmatpush2.msra.mxu0 0.0
        %1568 = vmatprep.subr.mxu0 0.0
        %1569 = vmatpush2.msra.mxu0 0.0
        %1570 = vmatprep.subr.mxu0 0.0
        %1571 = vmatpush2.msra.mxu0 0.0
        %1572 = vmatprep.subr.mxu0 0.0
        %1573 = vmatpush2.msra.mxu0 0.0
        %1574 = vmatprep.subr.mxu0 0.0
        %1575 = vmatpush2.msra.mxu0 0.0
        %1576 = vmatprep.subr.mxu0 0.0
        %1577 = vmatpush2.msra.mxu0 0.0
        %1578 = vmatprep.subr.mxu0 0.0
        %1579 = vmatpush2.msra.mxu0 0.0
        %1580 = vmatprep.subr.mxu0 0.0
        %1581 = vmatpush2.msra.mxu0 0.0
        %1582 = vmatprep.mubr.f32.mxu0 0.0
        %1583 = vmatmul.mubr.f32.gmra.mxu0 %v1513
        %v1584 = vpop.f32.mrf.mxu0
        %v1585 = vadd.f32 0.0, %v1584
        %v1586 = vpop.f32.mrf.mxu0
        %1587 = vmatprep.mubr.f32.mxu0 0.0
        %1588 = vmatmul.mubr.f32.gmra.mxu0 %v1516
        %v1589 = vpop.f32.mrf.mxu0
        %v1590 = vadd.f32 0.0, %v1589
        %v1591 = vpop.f32.mrf.mxu0
        %1592 = vdwg.mxu0
        %1595 = vrot.lane.b32.xlu0 %v1585, 16
        %v1596 = vpop.permute.xlu0 %1595
        %1597 = vrot.lane.b32.xlu0 %v1590, 16
        %v1598 = vpop.permute.xlu0 %1597
        %vm1601 = vcmask 195712
        %1602 = vst.msk [vmem:[#allocation5] sm:$0xff] %vm1601, %v1596
        %1603 = vst.msk [vmem:[#allocation5 + $0x8] sm:$0xff] %vm1601, %v1598
        %v1604 = vld [vmem:[#allocation2] sm:$0xff]
        %v1605 = vld [vmem:[#allocation2 + $0x8] sm:$0xff]
        %v1606 = vld [vmem:[#allocation3] sm:$0xff]
        %v1607 = vld [vmem:[#allocation3 + $0x8] sm:$0xff]
        %1610 = vrot.lane.b32.xlu0 %v1604, 104
        %v1611 = vpop.permute.xlu0 %1610
        %1612 = vrot.lane.b32.xlu0 %v1605, 104
        %v1613 = vpop.permute.xlu0 %1612
        %v1616 = vsel %vm747, %v1611, 0.0
        %1617 = vadd.xlane.f32.xlu0 %v1616
        %v1618 = vpop.xlane.xlu0 %1617
        %v1619 = vsel %vm747, %v1613, 0.0
        %1620 = vadd.xlane.f32.xlu0 %v1619
        %v1621 = vpop.xlane.xlu0 %1620
        %v1622 = vmul.f32 %v1618, %v754
        %v1623 = vmul.f32 %v1621, %v754
        %v1624 = vsub.f32 %v1604, %v1622
        %v1625 = vsub.f32 %v1605, %v1623
        %1628 = vrot.lane.b32.xlu0 %v1606, 104
        %v1629 = vpop.permute.xlu0 %1628
        %1630 = vrot.lane.b32.xlu0 %v1607, 104
        %v1631 = vpop.permute.xlu0 %1630
        %v1634 = vsel %vm747, %v1629, 0.0
        %1635 = vadd.xlane.f32.xlu0 %v1634
        %v1636 = vpop.xlane.xlu0 %1635
        %v1637 = vsel %vm747, %v1631, 0.0
        %1638 = vadd.xlane.f32.xlu0 %v1637
        %v1639 = vpop.xlane.xlu0 %1638
        %v1640 = vmul.f32 %v1636, %v754
        %v1641 = vmul.f32 %v1639, %v754
        %v1642 = vsub.f32 %v1606, %v1640
        %v1643 = vsub.f32 %v1607, %v1641
        %v1644 = vmul.f32 %v1624, %v1624
        %v1645 = vmul.f32 %v1625, %v1625
        %1648 = vrot.lane.b32.xlu0 %v1644, 104
        %v1649 = vpop.permute.xlu0 %1648
        %1650 = vrot.lane.b32.xlu0 %v1645, 104
        %v1651 = vpop.permute.xlu0 %1650
        %v1654 = vsel %vm747, %v1649, 0.0
        %1655 = vadd.xlane.f32.xlu0 %v1654
        %v1656 = vpop.xlane.xlu0 %1655
        %v1657 = vsel %vm747, %v1651, 0.0
        %1658 = vadd.xlane.f32.xlu0 %v1657
        %v1659 = vpop.xlane.xlu0 %1658
        %v1660 = vadd.f32 %v1656, 1e-12
        %v1661 = vadd.f32 %v1659, 1e-12
        %v1662 = vrsqrt.pop %v1660
        %v1663 = vrsqrt.pop %v1661
        %v1664 = vmul.f32 %v1624, %v1662
        %v1665 = vmul.f32 %v1625, %v1663
        %v1666 = vmul.f32 %v1642, %v1642
        %v1667 = vmul.f32 %v1643, %v1643
        %1670 = vrot.lane.b32.xlu0 %v1666, 104
        %v1671 = vpop.permute.xlu0 %1670
        %1672 = vrot.lane.b32.xlu0 %v1667, 104
        %v1673 = vpop.permute.xlu0 %1672
        %v1676 = vsel %vm747, %v1671, 0.0
        %1677 = vadd.xlane.f32.xlu0 %v1676
        %v1678 = vpop.xlane.xlu0 %1677
        %v1679 = vsel %vm747, %v1673, 0.0
        %1680 = vadd.xlane.f32.xlu0 %v1679
        %v1681 = vpop.xlane.xlu0 %1680
        %v1682 = vadd.f32 %v1678, 1e-12
        %v1683 = vadd.f32 %v1681, 1e-12
        %v1684 = vrsqrt.pop %v1682
        %v1685 = vrsqrt.pop %v1683
        %v1686 = vmul.f32 %v1642, %v1684
        %v1687 = vmul.f32 %v1643, %v1685
        %1690 = vrot.lane.b32.xlu0 %v1664, 104
        %v1691 = vpop.permute.xlu0 %1690
        %1692 = vrot.lane.b32.xlu0 %v1665, 104
        %v1693 = vpop.permute.xlu0 %1692
        %1696 = vrot.lane.b32.xlu0 %v1686, 104
        %v1697 = vpop.permute.xlu0 %1696
        %1698 = vrot.lane.b32.xlu0 %v1687, 104
        %v1699 = vpop.permute.xlu0 %1698
        %v1700 = vsel %vm747, %v1691, 0
        %v1702 = vsel %vm747, %v1693, 0
        %v1704 = vsel %vm747, %v1697, 0
        %v1706 = vsel %vm747, %v1699, 0
        %1708 = vmatprep.subr.mxu0 0.0
        %1709 = vmatpush1.xpose.msra.mxu0 0.0
        %1710 = vmatprep.subr.mxu0 0.0
        %1711 = vmatpush1.xpose.msra.mxu0 0.0
        %1712 = vmatprep.subr.mxu0 0.0
        %1713 = vmatpush1.xpose.msra.mxu0 0.0
        %1714 = vmatprep.subr.mxu0 0.0
        %1715 = vmatpush1.xpose.msra.mxu0 0.0
        %1716 = vmatprep.subr.mxu0 0.0
        %1717 = vmatpush1.xpose.msra.mxu0 0.0
        %1718 = vmatprep.subr.mxu0 0.0
        %1719 = vmatpush1.xpose.msra.mxu0 0.0
        %1720 = vmatprep.subr.mxu0 0.0
        %1721 = vmatpush1.xpose.msra.mxu0 0.0
        %1722 = vmatprep.subr.mxu0 0.0
        %1723 = vmatpush1.xpose.msra.mxu0 0.0
        %1724 = vmatprep.subr.mxu0 0.0
        %1725 = vmatpush1.xpose.msra.mxu0 0.0
        %1726 = vmatprep.subr.mxu0 0.0
        %1727 = vmatpush1.xpose.msra.mxu0 0.0
        %1728 = vmatprep.subr.mxu0 0.0
        %1729 = vmatpush1.xpose.msra.mxu0 0.0
        %1730 = vmatprep.subr.mxu0 0.0
        %1731 = vmatpush1.xpose.msra.mxu0 0.0
        %1732 = vmatprep.subr.mxu0 0.0
        %1733 = vmatpush1.xpose.msra.mxu0 0.0
        %1734 = vmatprep.subr.mxu0 0.0
        %1735 = vmatpush1.xpose.msra.mxu0 0.0
        %1736 = vmatprep.subr.mxu0 0.0
        %1737 = vmatpush1.xpose.msra.mxu0 %v1706
        %1738 = vmatprep.subr.mxu0 0.0
        %1739 = vmatpush1.xpose.msra.mxu0 %v1704
        %1740 = vmatprep.subr.mxu0 0.0
        %1741 = vmatpush2.xpose.msra.mxu0 0.0
        %1742 = vmatprep.subr.mxu0 0.0
        %1743 = vmatpush2.xpose.msra.mxu0 0.0
        %1744 = vmatprep.subr.mxu0 0.0
        %1745 = vmatpush2.xpose.msra.mxu0 0.0
        %1746 = vmatprep.subr.mxu0 0.0
        %1747 = vmatpush2.xpose.msra.mxu0 0.0
        %1748 = vmatprep.subr.mxu0 0.0
        %1749 = vmatpush2.xpose.msra.mxu0 0.0
        %1750 = vmatprep.subr.mxu0 0.0
        %1751 = vmatpush2.xpose.msra.mxu0 0.0
        %1752 = vmatprep.subr.mxu0 0.0
        %1753 = vmatpush2.xpose.msra.mxu0 0.0
        %1754 = vmatprep.subr.mxu0 0.0
        %1755 = vmatpush2.xpose.msra.mxu0 0.0
        %1756 = vmatprep.subr.mxu0 0.0
        %1757 = vmatpush2.xpose.msra.mxu0 0.0
        %1758 = vmatprep.subr.mxu0 0.0
        %1759 = vmatpush2.xpose.msra.mxu0 0.0
        %1760 = vmatprep.subr.mxu0 0.0
        %1761 = vmatpush2.xpose.msra.mxu0 0.0
        %1762 = vmatprep.subr.mxu0 0.0
        %1763 = vmatpush2.xpose.msra.mxu0 0.0
        %1764 = vmatprep.subr.mxu0 0.0
        %1765 = vmatpush2.xpose.msra.mxu0 0.0
        %1766 = vmatprep.subr.mxu0 0.0
        %1767 = vmatpush2.xpose.msra.mxu0 0.0
        %1768 = vmatprep.subr.mxu0 0.0
        %1769 = vmatpush2.xpose.msra.mxu0 0.0
        %1770 = vmatprep.subr.mxu0 0.0
        %1771 = vmatpush2.xpose.msra.mxu0 0.0
        %1772 = vmatprep.mubr.f32.mxu0 0.0
        %1773 = vmatmul.mubr.f32.gmra.mxu0 %v1700
        %v1774 = vpop.f32.mrf.mxu0
        %v1775 = vadd.f32 %v801, %v1774
        %v1776 = vpop.f32.mrf.mxu0
        %1777 = vmatprep.mubr.f32.mxu0 0.0
        %1778 = vmatmul.mubr.f32.gmra.mxu0 %v1702
        %v1779 = vpop.f32.mrf.mxu0
        %v1780 = vadd.f32 %v801, %v1779
        %v1781 = vpop.f32.mrf.mxu0
        %1782 = vdwg.mxu0
        %v1783 = vsel %vm890, %v1775, -inf
        %1784 = vmax.xlane.f32.xlu0 %v1783
        %v1785 = vpop.xlane.xlu0 %1784
        %v1786 = vsel %vm890, %v1780, -inf
        %1787 = vmax.xlane.f32.xlu0 %v1786
        %v1788 = vpop.xlane.xlu0 %1787
        %v1789 = vsub.f32 %v1775, %v1785
        %v1790 = vsub.f32 %v1780, %v1788
        %v1791 = vmul.f32 %v1789, 1.442695
        %v1792 = vpow.pop %v1791
        %v1793 = vmul.f32 %v1790, 1.442695
        %v1794 = vpow.pop %v1793
        %v1795 = vsel %vm890, %v1792, 0.0
        %1796 = vadd.xlane.f32.xlu0 %v1795
        %v1797 = vpop.xlane.xlu0 %1796
        %v1798 = vsel %vm890, %v1794, 0.0
        %1799 = vadd.xlane.f32.xlu0 %v1798
        %v1800 = vpop.xlane.xlu0 %1799
        %v1801 = vrcp.pop %v1797
        %v1802 = vrcp.pop %v1800
        %v1803 = vmul.f32 %v1792, %v1801
        %v1804 = vmul.f32 %v1794, %v1802
        %v1805 = vld [vmem:[#allocation4] sm:$0xff]
        %v1806 = vld [vmem:[#allocation4 + $0x8] sm:$0xff]
        %1809 = vrot.lane.b32.xlu0 %v1805, 104
        %v1810 = vpop.permute.xlu0 %1809
        %1811 = vrot.lane.b32.xlu0 %v1806, 104
        %v1812 = vpop.permute.xlu0 %1811
        %v1816 = vsel %vm890, %v1803, 0
        %v1819 = vsel %vm890, %v1804, 0
        %1821 = vmatprep.subr.mxu0 0.0
        %1822 = vmatpush1.msra.mxu0 0.0
        %1823 = vmatprep.subr.mxu0 0.0
        %1824 = vmatpush1.msra.mxu0 0.0
        %1825 = vmatprep.subr.mxu0 0.0
        %1826 = vmatpush1.msra.mxu0 0.0
        %1827 = vmatprep.subr.mxu0 0.0
        %1828 = vmatpush1.msra.mxu0 0.0
        %1829 = vmatprep.subr.mxu0 0.0
        %1830 = vmatpush1.msra.mxu0 0.0
        %1831 = vmatprep.subr.mxu0 0.0
        %1832 = vmatpush1.msra.mxu0 0.0
        %1833 = vmatprep.subr.mxu0 0.0
        %1834 = vmatpush1.msra.mxu0 0.0
        %1835 = vmatprep.subr.mxu0 0.0
        %1836 = vmatpush1.msra.mxu0 0.0
        %1837 = vmatprep.subr.mxu0 0.0
        %1838 = vmatpush1.msra.mxu0 0.0
        %1839 = vmatprep.subr.mxu0 0.0
        %1840 = vmatpush1.msra.mxu0 0.0
        %1841 = vmatprep.subr.mxu0 0.0
        %1842 = vmatpush1.msra.mxu0 0.0
        %1843 = vmatprep.subr.mxu0 0.0
        %1844 = vmatpush1.msra.mxu0 0.0
        %1845 = vmatprep.subr.mxu0 0.0
        %1846 = vmatpush1.msra.mxu0 0.0
        %1847 = vmatprep.subr.mxu0 0.0
        %1848 = vmatpush1.msra.mxu0 0.0
        %1849 = vmatprep.subr.mxu0 0.0
        %1850 = vmatpush1.msra.mxu0 %v1812
        %1851 = vmatprep.subr.mxu0 0.0
        %1852 = vmatpush1.msra.mxu0 %v1810
        %1853 = vmatprep.subr.mxu0 0.0
        %1854 = vmatpush2.msra.mxu0 0.0
        %1855 = vmatprep.subr.mxu0 0.0
        %1856 = vmatpush2.msra.mxu0 0.0
        %1857 = vmatprep.subr.mxu0 0.0
        %1858 = vmatpush2.msra.mxu0 0.0
        %1859 = vmatprep.subr.mxu0 0.0
        %1860 = vmatpush2.msra.mxu0 0.0
        %1861 = vmatprep.subr.mxu0 0.0
        %1862 = vmatpush2.msra.mxu0 0.0
        %1863 = vmatprep.subr.mxu0 0.0
        %1864 = vmatpush2.msra.mxu0 0.0
        %1865 = vmatprep.subr.mxu0 0.0
        %1866 = vmatpush2.msra.mxu0 0.0
        %1867 = vmatprep.subr.mxu0 0.0
        %1868 = vmatpush2.msra.mxu0 0.0
        %1869 = vmatprep.subr.mxu0 0.0
        %1870 = vmatpush2.msra.mxu0 0.0
        %1871 = vmatprep.subr.mxu0 0.0
        %1872 = vmatpush2.msra.mxu0 0.0
        %1873 = vmatprep.subr.mxu0 0.0
        %1874 = vmatpush2.msra.mxu0 0.0
        %1875 = vmatprep.subr.mxu0 0.0
        %1876 = vmatpush2.msra.mxu0 0.0
        %1877 = vmatprep.subr.mxu0 0.0
        %1878 = vmatpush2.msra.mxu0 0.0
        %1879 = vmatprep.subr.mxu0 0.0
        %1880 = vmatpush2.msra.mxu0 0.0
        %1881 = vmatprep.subr.mxu0 0.0
        %1882 = vmatpush2.msra.mxu0 0.0
        %1883 = vmatprep.subr.mxu0 0.0
        %1884 = vmatpush2.msra.mxu0 0.0
        %1885 = vmatprep.mubr.f32.mxu0 0.0
        %1886 = vmatmul.mubr.f32.gmra.mxu0 %v1816
        %v1887 = vpop.f32.mrf.mxu0
        %v1888 = vadd.f32 0.0, %v1887
        %v1889 = vpop.f32.mrf.mxu0
        %1890 = vmatprep.mubr.f32.mxu0 0.0
        %1891 = vmatmul.mubr.f32.gmra.mxu0 %v1819
        %v1892 = vpop.f32.mrf.mxu0
        %v1893 = vadd.f32 0.0, %v1892
        %v1894 = vpop.f32.mrf.mxu0
        %1895 = vdwg.mxu0
        %1898 = vrot.lane.b32.xlu0 %v1888, 24
        %v1899 = vpop.permute.xlu0 %1898
        %1900 = vrot.lane.b32.xlu0 %v1893, 24
        %v1901 = vpop.permute.xlu0 %1900
        %vm1904 = vcmask 261312
        %1905 = vst.msk [vmem:[#allocation5] sm:$0xff] %vm1904, %v1899
        %1906 = vst.msk [vmem:[#allocation5 + $0x8] sm:$0xff] %vm1904, %v1901
        %v1907 = vld [vmem:[#allocation5] sm:$0xff]
        %v1908 = vld [vmem:[#allocation5 + $0x8] sm:$0xff]
        %v1909 = vld [vmem:[#allocation15] sm:$0xff]
        %v1910 = vld [vmem:[#allocation15 + $0x8] sm:$0xff]
        %v1911 = vld [vmem:[#allocation15 + $0x10] sm:$0xff]
        %v1912 = vld [vmem:[#allocation15 + $0x18] sm:$0xff]
        %v1913 = vld [vmem:[%s8] sm:$0x1]
        %v1915 = vlaneseq
        %v1916 = vshrl.u32 %v1915, 7
        %v1917 = vsub.s32 0, %v1916
        %v1918 = vrot.slane %v1913, %v1917
        %v1921 = vsel %vm447, %v1907, 0
        %v1924 = vsel %vm447, %v1908, 0
        %1926 = vmatprep.subr.mxu0 0.0
        %1927 = vmatpush1.msra.mxu0 0.0
        %1928 = vmatprep.subr.mxu0 0.0
        %1929 = vmatpush1.msra.mxu0 0.0
        %1930 = vmatprep.subr.mxu0 0.0
        %1931 = vmatpush1.msra.mxu0 0.0
        %1932 = vmatprep.subr.mxu0 0.0
        %1933 = vmatpush1.msra.mxu0 0.0
        %1934 = vmatprep.subr.mxu0 0.0
        %1935 = vmatpush1.msra.mxu0 0.0
        %1936 = vmatprep.subr.mxu0 0.0
        %1937 = vmatpush1.msra.mxu0 0.0
        %1938 = vmatprep.subr.mxu0 0.0
        %1939 = vmatpush1.msra.mxu0 0.0
        %1940 = vmatprep.subr.mxu0 0.0
        %1941 = vmatpush1.msra.mxu0 0.0
        %1942 = vmatprep.subr.mxu0 0.0
        %1943 = vmatpush1.msra.mxu0 0.0
        %1944 = vmatprep.subr.mxu0 0.0
        %1945 = vmatpush1.msra.mxu0 0.0
        %1946 = vmatprep.subr.mxu0 0.0
        %1947 = vmatpush1.msra.mxu0 0.0
        %1948 = vmatprep.subr.mxu0 0.0
        %1949 = vmatpush1.msra.mxu0 0.0
        %1950 = vmatprep.subr.mxu0 0.0
        %1951 = vmatpush1.msra.mxu0 %v1912
        %1952 = vmatprep.subr.mxu0 0.0
        %1953 = vmatpush1.msra.mxu0 %v1911
        %1954 = vmatprep.subr.mxu0 0.0
        %1955 = vmatpush1.msra.mxu0 %v1910
        %1956 = vmatprep.subr.mxu0 0.0
        %1957 = vmatpush1.msra.mxu0 %v1909
        %1958 = vmatprep.subr.mxu0 0.0
        %1959 = vmatpush2.msra.mxu0 0.0
        %1960 = vmatprep.subr.mxu0 0.0
        %1961 = vmatpush2.msra.mxu0 0.0
        %1962 = vmatprep.subr.mxu0 0.0
        %1963 = vmatpush2.msra.mxu0 0.0
        %1964 = vmatprep.subr.mxu0 0.0
        %1965 = vmatpush2.msra.mxu0 0.0
        %1966 = vmatprep.subr.mxu0 0.0
        %1967 = vmatpush2.msra.mxu0 0.0
        %1968 = vmatprep.subr.mxu0 0.0
        %1969 = vmatpush2.msra.mxu0 0.0
        %1970 = vmatprep.subr.mxu0 0.0
        %1971 = vmatpush2.msra.mxu0 0.0
        %1972 = vmatprep.subr.mxu0 0.0
        %1973 = vmatpush2.msra.mxu0 0.0
        %1974 = vmatprep.subr.mxu0 0.0
        %1975 = vmatpush2.msra.mxu0 0.0
        %1976 = vmatprep.subr.mxu0 0.0
        %1977 = vmatpush2.msra.mxu0 0.0
        %1978 = vmatprep.subr.mxu0 0.0
        %1979 = vmatpush2.msra.mxu0 0.0
        %1980 = vmatprep.subr.mxu0 0.0
        %1981 = vmatpush2.msra.mxu0 0.0
        %1982 = vmatprep.subr.mxu0 0.0
        %1983 = vmatpush2.msra.mxu0 0.0
        %1984 = vmatprep.subr.mxu0 0.0
        %1985 = vmatpush2.msra.mxu0 0.0
        %1986 = vmatprep.subr.mxu0 0.0
        %1987 = vmatpush2.msra.mxu0 0.0
        %1988 = vmatprep.subr.mxu0 0.0
        %1989 = vmatpush2.msra.mxu0 0.0
        %1990 = vmatprep.mubr.f32.mxu0 0.0
        %1991 = vmatmul.mubr.f32.gmra.mxu0 %v1921
        %v1992 = vpop.f32.mrf.mxu0
        %v1993 = vadd.f32 %v1918, %v1992
        %v1994 = vpop.f32.mrf.mxu0
        %1995 = vmatprep.mubr.f32.mxu0 0.0
        %1996 = vmatmul.mubr.f32.gmra.mxu0 %v1924
        %v1997 = vpop.f32.mrf.mxu0
        %v1998 = vadd.f32 %v1918, %v1997
        %v1999 = vpop.f32.mrf.mxu0
        %2000 = vdwg.mxu0
        %v2001 = vld [vmem:[%s380] sm:$0xff]
        %v2002 = vld [vmem:[%s380 + $0x8] sm:$0xff]
        %v2003 = vadd.f32 %v2001, %v1993
        %v2004 = vadd.f32 %v2002, %v1998
        %2005 = vst.msk [vmem:[%s442] sm:$0xff] %vm447, %v2003
        %2006 = vst.msk [vmem:[%s442 + $0x8] sm:$0xff] %vm447, %v2004
        %s2007 = sand.u32 %s238, 1
        %s2008 = scalar_lea.sflag [#allocation8], %s2007
        %s2009 = sand.u32 %s238, 1
        %s2010 = smul.addr %s2009, 16
        %s2011 = scalar_lea.vmem [#allocation17], %s2010
        // Predicated region
        $region81: #{tpu_custom_call.1} parent=55 // pred_check
          %p2012 = pneg %p248
        $region82: #{tpu_custom_call.1} parent=55 // pred_check_branch
          %2014 = sbr.rel (%p2012) target = $region84
        $region83: #{tpu_custom_call.1} parent=55 // pred_region
          %s2016 = ssub.s32 256, 256
          %2017 = vsyncadd %s2008, %s2016
          %s2018 = smul.addr %s31, 2
          %s2019 = smul.addr %s2018, 128
          %s2020 = scalar_lea.hbm %s9, %s2019
          %s2021 = sshll.u32 %s2011, 4
          %s2022 = int_to_ptr.vmem [resolvable:$true] %s2021
          %2027 = dma.vmem_to_hbm [thread:$0]  %s2022, 256, %s2020, %s2008, 128, 128, 8
        $region84: #{tpu_custom_call.1} parent=55 // pred_fallthru
          _
      $region56: #{tpu_custom_call.1} parent=5 // pred_fallthru
        _
      %p2028 = scmp.le.s32.totalorder 2, %s26
      // Predicated region
      $region85: #{tpu_custom_call.1} parent=5 // pred_check
        %p2029 = pneg %p2028
      $region86: #{tpu_custom_call.1} parent=5 // pred_check_branch
        %2031 = sbr.rel (%p2029) target = $region88
      $region87: #{tpu_custom_call.1} parent=5 // pred_region
        %s2032 = ssub.s32 %s26, 2
        // Predicated region
        $region89: #{tpu_custom_call.1} parent=87 // pred_check
          %p2033 = pneg %p254
        $region90: #{tpu_custom_call.1} parent=87 // pred_check_branch
          %2035 = sbr.rel (%p2033) target = $region92
        $region91: #{tpu_custom_call.1} parent=87 // pred_region
          %s2036 = sand.u32 %s239, 1
          %s2037 = scalar_lea.sflag [#allocation8], %s2036
          %s2038 = sand.u32 %s239, 1
          %s2039 = smul.addr %s2038, 16
          %s2040 = scalar_lea.vmem [#allocation17], %s2039
          %2041 = dma.done %s2037, 256
        $region92: #{tpu_custom_call.1} parent=87 // pred_fallthru
          _
      $region88: #{tpu_custom_call.1} parent=5 // pred_fallthru
        _
    $region6: #{tpu_custom_call.1} parent=1 // loop_footer
      %s30 = sadd.s32 1, %s26
    $region7: #{tpu_custom_call.1} parent=1 // loop_footer_branch
      %25 = sbr.rel target = $region3
    $region8: #{tpu_custom_call.1} parent=1 // loop_exit
      _
    %2042 = vsyncpa [#allocation7], 1
    %s2043 = scalar_lea.sflag [#allocation7], 1
    %2044 = vsyncpa %s2043, 1
    %2045 = vsyncpa [#allocation10], 1
    %s2046 = scalar_lea.sflag [#allocation10], 1
    %2047 = vsyncpa %s2046, 1
    %2048 = vsyncpa [#allocation13], 1
    %2049 = vsyncpa [#allocation16], 1
    %2050 = vsyncpa [#allocation8], 1
    %s2051 = scalar_lea.sflag [#allocation8], 1
    %2052 = vsyncpa %s2051, 1

</llo_original>
